<compile_context>
chip_gen: v7x
topology: tpu7x:2x2x1
jax: 0.10.0
libtpu: 0.0.40
codegen_flags: <defaults>
</compile_context>

<pallas_src>
import functools

import jax
import jax.numpy as jnp
from jax.experimental import pallas as pl
from jax.experimental.pallas import tpu as pltpu

EPS = 1e-5  # BatchNorm2d default eps


# ------------------------------ fused kernel -------------------------------

def _dense_block_kernel(x_ref, w_head_ref, s_head_ref, t3_ref, t5_ref,
                        w_pool_ref, w_out_ref, w_dense_ref, shifts_ref,
                        betas_ref, o_ref, *, num_blocks, BH, H, W, C):
    WC = W * C
    f32 = jnp.float32
    neg_inf = jnp.float32(-jnp.inf)

    # ---- hoisted, loop-invariant constants (emitted once, reused per block) --
    row = jax.lax.broadcasted_iota(jnp.int32, (BH, WC), 0) % H   # row within image
    lane = jax.lax.broadcasted_iota(jnp.int32, (BH, WC), 1)      # lane = w*C + c
    # row_ok[d]: reading row (r + d) stays inside the image (zero / -inf pad).
    row_ok = {d: jnp.logical_and(row + d >= 0, row + d < H)
              for d in (-2, -1, 1, 2)}
    left_edge = lane < C              # w == 0
    right_edge = lane >= WC - C       # w == W - 1

    def shift_rows(z, d):
        # z shifted by d rows within each image; out-of-image rows -> 0.
        # pltpu.roll keeps this on the (idle) XLU slot; the wrap-around rows
        # are exactly the ones the mask zeroes, so no per-image concat needed.
        return jnp.where(row_ok[d], pltpu.roll(z, shift=(-d) % BH, axis=0), 0.0)

    def bdot(a, w):
        # bf16 MXU operands, f32 accumulation.
        return jnp.dot(a.astype(jnp.bfloat16), w, preferred_element_type=f32)

    def swish(y, beta_row):
        # x * sigmoid(beta*x); sigmoid via tanh -> single EUP push per element.
        return y * (0.5 * jnp.tanh(0.5 * (y * beta_row)) + 0.5)

    def spatial_conv(z, t_ref, blk, K, shift_row, beta_row):
        # "same" KxK conv as K matmuls against banded block-Toeplitz weights
        # (W-direction zero padding is encoded as zero bands inside T[dy];
        #  H-direction padding is the row mask in shift_rows).
        pad = (K - 1) // 2
        acc = bdot(z, t_ref[blk, pad])                    # centre band (d == 0)
        for dy in range(K):
            d = dy - pad
            if d != 0:
                acc = acc + bdot(shift_rows(z, d), t_ref[blk, dy])
        return swish(acc + shift_row, beta_row)

    def maxpool3(z):
        # MaxPool2d(3, stride=1, padding=1) in the packed (B*H, W*C) layout.
        # Horizontal (W): lane rolls by +-C with edge masks.
        left = jnp.where(left_edge, neg_inf, pltpu.roll(z, shift=C, axis=1))
        right = jnp.where(right_edge, neg_inf,
                          pltpu.roll(z, shift=WC - C, axis=1))
        m = jnp.maximum(z, jnp.maximum(left, right))
        # Vertical (H): sublane rolls with per-image row masks (-inf pad).
        up = jnp.where(row_ok[-1], pltpu.roll(m, shift=1, axis=0), neg_inf)
        down = jnp.where(row_ok[1], pltpu.roll(m, shift=BH - 1, axis=0), neg_inf)
        return jnp.maximum(m, jnp.maximum(up, down))

    a = x_ref[...].astype(f32)          # (B*H, W*C)
    # PyTorch DenseBlock: skip = x is set ONCE and reused for every block.
    skip = a

    for blk in range(num_blocks):       # static unroll (num_blocks is small)
        # --- three parallel 1x1 ConvBlocks reading `a`, fused into one matmul
        y3 = bdot(a, w_head_ref[blk]) + s_head_ref[blk]
        c1 = swish(y3[:, 0:WC], betas_ref[blk, 0])              # conv1x1
        t3 = swish(y3[:, WC:2 * WC], betas_ref[blk, 1])         # conv3x3[0]
        t5 = swish(y3[:, 2 * WC:3 * WC], betas_ref[blk, 3])     # conv5x5[0]

        # --- spatial ConvBlocks (3x3 / 5x5, "same" padding)
        c3 = spatial_conv(t3, t3_ref, blk, 3, shifts_ref[blk, 0],
                          betas_ref[blk, 2])
        c5 = spatial_conv(t5, t5_ref, blk, 5, shifts_ref[blk, 1],
                          betas_ref[blk, 4])

        # --- pool branch: MaxPool2d(3,1,1) + 1x1 ConvBlock (fused)
        pm = swish(bdot(maxpool3(a), w_pool_ref[blk]) + shifts_ref[blk, 2],
                   betas_ref[blk, 5])

        # --- outconv: channel concat folded into 4 accumulated dots
        ms = (bdot(c1, w_out_ref[blk, 0]) + bdot(c3, w_out_ref[blk, 1])
              + bdot(c5, w_out_ref[blk, 2]) + bdot(pm, w_out_ref[blk, 3])
              + shifts_ref[blk, 3])

        # --- dense step: cat([ms, skip]) + 1x1 conv == two accumulated dots
        a = (bdot(ms, w_dense_ref[blk, 0]) + bdot(skip, w_dense_ref[blk, 1])
             + shifts_ref[blk, 4])

    o_ref[...] = a.astype(o_ref.dtype)


# ------------------------- parameter packing (JAX) --------------------------

def _fold_bn(p):
    # Fold conv bias + BatchNorm2d (inference running stats) into scale/shift.
    # TODO(synk): training-mode batch statistics are not reproduced.
    scale = p['gamma'] * jax.lax.rsqrt(p['var'] + EPS)
    shift = (p['b'] - p['mean']) * scale + p['beta_bn']
    return scale, shift


def _pack_1x1(w, scale, W):
    # (Cin, Cout) 1x1 conv weight (BN scale folded into columns) expanded to the
    # block-diagonal (W*Cin, W*Cout) matrix acting on packed (H, W*C) rows.
    return jnp.kron(jnp.eye(W, dtype=jnp.float32), w * scale[None, :])


def _pack_toeplitz(w, scale, W):
    # (K, K, Cin, Cout) conv weight -> (K, W*Cin, W*Cout) banded block-Toeplitz
    # matrices T[ky]; "same" zero padding along W is encoded as zero bands.
    K, _, Cin, Cout = w.shape
    pad = (K - 1) // 2
    ws = w * scale[None, None, None, :]
    dx = jnp.arange(W)[:, None] - jnp.arange(W)[None, :] + pad       # (Win, Wout)
    valid = ((dx >= 0) & (dx < K)).astype(jnp.float32)
    blocks = ws[:, jnp.clip(dx, 0, K - 1)] * valid[None, :, :, None, None]
    # (K, Win, Wout, Cin, Cout) -> (K, Win*Cin, Wout*Cout)
    return blocks.transpose(0, 1, 3, 2, 4).reshape(K, W * Cin, W * Cout)


def _pack_block(blk, W, C):
    ms = blk['ms']
    WC = W * C
    ones = jnp.ones((C,), jnp.float32)
    bf16 = jnp.bfloat16

    def pack_convblock_1x1(p):
        scale, shift = _fold_bn(p)
        return (_pack_1x1(p['w'][0, 0], scale, W), jnp.tile(shift, W),
                jnp.full((WC,), p['swish_beta'], jnp.float32))

    p1, s1, b1 = pack_convblock_1x1(ms['conv1x1'])
    p3a, s3a, b3a = pack_convblock_1x1(ms['conv3x3_a'])
    p5a, s5a, b5a = pack_convblock_1x1(ms['conv5x5_a'])
    ppool, spool, bpool = pack_convblock_1x1(ms['pool'])

    sc3, sh3 = _fold_bn(ms['conv3x3_b'])
    t3 = _pack_toeplitz(ms['conv3x3_b']['w'], sc3, W)
    b3b = jnp.full((WC,), ms['conv3x3_b']['swish_beta'], jnp.float32)
    sc5, sh5 = _fold_bn(ms['conv5x5_b'])
    t5 = _pack_toeplitz(ms['conv5x5_b']['w'], sc5, W)
    b5b = jnp.full((WC,), ms['conv5x5_b']['swish_beta'], jnp.float32)

    wo = ms['outconv']['w']          # (4C, C): row chunks for [c1, c3, c5, pool]
    w_out = jnp.stack([_pack_1x1(wo[i * C:(i + 1) * C], ones, W)
                       for i in range(4)])
    wd = blk['conv']['w']            # (2C, C): row chunks for [ms_out, skip]
    w_dense = jnp.stack([_pack_1x1(wd[i * C:(i + 1) * C], ones, W)
                         for i in range(2)])

    return dict(
        # matmul weights are stored bf16 (MXU-native, half the DMA/VMEM)
        w_head=jnp.concatenate([p1, p3a, p5a], axis=1).astype(bf16),  # (WC,3WC)
        s_head=jnp.concatenate([s1, s3a, s5a])[None, :],              # (1,3WC) f32
        t3=t3.astype(bf16), t5=t5.astype(bf16),
        w_pool=ppool.astype(bf16),
        w_out=w_out.astype(bf16), w_dense=w_dense.astype(bf16),
        shifts=jnp.stack([jnp.tile(sh3, W), jnp.tile(sh5, W), spool,
                          jnp.tile(ms['outconv']['b'], W),
                          jnp.tile(blk['conv']['b'], W)])[:, None, :],  # (5,1,WC)
        betas=jnp.stack([b1, b3a, b3b, b5a, b5b, bpool])[:, None, :],   # (6,1,WC)
    )


def pack_dense_block(blocks, W, C):
    per_block = [_pack_block(b, W, C) for b in blocks]
    return jax.tree_util.tree_map(lambda *xs: jnp.stack(xs, axis=0), *per_block)


# ------------------------------- forward pass -------------------------------

@functools.partial(jax.jit, static_argnames=("batch_tile",))
def dense_block_forward(x_nchw, p, *, batch_tile=2):
    N, C, H, W = x_nchw.shape
    WC = W * C
    num_blocks = p['w_head'].shape[0]

    B = batch_tile if (batch_tile <= N and N % batch_tile == 0) else 1
    BH = B * H

    # NCHW -> lane-dense packed rows (N*H, W*C); W*C = 128 fills the vreg lanes.
    x2d = jnp.transpose(x_nchw, (0, 2, 3, 1)).reshape(N * H, WC)

    kernel = functools.partial(_dense_block_kernel, num_blocks=num_blocks,
                               BH=BH, H=H, W=W, C=C)

    def full(arr):
        # Grid-invariant weight block: whole array, single-buffered (no need to
        # double-buffer something that never changes across grid steps).
        nd = arr.ndim
        return pl.BlockSpec(arr.shape, lambda n: (0,) * nd,
                            pipeline_mode=pl.Buffered(1))

    out = pl.pallas_call(
        kernel,
        out_shape=jax.ShapeDtypeStruct((N * H, WC), jnp.float32),
        grid_spec=pltpu.PrefetchScalarGridSpec(
            num_scalar_prefetch=0,
            grid=(N // B,),
            in_specs=[pl.BlockSpec((BH, WC), lambda n: (n, 0)),
                      full(p['w_head']), full(p['s_head']),
                      full(p['t3']), full(p['t5']),
                      full(p['w_pool']), full(p['w_out']), full(p['w_dense']),
                      full(p['shifts']), full(p['betas'])],
            out_specs=pl.BlockSpec((BH, WC), lambda n: (n, 0))),
        compiler_params=pltpu.CompilerParams(
            dimension_semantics=("parallel",),
            vmem_limit_bytes=48 * 1024 * 1024),
    )(x2d, p['w_head'], p['s_head'], p['t3'], p['t5'],
      p['w_pool'], p['w_out'], p['w_dense'], p['shifts'], p['betas'])

    return jnp.transpose(out.reshape(N, H, W, C), (0, 3, 1, 2))  # -> NCHW


# --------------------------- parameters (synthetic) --------------------------

def init_conv_block(key, cin, cout, K):
    ks = jax.random.split(key, 6)
    return dict(
        w=0.1 * jax.random.normal(ks[0], (K, K, cin, cout), jnp.float32),
        b=0.1 * jax.random.normal(ks[1], (cout,), jnp.float32),
        gamma=1.0 + 0.1 * jax.random.normal(ks[2], (cout,), jnp.float32),
        beta_bn=0.1 * jax.random.normal(ks[3], (cout,), jnp.float32),
        mean=0.1 * jax.random.normal(ks[4], (cout,), jnp.float32),
        var=0.5 + jnp.abs(jax.random.normal(ks[5], (cout,), jnp.float32)),
        swish_beta=jnp.float32(1.0),
    )


def init_plain_conv(key, cin, cout):
    k1, k2 = jax.random.split(key)
    return dict(w=0.1 * jax.random.normal(k1, (cin, cout), jnp.float32),
                b=0.1 * jax.random.normal(k2, (cout,), jnp.float32))


def init_multiscale(key, f):
    ks = jax.random.split(key, 7)
    # TODO(synk): MultiScaleBlock.inconv is defined in __init__ but never used
    # in forward(); it is intentionally omitted.
    return dict(
        conv1x1=init_conv_block(ks[0], f, f, 1),
        conv3x3_a=init_conv_block(ks[1], f, f, 1),
        conv3x3_b=init_conv_block(ks[2], f, f, 3),
        conv5x5_a=init_conv_block(ks[3], f, f, 1),
        conv5x5_b=init_conv_block(ks[4], f, f, 5),
        pool=init_conv_block(ks[5], f, f, 1),
        outconv=init_plain_conv(ks[6], 4 * f, f),
    )


def init_dense_block(key, num_blocks, f):
    blocks = []
    for _ in range(num_blocks):
        k1, k2, key = jax.random.split(key, 3)
        blocks.append(dict(ms=init_multiscale(k1, f),
                           conv=init_plain_conv(k2, 2 * f, f)))
    return blocks


# ------------------- pure-JAX NCHW reference (correctness) -------------------

def _ref_conv_block(x, p, K):
    pad = (K - 1) // 2
    k = jnp.transpose(p['w'], (3, 2, 0, 1))                    # OIHW
    y = jax.lax.conv_general_dilated(
        x, k, (1, 1), [(pad, pad), (pad, pad)],
        dimension_numbers=('NCHW', 'OIHW', 'NCHW'),
        precision=jax.lax.Precision.HIGHEST)
    y = y + p['b'][None, :, None, None]
    scale = p['gamma'] * jax.lax.rsqrt(p['var'] + EPS)
    y = ((y - p['mean'][None, :, None, None]) * scale[None, :, None, None]
         + p['beta_bn'][None, :, None, None])
    return y * jax.nn.sigmoid(y * p['swish_beta'])


def _ref_conv1x1(x, p):
    k = jnp.transpose(p['w'], (1, 0))[:, :, None, None]        # (O, I, 1, 1)
    y = jax.lax.conv_general_dilated(
        x, k, (1, 1), [(0, 0), (0, 0)],
        dimension_numbers=('NCHW', 'OIHW', 'NCHW'),
        precision=jax.lax.Precision.HIGHEST)
    return y + p['b'][None, :, None, None]


def _ref_maxpool3(x):
    return jax.lax.reduce_window(
        x, jnp.array(-jnp.inf, x.dtype), jax.lax.max,
        (1, 1, 3, 3), (1, 1, 1, 1), [(0, 0), (0, 0), (1, 1), (1, 1)])


def dense_block_reference(x, blocks):
    skip = x
    for blk in blocks:
        ms = blk['ms']
        c1 = _ref_conv_block(x, ms['conv1x1'], 1)
        c3 = _ref_conv_block(_ref_conv_block(x, ms['conv3x3_a'], 1),
                             ms['conv3x3_b'], 3)
        c5 = _ref_conv_block(_ref_conv_block(x, ms['conv5x5_a'], 1),
                             ms['conv5x5_b'], 5)
        pm = _ref_conv_block(_ref_maxpool3(x), ms['pool'], 1)
        out = _ref_conv1x1(jnp.concatenate([c1, c3, c5, pm], axis=1),
                           ms['outconv'])
        x = _ref_conv1x1(jnp.concatenate([out, skip], axis=1), blk['conv'])
    return x


# ----------------------------------- main -----------------------------------

if __name__ == "__main__":
    NUM_BLOCKS, F = 2, 8
    N, H, W = 4, 16, 16          # W * F = 128 -> one full vreg lane row

    key = jax.random.PRNGKey(0)
    kx, kp = jax.random.split(key)
    x_nchw = jax.random.normal(kx, (N, F, H, W), jnp.float32)  # PyTorch NCHW input
    params = init_dense_block(kp, NUM_BLOCKS, F)

    packed = pack_dense_block(params, W, F)
    out_nchw = dense_block_forward(x_nchw, packed, batch_tile=2)
    jax.block_until_ready(out_nchw)

    assert out_nchw.shape == (N, F, H, W), out_nchw.shape
    assert bool(jnp.all(jnp.isfinite(out_nchw)))

    # Numerical check against a pure-JAX NCHW reference (f32); kernel uses bf16
    # matmul operands, so allow a comfortably loose tolerance.
    ref = dense_block_reference(x_nchw, params)
    err = float(jnp.max(jnp.abs(out_nchw - ref)))
    assert err < 0.1, f"max |kernel - reference| = {err}"

    print("KERNEL_OK")
</pallas_src>

<mosaic_0001>
module attributes {stable_mosaic.version = 11 : i64} {
  func.func @_dense_block_kernel(%arg0: i32, %arg1: memref<32x128xf32, #tpu.memory_space<vmem>>, %arg2: memref<2x128x384xbf16, #tpu.memory_space<vmem>>, %arg3: memref<2x1x384xf32, #tpu.memory_space<vmem>>, %arg4: memref<2x3x128x128xbf16, #tpu.memory_space<vmem>>, %arg5: memref<2x5x128x128xbf16, #tpu.memory_space<vmem>>, %arg6: memref<2x128x128xbf16, #tpu.memory_space<vmem>>, %arg7: memref<2x4x128x128xbf16, #tpu.memory_space<vmem>>, %arg8: memref<2x2x128x128xbf16, #tpu.memory_space<vmem>>, %arg9: memref<2x5x1x128xf32, #tpu.memory_space<vmem>>, %arg10: memref<2x6x1x128xf32, #tpu.memory_space<vmem>>, %arg11: memref<32x128xf32, #tpu.memory_space<vmem>>) attributes {dimension_semantics = [#tpu.dimension_semantics<parallel>], iteration_bounds = array<i64: 2>, scalar_prefetch = 0 : i64, scratch_operands = 0 : i64, tpu.core_type = #tpu.core_type<tc>, window_params = [{transform_indices = @transform_0, window_bounds = array<i64: 32, 128>}, {pipeline_mode = #tpu.pipeline_mode<synchronous>, transform_indices = @transform_1, window_bounds = array<i64: 2, 128, 384>}, {pipeline_mode = #tpu.pipeline_mode<synchronous>, transform_indices = @transform_2, window_bounds = array<i64: 2, 1, 384>}, {pipeline_mode = #tpu.pipeline_mode<synchronous>, transform_indices = @transform_3, window_bounds = array<i64: 2, 3, 128, 128>}, {pipeline_mode = #tpu.pipeline_mode<synchronous>, transform_indices = @transform_4, window_bounds = array<i64: 2, 5, 128, 128>}, {pipeline_mode = #tpu.pipeline_mode<synchronous>, transform_indices = @transform_5, window_bounds = array<i64: 2, 128, 128>}, {pipeline_mode = #tpu.pipeline_mode<synchronous>, transform_indices = @transform_6, window_bounds = array<i64: 2, 4, 128, 128>}, {pipeline_mode = #tpu.pipeline_mode<synchronous>, transform_indices = @transform_7, window_bounds = array<i64: 2, 2, 128, 128>}, {pipeline_mode = #tpu.pipeline_mode<synchronous>, transform_indices = @transform_8, window_bounds = array<i64: 2, 5, 1, 128>}, {pipeline_mode = #tpu.pipeline_mode<synchronous>, transform_indices = @transform_9, window_bounds = array<i64: 2, 6, 1, 128>}, {transform_indices = @transform_10, window_bounds = array<i64: 32, 128>}]} {
    %0 = tpu.iota {dimensions = array<i32: 0>} : vector<32x128xi32>
    %c16_i32 = arith.constant 16 : i32
    %c0_i32 = arith.constant 0 : i32
    %1 = arith.cmpi eq, %c16_i32, %c0_i32 : i32
    %c1_i32 = arith.constant 1 : i32
    %2 = arith.select %1, %c1_i32, %c16_i32 : i32
    %3 = vector.broadcast %2 : i32 to vector<32x128xi32>
    %4 = arith.remsi %0, %3 : vector<32x128xi32>
    %c0_i32_0 = arith.constant 0 : i32
    %5 = vector.broadcast %c0_i32_0 : i32 to vector<32x128xi32>
    %6 = arith.cmpi ne, %4, %5 : vector<32x128xi32>
    %c0_i32_1 = arith.constant 0 : i32
    %7 = vector.broadcast %c0_i32_1 : i32 to vector<32x128xi32>
    %8 = arith.cmpi slt, %4, %7 : vector<32x128xi32>
    %c0_i32_2 = arith.constant 0 : i32
    %9 = arith.cmpi slt, %2, %c0_i32_2 : i32
    %10 = vector.broadcast %9 : i1 to vector<32x128xi1>
    %11 = vector.broadcast %10 : vector<32x128xi1> to vector<32x128xi1>
    %12 = arith.xori %8, %11 : vector<32x128xi1>
    %13 = arith.andi %12, %6 : vector<32x128xi1>
    %14 = vector.broadcast %2 : i32 to vector<32x128xi32>
    %15 = arith.addi %4, %14 : vector<32x128xi32>
    %16 = arith.select %13, %15, %4 : vector<32x128xi1>, vector<32x128xi32>
    %17 = tpu.iota {dimensions = array<i32: 1>} : vector<32x128xi32>
    %c-2_i32 = arith.constant -2 : i32
    %18 = vector.broadcast %c-2_i32 : i32 to vector<32x128xi32>
    %19 = arith.addi %16, %18 : vector<32x128xi32>
    %c0_i32_3 = arith.constant 0 : i32
    %20 = vector.broadcast %c0_i32_3 : i32 to vector<32x128xi32>
    %21 = arith.cmpi sge, %19, %20 : vector<32x128xi32>
    %c-2_i32_4 = arith.constant -2 : i32
    %22 = vector.broadcast %c-2_i32_4 : i32 to vector<32x128xi32>
    %23 = arith.addi %16, %22 : vector<32x128xi32>
    %c16_i32_5 = arith.constant 16 : i32
    %24 = vector.broadcast %c16_i32_5 : i32 to vector<32x128xi32>
    %25 = arith.cmpi slt, %23, %24 : vector<32x128xi32>
    %26 = arith.andi %21, %25 : vector<32x128xi1>
    %c-1_i32 = arith.constant -1 : i32
    %27 = vector.broadcast %c-1_i32 : i32 to vector<32x128xi32>
    %28 = arith.addi %16, %27 : vector<32x128xi32>
    %c0_i32_6 = arith.constant 0 : i32
    %29 = vector.broadcast %c0_i32_6 : i32 to vector<32x128xi32>
    %30 = arith.cmpi sge, %28, %29 : vector<32x128xi32>
    %c-1_i32_7 = arith.constant -1 : i32
    %31 = vector.broadcast %c-1_i32_7 : i32 to vector<32x128xi32>
    %32 = arith.addi %16, %31 : vector<32x128xi32>
    %c16_i32_8 = arith.constant 16 : i32
    %33 = vector.broadcast %c16_i32_8 : i32 to vector<32x128xi32>
    %34 = arith.cmpi slt, %32, %33 : vector<32x128xi32>
    %35 = arith.andi %30, %34 : vector<32x128xi1>
    %c1_i32_9 = arith.constant 1 : i32
    %36 = vector.broadcast %c1_i32_9 : i32 to vector<32x128xi32>
    %37 = arith.addi %16, %36 : vector<32x128xi32>
    %c0_i32_10 = arith.constant 0 : i32
    %38 = vector.broadcast %c0_i32_10 : i32 to vector<32x128xi32>
    %39 = arith.cmpi sge, %37, %38 : vector<32x128xi32>
    %c1_i32_11 = arith.constant 1 : i32
    %40 = vector.broadcast %c1_i32_11 : i32 to vector<32x128xi32>
    %41 = arith.addi %16, %40 : vector<32x128xi32>
    %c16_i32_12 = arith.constant 16 : i32
    %42 = vector.broadcast %c16_i32_12 : i32 to vector<32x128xi32>
    %43 = arith.cmpi slt, %41, %42 : vector<32x128xi32>
    %44 = arith.andi %39, %43 : vector<32x128xi1>
    %c2_i32 = arith.constant 2 : i32
    %45 = vector.broadcast %c2_i32 : i32 to vector<32x128xi32>
    %46 = arith.addi %16, %45 : vector<32x128xi32>
    %c0_i32_13 = arith.constant 0 : i32
    %47 = vector.broadcast %c0_i32_13 : i32 to vector<32x128xi32>
    %48 = arith.cmpi sge, %46, %47 : vector<32x128xi32>
    %c2_i32_14 = arith.constant 2 : i32
    %49 = vector.broadcast %c2_i32_14 : i32 to vector<32x128xi32>
    %50 = arith.addi %16, %49 : vector<32x128xi32>
    %c16_i32_15 = arith.constant 16 : i32
    %51 = vector.broadcast %c16_i32_15 : i32 to vector<32x128xi32>
    %52 = arith.cmpi slt, %50, %51 : vector<32x128xi32>
    %53 = arith.andi %48, %52 : vector<32x128xi1>
    %c8_i32 = arith.constant 8 : i32
    %54 = vector.broadcast %c8_i32 : i32 to vector<32x128xi32>
    %55 = arith.cmpi slt, %17, %54 : vector<32x128xi32>
    %c120_i32 = arith.constant 120 : i32
    %56 = vector.broadcast %c120_i32 : i32 to vector<32x128xi32>
    %57 = arith.cmpi sge, %17, %56 : vector<32x128xi32>
    %c0 = arith.constant 0 : index
    %c0_16 = arith.constant 0 : index
    %58 = vector.load %arg1[%c0, %c0_16] : memref<32x128xf32, #tpu.memory_space<vmem>>, vector<32x128xf32>
    %c0_17 = arith.constant 0 : index
    %c0_18 = arith.constant 0 : index
    %c0_19 = arith.constant 0 : index
    %59 = vector.load %arg2[%c0_17, %c0_18, %c0_19] : memref<2x128x384xbf16, #tpu.memory_space<vmem>>, vector<1x128x384xbf16>
    %60 = vector.shape_cast %59 : vector<1x128x384xbf16> to vector<128x384xbf16>
    %61 = arith.truncf %58 : vector<32x128xf32> to vector<32x128xbf16>
    %cst = arith.constant dense<0.000000e+00> : vector<32x384xf32>
    %62 = tpu.matmul %61, %60, %cst {dimension_numbers = #tpu.dot_dimension_numbers<[1], [0], [0], [1], [0, 0, 1, 1], [], []>} : vector<32x128xbf16>, vector<128x384xbf16>, vector<32x384xf32> -> vector<32x384xf32>
    %c0_20 = arith.constant 0 : index
    %c0_21 = arith.constant 0 : index
    %c0_22 = arith.constant 0 : index
    %63 = vector.load %arg3[%c0_20, %c0_21, %c0_22] : memref<2x1x384xf32, #tpu.memory_space<vmem>>, vector<1x1x384xf32>
    %64 = vector.shape_cast %63 : vector<1x1x384xf32> to vector<1x384xf32>
    %65 = vector.broadcast %64 : vector<1x384xf32> to vector<32x384xf32>
    %66 = arith.addf %62, %65 : vector<32x384xf32>
    %67 = vector.extract_strided_slice %66 {offsets = [0, 0], sizes = [32, 128], strides = [1, 1]} : vector<32x384xf32> to vector<32x128xf32>
    %c0_23 = arith.constant 0 : index
    %c0_24 = arith.constant 0 : index
    %c0_25 = arith.constant 0 : index
    %c0_26 = arith.constant 0 : index
    %68 = vector.load %arg10[%c0_23, %c0_24, %c0_25, %c0_26] : memref<2x6x1x128xf32, #tpu.memory_space<vmem>>, vector<1x1x1x128xf32>
    %69 = vector.shape_cast %68 : vector<1x1x1x128xf32> to vector<1x128xf32>
    %70 = vector.broadcast %69 : vector<1x128xf32> to vector<32x128xf32>
    %71 = arith.mulf %67, %70 : vector<32x128xf32>
    %cst_27 = arith.constant 5.000000e-01 : f32
    %72 = vector.broadcast %cst_27 : f32 to vector<32x128xf32>
    %73 = arith.mulf %72, %71 : vector<32x128xf32>
    %74 = math.tanh %73 : vector<32x128xf32>
    %cst_28 = arith.constant 5.000000e-01 : f32
    %75 = vector.broadcast %cst_28 : f32 to vector<32x128xf32>
    %76 = arith.mulf %75, %74 : vector<32x128xf32>
    %cst_29 = arith.constant 5.000000e-01 : f32
    %77 = vector.broadcast %cst_29 : f32 to vector<32x128xf32>
    %78 = arith.addf %76, %77 : vector<32x128xf32>
    %79 = arith.mulf %67, %78 : vector<32x128xf32>
    %80 = vector.extract_strided_slice %66 {offsets = [0, 128], sizes = [32, 128], strides = [1, 1]} : vector<32x384xf32> to vector<32x128xf32>
    %c0_30 = arith.constant 0 : index
    %c1 = arith.constant 1 : index
    %c0_31 = arith.constant 0 : index
    %c0_32 = arith.constant 0 : index
    %81 = vector.load %arg10[%c0_30, %c1, %c0_31, %c0_32] : memref<2x6x1x128xf32, #tpu.memory_space<vmem>>, vector<1x1x1x128xf32>
    %82 = vector.shape_cast %81 : vector<1x1x1x128xf32> to vector<1x128xf32>
    %83 = vector.broadcast %82 : vector<1x128xf32> to vector<32x128xf32>
    %84 = arith.mulf %80, %83 : vector<32x128xf32>
    %cst_33 = arith.constant 5.000000e-01 : f32
    %85 = vector.broadcast %cst_33 : f32 to vector<32x128xf32>
    %86 = arith.mulf %85, %84 : vector<32x128xf32>
    %87 = math.tanh %86 : vector<32x128xf32>
    %cst_34 = arith.constant 5.000000e-01 : f32
    %88 = vector.broadcast %cst_34 : f32 to vector<32x128xf32>
    %89 = arith.mulf %88, %87 : vector<32x128xf32>
    %cst_35 = arith.constant 5.000000e-01 : f32
    %90 = vector.broadcast %cst_35 : f32 to vector<32x128xf32>
    %91 = arith.addf %89, %90 : vector<32x128xf32>
    %92 = arith.mulf %80, %91 : vector<32x128xf32>
    %93 = vector.extract_strided_slice %66 {offsets = [0, 256], sizes = [32, 128], strides = [1, 1]} : vector<32x384xf32> to vector<32x128xf32>
    %c0_36 = arith.constant 0 : index
    %c3 = arith.constant 3 : index
    %c0_37 = arith.constant 0 : index
    %c0_38 = arith.constant 0 : index
    %94 = vector.load %arg10[%c0_36, %c3, %c0_37, %c0_38] : memref<2x6x1x128xf32, #tpu.memory_space<vmem>>, vector<1x1x1x128xf32>
    %95 = vector.shape_cast %94 : vector<1x1x1x128xf32> to vector<1x128xf32>
    %96 = vector.broadcast %95 : vector<1x128xf32> to vector<32x128xf32>
    %97 = arith.mulf %93, %96 : vector<32x128xf32>
    %cst_39 = arith.constant 5.000000e-01 : f32
    %98 = vector.broadcast %cst_39 : f32 to vector<32x128xf32>
    %99 = arith.mulf %98, %97 : vector<32x128xf32>
    %100 = math.tanh %99 : vector<32x128xf32>
    %cst_40 = arith.constant 5.000000e-01 : f32
    %101 = vector.broadcast %cst_40 : f32 to vector<32x128xf32>
    %102 = arith.mulf %101, %100 : vector<32x128xf32>
    %cst_41 = arith.constant 5.000000e-01 : f32
    %103 = vector.broadcast %cst_41 : f32 to vector<32x128xf32>
    %104 = arith.addf %102, %103 : vector<32x128xf32>
    %105 = arith.mulf %93, %104 : vector<32x128xf32>
    %c0_42 = arith.constant 0 : index
    %c0_43 = arith.constant 0 : index
    %c0_44 = arith.constant 0 : index
    %c0_45 = arith.constant 0 : index
    %106 = vector.load %arg9[%c0_42, %c0_43, %c0_44, %c0_45] : memref<2x5x1x128xf32, #tpu.memory_space<vmem>>, vector<1x1x1x128xf32>
    %107 = vector.shape_cast %106 : vector<1x1x1x128xf32> to vector<1x128xf32>
    %c0_46 = arith.constant 0 : index
    %c2 = arith.constant 2 : index
    %c0_47 = arith.constant 0 : index
    %c0_48 = arith.constant 0 : index
    %108 = vector.load %arg10[%c0_46, %c2, %c0_47, %c0_48] : memref<2x6x1x128xf32, #tpu.memory_space<vmem>>, vector<1x1x1x128xf32>
    %109 = vector.shape_cast %108 : vector<1x1x1x128xf32> to vector<1x128xf32>
    %c0_49 = arith.constant 0 : index
    %c1_50 = arith.constant 1 : index
    %c0_51 = arith.constant 0 : index
    %c0_52 = arith.constant 0 : index
    %110 = vector.load %arg4[%c0_49, %c1_50, %c0_51, %c0_52] : memref<2x3x128x128xbf16, #tpu.memory_space<vmem>>, vector<1x1x128x128xbf16>
    %111 = vector.shape_cast %110 : vector<1x1x128x128xbf16> to vector<128x128xbf16>
    %112 = arith.truncf %92 : vector<32x128xf32> to vector<32x128xbf16>
    %cst_53 = arith.constant dense<0.000000e+00> : vector<32x128xf32>
    %113 = tpu.matmul %112, %111, %cst_53 {dimension_numbers = #tpu.dot_dimension_numbers<[1], [0], [0], [1], [0, 0, 1, 1], [], []>} : vector<32x128xbf16>, vector<128x128xbf16>, vector<32x128xf32> -> vector<32x128xf32>
    %c1_i32_54 = arith.constant 1 : i32
    %114 = tpu.dynamic_rotate %92 by %c1_i32_54 dim 0 : vector<32x128xf32>, i32 -> vector<32x128xf32>
    %cst_55 = arith.constant 0.000000e+00 : f32
    %115 = vector.broadcast %cst_55 : f32 to vector<32x128xf32>
    %116 = arith.select %35, %114, %115 : vector<32x128xi1>, vector<32x128xf32>
    %c0_56 = arith.constant 0 : index
    %c0_57 = arith.constant 0 : index
    %c0_58 = arith.constant 0 : index
    %c0_59 = arith.constant 0 : index
    %117 = vector.load %arg4[%c0_56, %c0_57, %c0_58, %c0_59] : memref<2x3x128x128xbf16, #tpu.memory_space<vmem>>, vector<1x1x128x128xbf16>
    %118 = vector.shape_cast %117 : vector<1x1x128x128xbf16> to vector<128x128xbf16>
    %119 = arith.truncf %116 : vector<32x128xf32> to vector<32x128xbf16>
    %cst_60 = arith.constant dense<0.000000e+00> : vector<32x128xf32>
    %120 = tpu.matmul %119, %118, %cst_60 {dimension_numbers = #tpu.dot_dimension_numbers<[1], [0], [0], [1], [0, 0, 1, 1], [], []>} : vector<32x128xbf16>, vector<128x128xbf16>, vector<32x128xf32> -> vector<32x128xf32>
    %121 = arith.addf %113, %120 : vector<32x128xf32>
    %c31_i32 = arith.constant 31 : i32
    %122 = tpu.dynamic_rotate %92 by %c31_i32 dim 0 : vector<32x128xf32>, i32 -> vector<32x128xf32>
    %cst_61 = arith.constant 0.000000e+00 : f32
    %123 = vector.broadcast %cst_61 : f32 to vector<32x128xf32>
    %124 = arith.select %44, %122, %123 : vector<32x128xi1>, vector<32x128xf32>
    %c0_62 = arith.constant 0 : index
    %c2_63 = arith.constant 2 : index
    %c0_64 = arith.constant 0 : index
    %c0_65 = arith.constant 0 : index
    %125 = vector.load %arg4[%c0_62, %c2_63, %c0_64, %c0_65] : memref<2x3x128x128xbf16, #tpu.memory_space<vmem>>, vector<1x1x128x128xbf16>
    %126 = vector.shape_cast %125 : vector<1x1x128x128xbf16> to vector<128x128xbf16>
    %127 = arith.truncf %124 : vector<32x128xf32> to vector<32x128xbf16>
    %cst_66 = arith.constant dense<0.000000e+00> : vector<32x128xf32>
    %128 = tpu.matmul %127, %126, %cst_66 {dimension_numbers = #tpu.dot_dimension_numbers<[1], [0], [0], [1], [0, 0, 1, 1], [], []>} : vector<32x128xbf16>, vector<128x128xbf16>, vector<32x128xf32> -> vector<32x128xf32>
    %129 = arith.addf %121, %128 : vector<32x128xf32>
    %130 = vector.broadcast %107 : vector<1x128xf32> to vector<32x128xf32>
    %131 = arith.addf %129, %130 : vector<32x128xf32>
    %132 = vector.broadcast %109 : vector<1x128xf32> to vector<32x128xf32>
    %133 = arith.mulf %131, %132 : vector<32x128xf32>
    %cst_67 = arith.constant 5.000000e-01 : f32
    %134 = vector.broadcast %cst_67 : f32 to vector<32x128xf32>
    %135 = arith.mulf %134, %133 : vector<32x128xf32>
    %136 = math.tanh %135 : vector<32x128xf32>
    %cst_68 = arith.constant 5.000000e-01 : f32
    %137 = vector.broadcast %cst_68 : f32 to vector<32x128xf32>
    %138 = arith.mulf %137, %136 : vector<32x128xf32>
    %cst_69 = arith.constant 5.000000e-01 : f32
    %139 = vector.broadcast %cst_69 : f32 to vector<32x128xf32>
    %140 = arith.addf %138, %139 : vector<32x128xf32>
    %141 = arith.mulf %131, %140 : vector<32x128xf32>
    %c0_70 = arith.constant 0 : index
    %c1_71 = arith.constant 1 : index
    %c0_72 = arith.constant 0 : index
    %c0_73 = arith.constant 0 : index
    %142 = vector.load %arg9[%c0_70, %c1_71, %c0_72, %c0_73] : memref<2x5x1x128xf32, #tpu.memory_space<vmem>>, vector<1x1x1x128xf32>
    %143 = vector.shape_cast %142 : vector<1x1x1x128xf32> to vector<1x128xf32>
    %c0_74 = arith.constant 0 : index
    %c4 = arith.constant 4 : index
    %c0_75 = arith.constant 0 : index
    %c0_76 = arith.constant 0 : index
    %144 = vector.load %arg10[%c0_74, %c4, %c0_75, %c0_76] : memref<2x6x1x128xf32, #tpu.memory_space<vmem>>, vector<1x1x1x128xf32>
    %145 = vector.shape_cast %144 : vector<1x1x1x128xf32> to vector<1x128xf32>
    %c0_77 = arith.constant 0 : index
    %c2_78 = arith.constant 2 : index
    %c0_79 = arith.constant 0 : index
    %c0_80 = arith.constant 0 : index
    %146 = vector.load %arg5[%c0_77, %c2_78, %c0_79, %c0_80] : memref<2x5x128x128xbf16, #tpu.memory_space<vmem>>, vector<1x1x128x128xbf16>
    %147 = vector.shape_cast %146 : vector<1x1x128x128xbf16> to vector<128x128xbf16>
    %148 = arith.truncf %105 : vector<32x128xf32> to vector<32x128xbf16>
    %cst_81 = arith.constant dense<0.000000e+00> : vector<32x128xf32>
    %149 = tpu.matmul %148, %147, %cst_81 {dimension_numbers = #tpu.dot_dimension_numbers<[1], [0], [0], [1], [0, 0, 1, 1], [], []>} : vector<32x128xbf16>, vector<128x128xbf16>, vector<32x128xf32> -> vector<32x128xf32>
    %c2_i32_82 = arith.constant 2 : i32
    %150 = tpu.dynamic_rotate %105 by %c2_i32_82 dim 0 : vector<32x128xf32>, i32 -> vector<32x128xf32>
    %cst_83 = arith.constant 0.000000e+00 : f32
    %151 = vector.broadcast %cst_83 : f32 to vector<32x128xf32>
    %152 = arith.select %26, %150, %151 : vector<32x128xi1>, vector<32x128xf32>
    %c0_84 = arith.constant 0 : index
    %c0_85 = arith.constant 0 : index
    %c0_86 = arith.constant 0 : index
    %c0_87 = arith.constant 0 : index
    %153 = vector.load %arg5[%c0_84, %c0_85, %c0_86, %c0_87] : memref<2x5x128x128xbf16, #tpu.memory_space<vmem>>, vector<1x1x128x128xbf16>
    %154 = vector.shape_cast %153 : vector<1x1x128x128xbf16> to vector<128x128xbf16>
    %155 = arith.truncf %152 : vector<32x128xf32> to vector<32x128xbf16>
    %cst_88 = arith.constant dense<0.000000e+00> : vector<32x128xf32>
    %156 = tpu.matmul %155, %154, %cst_88 {dimension_numbers = #tpu.dot_dimension_numbers<[1], [0], [0], [1], [0, 0, 1, 1], [], []>} : vector<32x128xbf16>, vector<128x128xbf16>, vector<32x128xf32> -> vector<32x128xf32>
    %157 = arith.addf %149, %156 : vector<32x128xf32>
    %c1_i32_89 = arith.constant 1 : i32
    %158 = tpu.dynamic_rotate %105 by %c1_i32_89 dim 0 : vector<32x128xf32>, i32 -> vector<32x128xf32>
    %cst_90 = arith.constant 0.000000e+00 : f32
    %159 = vector.broadcast %cst_90 : f32 to vector<32x128xf32>
    %160 = arith.select %35, %158, %159 : vector<32x128xi1>, vector<32x128xf32>
    %c0_91 = arith.constant 0 : index
    %c1_92 = arith.constant 1 : index
    %c0_93 = arith.constant 0 : index
    %c0_94 = arith.constant 0 : index
    %161 = vector.load %arg5[%c0_91, %c1_92, %c0_93, %c0_94] : memref<2x5x128x128xbf16, #tpu.memory_space<vmem>>, vector<1x1x128x128xbf16>
    %162 = vector.shape_cast %161 : vector<1x1x128x128xbf16> to vector<128x128xbf16>
    %163 = arith.truncf %160 : vector<32x128xf32> to vector<32x128xbf16>
    %cst_95 = arith.constant dense<0.000000e+00> : vector<32x128xf32>
    %164 = tpu.matmul %163, %162, %cst_95 {dimension_numbers = #tpu.dot_dimension_numbers<[1], [0], [0], [1], [0, 0, 1, 1], [], []>} : vector<32x128xbf16>, vector<128x128xbf16>, vector<32x128xf32> -> vector<32x128xf32>
    %165 = arith.addf %157, %164 : vector<32x128xf32>
    %c31_i32_96 = arith.constant 31 : i32
    %166 = tpu.dynamic_rotate %105 by %c31_i32_96 dim 0 : vector<32x128xf32>, i32 -> vector<32x128xf32>
    %cst_97 = arith.constant 0.000000e+00 : f32
    %167 = vector.broadcast %cst_97 : f32 to vector<32x128xf32>
    %168 = arith.select %44, %166, %167 : vector<32x128xi1>, vector<32x128xf32>
    %c0_98 = arith.constant 0 : index
    %c3_99 = arith.constant 3 : index
    %c0_100 = arith.constant 0 : index
    %c0_101 = arith.constant 0 : index
    %169 = vector.load %arg5[%c0_98, %c3_99, %c0_100, %c0_101] : memref<2x5x128x128xbf16, #tpu.memory_space<vmem>>, vector<1x1x128x128xbf16>
    %170 = vector.shape_cast %169 : vector<1x1x128x128xbf16> to vector<128x128xbf16>
    %171 = arith.truncf %168 : vector<32x128xf32> to vector<32x128xbf16>
    %cst_102 = arith.constant dense<0.000000e+00> : vector<32x128xf32>
    %172 = tpu.matmul %171, %170, %cst_102 {dimension_numbers = #tpu.dot_dimension_numbers<[1], [0], [0], [1], [0, 0, 1, 1], [], []>} : vector<32x128xbf16>, vector<128x128xbf16>, vector<32x128xf32> -> vector<32x128xf32>
    %173 = arith.addf %165, %172 : vector<32x128xf32>
    %c30_i32 = arith.constant 30 : i32
    %174 = tpu.dynamic_rotate %105 by %c30_i32 dim 0 : vector<32x128xf32>, i32 -> vector<32x128xf32>
    %cst_103 = arith.constant 0.000000e+00 : f32
    %175 = vector.broadcast %cst_103 : f32 to vector<32x128xf32>
    %176 = arith.select %53, %174, %175 : vector<32x128xi1>, vector<32x128xf32>
    %c0_104 = arith.constant 0 : index
    %c4_105 = arith.constant 4 : index
    %c0_106 = arith.constant 0 : index
    %c0_107 = arith.constant 0 : index
    %177 = vector.load %arg5[%c0_104, %c4_105, %c0_106, %c0_107] : memref<2x5x128x128xbf16, #tpu.memory_space<vmem>>, vector<1x1x128x128xbf16>
    %178 = vector.shape_cast %177 : vector<1x1x128x128xbf16> to vector<128x128xbf16>
    %179 = arith.truncf %176 : vector<32x128xf32> to vector<32x128xbf16>
    %cst_108 = arith.constant dense<0.000000e+00> : vector<32x128xf32>
    %180 = tpu.matmul %179, %178, %cst_108 {dimension_numbers = #tpu.dot_dimension_numbers<[1], [0], [0], [1], [0, 0, 1, 1], [], []>} : vector<32x128xbf16>, vector<128x128xbf16>, vector<32x128xf32> -> vector<32x128xf32>
    %181 = arith.addf %173, %180 : vector<32x128xf32>
    %182 = vector.broadcast %143 : vector<1x128xf32> to vector<32x128xf32>
    %183 = arith.addf %181, %182 : vector<32x128xf32>
    %184 = vector.broadcast %145 : vector<1x128xf32> to vector<32x128xf32>
    %185 = arith.mulf %183, %184 : vector<32x128xf32>
    %cst_109 = arith.constant 5.000000e-01 : f32
    %186 = vector.broadcast %cst_109 : f32 to vector<32x128xf32>
    %187 = arith.mulf %186, %185 : vector<32x128xf32>
    %188 = math.tanh %187 : vector<32x128xf32>
    %cst_110 = arith.constant 5.000000e-01 : f32
    %189 = vector.broadcast %cst_110 : f32 to vector<32x128xf32>
    %190 = arith.mulf %189, %188 : vector<32x128xf32>
    %cst_111 = arith.constant 5.000000e-01 : f32
    %191 = vector.broadcast %cst_111 : f32 to vector<32x128xf32>
    %192 = arith.addf %190, %191 : vector<32x128xf32>
    %193 = arith.mulf %183, %192 : vector<32x128xf32>
    %c8_i32_112 = arith.constant 8 : i32
    %194 = tpu.dynamic_rotate %58 by %c8_i32_112 dim 1 : vector<32x128xf32>, i32 -> vector<32x128xf32>
    %cst_113 = arith.constant 0xFF800000 : f32
    %195 = vector.broadcast %cst_113 : f32 to vector<32x128xf32>
    %196 = arith.select %55, %195, %194 : vector<32x128xi1>, vector<32x128xf32>
    %c120_i32_114 = arith.constant 120 : i32
    %197 = tpu.dynamic_rotate %58 by %c120_i32_114 dim 1 : vector<32x128xf32>, i32 -> vector<32x128xf32>
    %cst_115 = arith.constant 0xFF800000 : f32
    %198 = vector.broadcast %cst_115 : f32 to vector<32x128xf32>
    %199 = arith.select %57, %198, %197 : vector<32x128xi1>, vector<32x128xf32>
    %200 = arith.maximumf %196, %199 : vector<32x128xf32>
    %201 = arith.maximumf %58, %200 : vector<32x128xf32>
    %c1_i32_116 = arith.constant 1 : i32
    %202 = tpu.dynamic_rotate %201 by %c1_i32_116 dim 0 : vector<32x128xf32>, i32 -> vector<32x128xf32>
    %cst_117 = arith.constant 0xFF800000 : f32
    %203 = vector.broadcast %cst_117 : f32 to vector<32x128xf32>
    %204 = arith.select %35, %202, %203 : vector<32x128xi1>, vector<32x128xf32>
    %c31_i32_118 = arith.constant 31 : i32
    %205 = tpu.dynamic_rotate %201 by %c31_i32_118 dim 0 : vector<32x128xf32>, i32 -> vector<32x128xf32>
    %cst_119 = arith.constant 0xFF800000 : f32
    %206 = vector.broadcast %cst_119 : f32 to vector<32x128xf32>
    %207 = arith.select %44, %205, %206 : vector<32x128xi1>, vector<32x128xf32>
    %208 = arith.maximumf %204, %207 : vector<32x128xf32>
    %209 = arith.maximumf %201, %208 : vector<32x128xf32>
    %c0_120 = arith.constant 0 : index
    %c0_121 = arith.constant 0 : index
    %c0_122 = arith.constant 0 : index
    %210 = vector.load %arg6[%c0_120, %c0_121, %c0_122] : memref<2x128x128xbf16, #tpu.memory_space<vmem>>, vector<1x128x128xbf16>
    %211 = vector.shape_cast %210 : vector<1x128x128xbf16> to vector<128x128xbf16>
    %212 = arith.truncf %209 : vector<32x128xf32> to vector<32x128xbf16>
    %cst_123 = arith.constant dense<0.000000e+00> : vector<32x128xf32>
    %213 = tpu.matmul %212, %211, %cst_123 {dimension_numbers = #tpu.dot_dimension_numbers<[1], [0], [0], [1], [0, 0, 1, 1], [], []>} : vector<32x128xbf16>, vector<128x128xbf16>, vector<32x128xf32> -> vector<32x128xf32>
    %c0_124 = arith.constant 0 : index
    %c2_125 = arith.constant 2 : index
    %c0_126 = arith.constant 0 : index
    %c0_127 = arith.constant 0 : index
    %214 = vector.load %arg9[%c0_124, %c2_125, %c0_126, %c0_127] : memref<2x5x1x128xf32, #tpu.memory_space<vmem>>, vector<1x1x1x128xf32>
    %215 = vector.shape_cast %214 : vector<1x1x1x128xf32> to vector<1x128xf32>
    %216 = vector.broadcast %215 : vector<1x128xf32> to vector<32x128xf32>
    %217 = arith.addf %213, %216 : vector<32x128xf32>
    %c0_128 = arith.constant 0 : index
    %c5 = arith.constant 5 : index
    %c0_129 = arith.constant 0 : index
    %c0_130 = arith.constant 0 : index
    %218 = vector.load %arg10[%c0_128, %c5, %c0_129, %c0_130] : memref<2x6x1x128xf32, #tpu.memory_space<vmem>>, vector<1x1x1x128xf32>
    %219 = vector.shape_cast %218 : vector<1x1x1x128xf32> to vector<1x128xf32>
    %220 = vector.broadcast %219 : vector<1x128xf32> to vector<32x128xf32>
    %221 = arith.mulf %217, %220 : vector<32x128xf32>
    %cst_131 = arith.constant 5.000000e-01 : f32
    %222 = vector.broadcast %cst_131 : f32 to vector<32x128xf32>
    %223 = arith.mulf %222, %221 : vector<32x128xf32>
    %224 = math.tanh %223 : vector<32x128xf32>
    %cst_132 = arith.constant 5.000000e-01 : f32
    %225 = vector.broadcast %cst_132 : f32 to vector<32x128xf32>
    %226 = arith.mulf %225, %224 : vector<32x128xf32>
    %cst_133 = arith.constant 5.000000e-01 : f32
    %227 = vector.broadcast %cst_133 : f32 to vector<32x128xf32>
    %228 = arith.addf %226, %227 : vector<32x128xf32>
    %229 = arith.mulf %217, %228 : vector<32x128xf32>
    %c0_134 = arith.constant 0 : index
    %c0_135 = arith.constant 0 : index
    %c0_136 = arith.constant 0 : index
    %c0_137 = arith.constant 0 : index
    %230 = vector.load %arg7[%c0_134, %c0_135, %c0_136, %c0_137] : memref<2x4x128x128xbf16, #tpu.memory_space<vmem>>, vector<1x1x128x128xbf16>
    %231 = vector.shape_cast %230 : vector<1x1x128x128xbf16> to vector<128x128xbf16>
    %232 = arith.truncf %79 : vector<32x128xf32> to vector<32x128xbf16>
    %cst_138 = arith.constant dense<0.000000e+00> : vector<32x128xf32>
    %233 = tpu.matmul %232, %231, %cst_138 {dimension_numbers = #tpu.dot_dimension_numbers<[1], [0], [0], [1], [0, 0, 1, 1], [], []>} : vector<32x128xbf16>, vector<128x128xbf16>, vector<32x128xf32> -> vector<32x128xf32>
    %c0_139 = arith.constant 0 : index
    %c1_140 = arith.constant 1 : index
    %c0_141 = arith.constant 0 : index
    %c0_142 = arith.constant 0 : index
    %234 = vector.load %arg7[%c0_139, %c1_140, %c0_141, %c0_142] : memref<2x4x128x128xbf16, #tpu.memory_space<vmem>>, vector<1x1x128x128xbf16>
    %235 = vector.shape_cast %234 : vector<1x1x128x128xbf16> to vector<128x128xbf16>
    %236 = arith.truncf %141 : vector<32x128xf32> to vector<32x128xbf16>
    %cst_143 = arith.constant dense<0.000000e+00> : vector<32x128xf32>
    %237 = tpu.matmul %236, %235, %cst_143 {dimension_numbers = #tpu.dot_dimension_numbers<[1], [0], [0], [1], [0, 0, 1, 1], [], []>} : vector<32x128xbf16>, vector<128x128xbf16>, vector<32x128xf32> -> vector<32x128xf32>
    %238 = arith.addf %233, %237 : vector<32x128xf32>
    %c0_144 = arith.constant 0 : index
    %c2_145 = arith.constant 2 : index
    %c0_146 = arith.constant 0 : index
    %c0_147 = arith.constant 0 : index
    %239 = vector.load %arg7[%c0_144, %c2_145, %c0_146, %c0_147] : memref<2x4x128x128xbf16, #tpu.memory_space<vmem>>, vector<1x1x128x128xbf16>
    %240 = vector.shape_cast %239 : vector<1x1x128x128xbf16> to vector<128x128xbf16>
    %241 = arith.truncf %193 : vector<32x128xf32> to vector<32x128xbf16>
    %cst_148 = arith.constant dense<0.000000e+00> : vector<32x128xf32>
    %242 = tpu.matmul %241, %240, %cst_148 {dimension_numbers = #tpu.dot_dimension_numbers<[1], [0], [0], [1], [0, 0, 1, 1], [], []>} : vector<32x128xbf16>, vector<128x128xbf16>, vector<32x128xf32> -> vector<32x128xf32>
    %243 = arith.addf %238, %242 : vector<32x128xf32>
    %c0_149 = arith.constant 0 : index
    %c3_150 = arith.constant 3 : index
    %c0_151 = arith.constant 0 : index
    %c0_152 = arith.constant 0 : index
    %244 = vector.load %arg7[%c0_149, %c3_150, %c0_151, %c0_152] : memref<2x4x128x128xbf16, #tpu.memory_space<vmem>>, vector<1x1x128x128xbf16>
    %245 = vector.shape_cast %244 : vector<1x1x128x128xbf16> to vector<128x128xbf16>
    %246 = arith.truncf %229 : vector<32x128xf32> to vector<32x128xbf16>
    %cst_153 = arith.constant dense<0.000000e+00> : vector<32x128xf32>
    %247 = tpu.matmul %246, %245, %cst_153 {dimension_numbers = #tpu.dot_dimension_numbers<[1], [0], [0], [1], [0, 0, 1, 1], [], []>} : vector<32x128xbf16>, vector<128x128xbf16>, vector<32x128xf32> -> vector<32x128xf32>
    %248 = arith.addf %243, %247 : vector<32x128xf32>
    %c0_154 = arith.constant 0 : index
    %c3_155 = arith.constant 3 : index
    %c0_156 = arith.constant 0 : index
    %c0_157 = arith.constant 0 : index
    %249 = vector.load %arg9[%c0_154, %c3_155, %c0_156, %c0_157] : memref<2x5x1x128xf32, #tpu.memory_space<vmem>>, vector<1x1x1x128xf32>
    %250 = vector.shape_cast %249 : vector<1x1x1x128xf32> to vector<1x128xf32>
    %251 = vector.broadcast %250 : vector<1x128xf32> to vector<32x128xf32>
    %252 = arith.addf %248, %251 : vector<32x128xf32>
    %c0_158 = arith.constant 0 : index
    %c0_159 = arith.constant 0 : index
    %c0_160 = arith.constant 0 : index
    %c0_161 = arith.constant 0 : index
    %253 = vector.load %arg8[%c0_158, %c0_159, %c0_160, %c0_161] : memref<2x2x128x128xbf16, #tpu.memory_space<vmem>>, vector<1x1x128x128xbf16>
    %254 = vector.shape_cast %253 : vector<1x1x128x128xbf16> to vector<128x128xbf16>
    %255 = arith.truncf %252 : vector<32x128xf32> to vector<32x128xbf16>
    %cst_162 = arith.constant dense<0.000000e+00> : vector<32x128xf32>
    %256 = tpu.matmul %255, %254, %cst_162 {dimension_numbers = #tpu.dot_dimension_numbers<[1], [0], [0], [1], [0, 0, 1, 1], [], []>} : vector<32x128xbf16>, vector<128x128xbf16>, vector<32x128xf32> -> vector<32x128xf32>
    %c0_163 = arith.constant 0 : index
    %c1_164 = arith.constant 1 : index
    %c0_165 = arith.constant 0 : index
    %c0_166 = arith.constant 0 : index
    %257 = vector.load %arg8[%c0_163, %c1_164, %c0_165, %c0_166] : memref<2x2x128x128xbf16, #tpu.memory_space<vmem>>, vector<1x1x128x128xbf16>
    %258 = vector.shape_cast %257 : vector<1x1x128x128xbf16> to vector<128x128xbf16>
    %259 = arith.truncf %58 : vector<32x128xf32> to vector<32x128xbf16>
    %cst_167 = arith.constant dense<0.000000e+00> : vector<32x128xf32>
    %260 = tpu.matmul %259, %258, %cst_167 {dimension_numbers = #tpu.dot_dimension_numbers<[1], [0], [0], [1], [0, 0, 1, 1], [], []>} : vector<32x128xbf16>, vector<128x128xbf16>, vector<32x128xf32> -> vector<32x128xf32>
    %261 = arith.addf %256, %260 : vector<32x128xf32>
    %c0_168 = arith.constant 0 : index
    %c4_169 = arith.constant 4 : index
    %c0_170 = arith.constant 0 : index
    %c0_171 = arith.constant 0 : index
    %262 = vector.load %arg9[%c0_168, %c4_169, %c0_170, %c0_171] : memref<2x5x1x128xf32, #tpu.memory_space<vmem>>, vector<1x1x1x128xf32>
    %263 = vector.shape_cast %262 : vector<1x1x1x128xf32> to vector<1x128xf32>
    %264 = vector.broadcast %263 : vector<1x128xf32> to vector<32x128xf32>
    %265 = arith.addf %261, %264 : vector<32x128xf32>
    %c1_172 = arith.constant 1 : index
    %c0_173 = arith.constant 0 : index
    %c0_174 = arith.constant 0 : index
    %266 = vector.load %arg2[%c1_172, %c0_173, %c0_174] : memref<2x128x384xbf16, #tpu.memory_space<vmem>>, vector<1x128x384xbf16>
    %267 = vector.shape_cast %266 : vector<1x128x384xbf16> to vector<128x384xbf16>
    %268 = arith.truncf %265 : vector<32x128xf32> to vector<32x128xbf16>
    %cst_175 = arith.constant dense<0.000000e+00> : vector<32x384xf32>
    %269 = tpu.matmul %268, %267, %cst_175 {dimension_numbers = #tpu.dot_dimension_numbers<[1], [0], [0], [1], [0, 0, 1, 1], [], []>} : vector<32x128xbf16>, vector<128x384xbf16>, vector<32x384xf32> -> vector<32x384xf32>
    %c1_176 = arith.constant 1 : index
    %c0_177 = arith.constant 0 : index
    %c0_178 = arith.constant 0 : index
    %270 = vector.load %arg3[%c1_176, %c0_177, %c0_178] : memref<2x1x384xf32, #tpu.memory_space<vmem>>, vector<1x1x384xf32>
    %271 = vector.shape_cast %270 : vector<1x1x384xf32> to vector<1x384xf32>
    %272 = vector.broadcast %271 : vector<1x384xf32> to vector<32x384xf32>
    %273 = arith.addf %269, %272 : vector<32x384xf32>
    %274 = vector.extract_strided_slice %273 {offsets = [0, 0], sizes = [32, 128], strides = [1, 1]} : vector<32x384xf32> to vector<32x128xf32>
    %c1_179 = arith.constant 1 : index
    %c0_180 = arith.constant 0 : index
    %c0_181 = arith.constant 0 : index
    %c0_182 = arith.constant 0 : index
    %275 = vector.load %arg10[%c1_179, %c0_180, %c0_181, %c0_182] : memref<2x6x1x128xf32, #tpu.memory_space<vmem>>, vector<1x1x1x128xf32>
    %276 = vector.shape_cast %275 : vector<1x1x1x128xf32> to vector<1x128xf32>
    %277 = vector.broadcast %276 : vector<1x128xf32> to vector<32x128xf32>
    %278 = arith.mulf %274, %277 : vector<32x128xf32>
    %cst_183 = arith.constant 5.000000e-01 : f32
    %279 = vector.broadcast %cst_183 : f32 to vector<32x128xf32>
    %280 = arith.mulf %279, %278 : vector<32x128xf32>
    %281 = math.tanh %280 : vector<32x128xf32>
    %cst_184 = arith.constant 5.000000e-01 : f32
    %282 = vector.broadcast %cst_184 : f32 to vector<32x128xf32>
    %283 = arith.mulf %282, %281 : vector<32x128xf32>
    %cst_185 = arith.constant 5.000000e-01 : f32
    %284 = vector.broadcast %cst_185 : f32 to vector<32x128xf32>
    %285 = arith.addf %283, %284 : vector<32x128xf32>
    %286 = arith.mulf %274, %285 : vector<32x128xf32>
    %287 = vector.extract_strided_slice %273 {offsets = [0, 128], sizes = [32, 128], strides = [1, 1]} : vector<32x384xf32> to vector<32x128xf32>
    %c1_186 = arith.constant 1 : index
    %c1_187 = arith.constant 1 : index
    %c0_188 = arith.constant 0 : index
    %c0_189 = arith.constant 0 : index
    %288 = vector.load %arg10[%c1_186, %c1_187, %c0_188, %c0_189] : memref<2x6x1x128xf32, #tpu.memory_space<vmem>>, vector<1x1x1x128xf32>
    %289 = vector.shape_cast %288 : vector<1x1x1x128xf32> to vector<1x128xf32>
    %290 = vector.broadcast %289 : vector<1x128xf32> to vector<32x128xf32>
    %291 = arith.mulf %287, %290 : vector<32x128xf32>
    %cst_190 = arith.constant 5.000000e-01 : f32
    %292 = vector.broadcast %cst_190 : f32 to vector<32x128xf32>
    %293 = arith.mulf %292, %291 : vector<32x128xf32>
    %294 = math.tanh %293 : vector<32x128xf32>
    %cst_191 = arith.constant 5.000000e-01 : f32
    %295 = vector.broadcast %cst_191 : f32 to vector<32x128xf32>
    %296 = arith.mulf %295, %294 : vector<32x128xf32>
    %cst_192 = arith.constant 5.000000e-01 : f32
    %297 = vector.broadcast %cst_192 : f32 to vector<32x128xf32>
    %298 = arith.addf %296, %297 : vector<32x128xf32>
    %299 = arith.mulf %287, %298 : vector<32x128xf32>
    %300 = vector.extract_strided_slice %273 {offsets = [0, 256], sizes = [32, 128], strides = [1, 1]} : vector<32x384xf32> to vector<32x128xf32>
    %c1_193 = arith.constant 1 : index
    %c3_194 = arith.constant 3 : index
    %c0_195 = arith.constant 0 : index
    %c0_196 = arith.constant 0 : index
    %301 = vector.load %arg10[%c1_193, %c3_194, %c0_195, %c0_196] : memref<2x6x1x128xf32, #tpu.memory_space<vmem>>, vector<1x1x1x128xf32>
    %302 = vector.shape_cast %301 : vector<1x1x1x128xf32> to vector<1x128xf32>
    %303 = vector.broadcast %302 : vector<1x128xf32> to vector<32x128xf32>
    %304 = arith.mulf %300, %303 : vector<32x128xf32>
    %cst_197 = arith.constant 5.000000e-01 : f32
    %305 = vector.broadcast %cst_197 : f32 to vector<32x128xf32>
    %306 = arith.mulf %305, %304 : vector<32x128xf32>
    %307 = math.tanh %306 : vector<32x128xf32>
    %cst_198 = arith.constant 5.000000e-01 : f32
    %308 = vector.broadcast %cst_198 : f32 to vector<32x128xf32>
    %309 = arith.mulf %308, %307 : vector<32x128xf32>
    %cst_199 = arith.constant 5.000000e-01 : f32
    %310 = vector.broadcast %cst_199 : f32 to vector<32x128xf32>
    %311 = arith.addf %309, %310 : vector<32x128xf32>
    %312 = arith.mulf %300, %311 : vector<32x128xf32>
    %c1_200 = arith.constant 1 : index
    %c0_201 = arith.constant 0 : index
    %c0_202 = arith.constant 0 : index
    %c0_203 = arith.constant 0 : index
    %313 = vector.load %arg9[%c1_200, %c0_201, %c0_202, %c0_203] : memref<2x5x1x128xf32, #tpu.memory_space<vmem>>, vector<1x1x1x128xf32>
    %314 = vector.shape_cast %313 : vector<1x1x1x128xf32> to vector<1x128xf32>
    %c1_204 = arith.constant 1 : index
    %c2_205 = arith.constant 2 : index
    %c0_206 = arith.constant 0 : index
    %c0_207 = arith.constant 0 : index
    %315 = vector.load %arg10[%c1_204, %c2_205, %c0_206, %c0_207] : memref<2x6x1x128xf32, #tpu.memory_space<vmem>>, vector<1x1x1x128xf32>
    %316 = vector.shape_cast %315 : vector<1x1x1x128xf32> to vector<1x128xf32>
    %c1_208 = arith.constant 1 : index
    %c1_209 = arith.constant 1 : index
    %c0_210 = arith.constant 0 : index
    %c0_211 = arith.constant 0 : index
    %317 = vector.load %arg4[%c1_208, %c1_209, %c0_210, %c0_211] : memref<2x3x128x128xbf16, #tpu.memory_space<vmem>>, vector<1x1x128x128xbf16>
    %318 = vector.shape_cast %317 : vector<1x1x128x128xbf16> to vector<128x128xbf16>
    %319 = arith.truncf %299 : vector<32x128xf32> to vector<32x128xbf16>
    %cst_212 = arith.constant dense<0.000000e+00> : vector<32x128xf32>
    %320 = tpu.matmul %319, %318, %cst_212 {dimension_numbers = #tpu.dot_dimension_numbers<[1], [0], [0], [1], [0, 0, 1, 1], [], []>} : vector<32x128xbf16>, vector<128x128xbf16>, vector<32x128xf32> -> vector<32x128xf32>
    %c1_i32_213 = arith.constant 1 : i32
    %321 = tpu.dynamic_rotate %299 by %c1_i32_213 dim 0 : vector<32x128xf32>, i32 -> vector<32x128xf32>
    %cst_214 = arith.constant 0.000000e+00 : f32
    %322 = vector.broadcast %cst_214 : f32 to vector<32x128xf32>
    %323 = arith.select %35, %321, %322 : vector<32x128xi1>, vector<32x128xf32>
    %c1_215 = arith.constant 1 : index
    %c0_216 = arith.constant 0 : index
    %c0_217 = arith.constant 0 : index
    %c0_218 = arith.constant 0 : index
    %324 = vector.load %arg4[%c1_215, %c0_216, %c0_217, %c0_218] : memref<2x3x128x128xbf16, #tpu.memory_space<vmem>>, vector<1x1x128x128xbf16>
    %325 = vector.shape_cast %324 : vector<1x1x128x128xbf16> to vector<128x128xbf16>
    %326 = arith.truncf %323 : vector<32x128xf32> to vector<32x128xbf16>
    %cst_219 = arith.constant dense<0.000000e+00> : vector<32x128xf32>
    %327 = tpu.matmul %326, %325, %cst_219 {dimension_numbers = #tpu.dot_dimension_numbers<[1], [0], [0], [1], [0, 0, 1, 1], [], []>} : vector<32x128xbf16>, vector<128x128xbf16>, vector<32x128xf32> -> vector<32x128xf32>
    %328 = arith.addf %320, %327 : vector<32x128xf32>
    %c31_i32_220 = arith.constant 31 : i32
    %329 = tpu.dynamic_rotate %299 by %c31_i32_220 dim 0 : vector<32x128xf32>, i32 -> vector<32x128xf32>
    %cst_221 = arith.constant 0.000000e+00 : f32
    %330 = vector.broadcast %cst_221 : f32 to vector<32x128xf32>
    %331 = arith.select %44, %329, %330 : vector<32x128xi1>, vector<32x128xf32>
    %c1_222 = arith.constant 1 : index
    %c2_223 = arith.constant 2 : index
    %c0_224 = arith.constant 0 : index
    %c0_225 = arith.constant 0 : index
    %332 = vector.load %arg4[%c1_222, %c2_223, %c0_224, %c0_225] : memref<2x3x128x128xbf16, #tpu.memory_space<vmem>>, vector<1x1x128x128xbf16>
    %333 = vector.shape_cast %332 : vector<1x1x128x128xbf16> to vector<128x128xbf16>
    %334 = arith.truncf %331 : vector<32x128xf32> to vector<32x128xbf16>
    %cst_226 = arith.constant dense<0.000000e+00> : vector<32x128xf32>
    %335 = tpu.matmul %334, %333, %cst_226 {dimension_numbers = #tpu.dot_dimension_numbers<[1], [0], [0], [1], [0, 0, 1, 1], [], []>} : vector<32x128xbf16>, vector<128x128xbf16>, vector<32x128xf32> -> vector<32x128xf32>
    %336 = arith.addf %328, %335 : vector<32x128xf32>
    %337 = vector.broadcast %314 : vector<1x128xf32> to vector<32x128xf32>
    %338 = arith.addf %336, %337 : vector<32x128xf32>
    %339 = vector.broadcast %316 : vector<1x128xf32> to vector<32x128xf32>
    %340 = arith.mulf %338, %339 : vector<32x128xf32>
    %cst_227 = arith.constant 5.000000e-01 : f32
    %341 = vector.broadcast %cst_227 : f32 to vector<32x128xf32>
    %342 = arith.mulf %341, %340 : vector<32x128xf32>
    %343 = math.tanh %342 : vector<32x128xf32>
    %cst_228 = arith.constant 5.000000e-01 : f32
    %344 = vector.broadcast %cst_228 : f32 to vector<32x128xf32>
    %345 = arith.mulf %344, %343 : vector<32x128xf32>
    %cst_229 = arith.constant 5.000000e-01 : f32
    %346 = vector.broadcast %cst_229 : f32 to vector<32x128xf32>
    %347 = arith.addf %345, %346 : vector<32x128xf32>
    %348 = arith.mulf %338, %347 : vector<32x128xf32>
    %c1_230 = arith.constant 1 : index
    %c1_231 = arith.constant 1 : index
    %c0_232 = arith.constant 0 : index
    %c0_233 = arith.constant 0 : index
    %349 = vector.load %arg9[%c1_230, %c1_231, %c0_232, %c0_233] : memref<2x5x1x128xf32, #tpu.memory_space<vmem>>, vector<1x1x1x128xf32>
    %350 = vector.shape_cast %349 : vector<1x1x1x128xf32> to vector<1x128xf32>
    %c1_234 = arith.constant 1 : index
    %c4_235 = arith.constant 4 : index
    %c0_236 = arith.constant 0 : index
    %c0_237 = arith.constant 0 : index
    %351 = vector.load %arg10[%c1_234, %c4_235, %c0_236, %c0_237] : memref<2x6x1x128xf32, #tpu.memory_space<vmem>>, vector<1x1x1x128xf32>
    %352 = vector.shape_cast %351 : vector<1x1x1x128xf32> to vector<1x128xf32>
    %c1_238 = arith.constant 1 : index
    %c2_239 = arith.constant 2 : index
    %c0_240 = arith.constant 0 : index
    %c0_241 = arith.constant 0 : index
    %353 = vector.load %arg5[%c1_238, %c2_239, %c0_240, %c0_241] : memref<2x5x128x128xbf16, #tpu.memory_space<vmem>>, vector<1x1x128x128xbf16>
    %354 = vector.shape_cast %353 : vector<1x1x128x128xbf16> to vector<128x128xbf16>
    %355 = arith.truncf %312 : vector<32x128xf32> to vector<32x128xbf16>
    %cst_242 = arith.constant dense<0.000000e+00> : vector<32x128xf32>
    %356 = tpu.matmul %355, %354, %cst_242 {dimension_numbers = #tpu.dot_dimension_numbers<[1], [0], [0], [1], [0, 0, 1, 1], [], []>} : vector<32x128xbf16>, vector<128x128xbf16>, vector<32x128xf32> -> vector<32x128xf32>
    %c2_i32_243 = arith.constant 2 : i32
    %357 = tpu.dynamic_rotate %312 by %c2_i32_243 dim 0 : vector<32x128xf32>, i32 -> vector<32x128xf32>
    %cst_244 = arith.constant 0.000000e+00 : f32
    %358 = vector.broadcast %cst_244 : f32 to vector<32x128xf32>
    %359 = arith.select %26, %357, %358 : vector<32x128xi1>, vector<32x128xf32>
    %c1_245 = arith.constant 1 : index
    %c0_246 = arith.constant 0 : index
    %c0_247 = arith.constant 0 : index
    %c0_248 = arith.constant 0 : index
    %360 = vector.load %arg5[%c1_245, %c0_246, %c0_247, %c0_248] : memref<2x5x128x128xbf16, #tpu.memory_space<vmem>>, vector<1x1x128x128xbf16>
    %361 = vector.shape_cast %360 : vector<1x1x128x128xbf16> to vector<128x128xbf16>
    %362 = arith.truncf %359 : vector<32x128xf32> to vector<32x128xbf16>
    %cst_249 = arith.constant dense<0.000000e+00> : vector<32x128xf32>
    %363 = tpu.matmul %362, %361, %cst_249 {dimension_numbers = #tpu.dot_dimension_numbers<[1], [0], [0], [1], [0, 0, 1, 1], [], []>} : vector<32x128xbf16>, vector<128x128xbf16>, vector<32x128xf32> -> vector<32x128xf32>
    %364 = arith.addf %356, %363 : vector<32x128xf32>
    %c1_i32_250 = arith.constant 1 : i32
    %365 = tpu.dynamic_rotate %312 by %c1_i32_250 dim 0 : vector<32x128xf32>, i32 -> vector<32x128xf32>
    %cst_251 = arith.constant 0.000000e+00 : f32
    %366 = vector.broadcast %cst_251 : f32 to vector<32x128xf32>
    %367 = arith.select %35, %365, %366 : vector<32x128xi1>, vector<32x128xf32>
    %c1_252 = arith.constant 1 : index
    %c1_253 = arith.constant 1 : index
    %c0_254 = arith.constant 0 : index
    %c0_255 = arith.constant 0 : index
    %368 = vector.load %arg5[%c1_252, %c1_253, %c0_254, %c0_255] : memref<2x5x128x128xbf16, #tpu.memory_space<vmem>>, vector<1x1x128x128xbf16>
    %369 = vector.shape_cast %368 : vector<1x1x128x128xbf16> to vector<128x128xbf16>
    %370 = arith.truncf %367 : vector<32x128xf32> to vector<32x128xbf16>
    %cst_256 = arith.constant dense<0.000000e+00> : vector<32x128xf32>
    %371 = tpu.matmul %370, %369, %cst_256 {dimension_numbers = #tpu.dot_dimension_numbers<[1], [0], [0], [1], [0, 0, 1, 1], [], []>} : vector<32x128xbf16>, vector<128x128xbf16>, vector<32x128xf32> -> vector<32x128xf32>
    %372 = arith.addf %364, %371 : vector<32x128xf32>
    %c31_i32_257 = arith.constant 31 : i32
    %373 = tpu.dynamic_rotate %312 by %c31_i32_257 dim 0 : vector<32x128xf32>, i32 -> vector<32x128xf32>
    %cst_258 = arith.constant 0.000000e+00 : f32
    %374 = vector.broadcast %cst_258 : f32 to vector<32x128xf32>
    %375 = arith.select %44, %373, %374 : vector<32x128xi1>, vector<32x128xf32>
    %c1_259 = arith.constant 1 : index
    %c3_260 = arith.constant 3 : index
    %c0_261 = arith.constant 0 : index
    %c0_262 = arith.constant 0 : index
    %376 = vector.load %arg5[%c1_259, %c3_260, %c0_261, %c0_262] : memref<2x5x128x128xbf16, #tpu.memory_space<vmem>>, vector<1x1x128x128xbf16>
    %377 = vector.shape_cast %376 : vector<1x1x128x128xbf16> to vector<128x128xbf16>
    %378 = arith.truncf %375 : vector<32x128xf32> to vector<32x128xbf16>
    %cst_263 = arith.constant dense<0.000000e+00> : vector<32x128xf32>
    %379 = tpu.matmul %378, %377, %cst_263 {dimension_numbers = #tpu.dot_dimension_numbers<[1], [0], [0], [1], [0, 0, 1, 1], [], []>} : vector<32x128xbf16>, vector<128x128xbf16>, vector<32x128xf32> -> vector<32x128xf32>
    %380 = arith.addf %372, %379 : vector<32x128xf32>
    %c30_i32_264 = arith.constant 30 : i32
    %381 = tpu.dynamic_rotate %312 by %c30_i32_264 dim 0 : vector<32x128xf32>, i32 -> vector<32x128xf32>
    %cst_265 = arith.constant 0.000000e+00 : f32
    %382 = vector.broadcast %cst_265 : f32 to vector<32x128xf32>
    %383 = arith.select %53, %381, %382 : vector<32x128xi1>, vector<32x128xf32>
    %c1_266 = arith.constant 1 : index
    %c4_267 = arith.constant 4 : index
    %c0_268 = arith.constant 0 : index
    %c0_269 = arith.constant 0 : index
    %384 = vector.load %arg5[%c1_266, %c4_267, %c0_268, %c0_269] : memref<2x5x128x128xbf16, #tpu.memory_space<vmem>>, vector<1x1x128x128xbf16>
    %385 = vector.shape_cast %384 : vector<1x1x128x128xbf16> to vector<128x128xbf16>
    %386 = arith.truncf %383 : vector<32x128xf32> to vector<32x128xbf16>
    %cst_270 = arith.constant dense<0.000000e+00> : vector<32x128xf32>
    %387 = tpu.matmul %386, %385, %cst_270 {dimension_numbers = #tpu.dot_dimension_numbers<[1], [0], [0], [1], [0, 0, 1, 1], [], []>} : vector<32x128xbf16>, vector<128x128xbf16>, vector<32x128xf32> -> vector<32x128xf32>
    %388 = arith.addf %380, %387 : vector<32x128xf32>
    %389 = vector.broadcast %350 : vector<1x128xf32> to vector<32x128xf32>
    %390 = arith.addf %388, %389 : vector<32x128xf32>
    %391 = vector.broadcast %352 : vector<1x128xf32> to vector<32x128xf32>
    %392 = arith.mulf %390, %391 : vector<32x128xf32>
    %cst_271 = arith.constant 5.000000e-01 : f32
    %393 = vector.broadcast %cst_271 : f32 to vector<32x128xf32>
    %394 = arith.mulf %393, %392 : vector<32x128xf32>
    %395 = math.tanh %394 : vector<32x128xf32>
    %cst_272 = arith.constant 5.000000e-01 : f32
    %396 = vector.broadcast %cst_272 : f32 to vector<32x128xf32>
    %397 = arith.mulf %396, %395 : vector<32x128xf32>
    %cst_273 = arith.constant 5.000000e-01 : f32
    %398 = vector.broadcast %cst_273 : f32 to vector<32x128xf32>
    %399 = arith.addf %397, %398 : vector<32x128xf32>
    %400 = arith.mulf %390, %399 : vector<32x128xf32>
    %c8_i32_274 = arith.constant 8 : i32
    %401 = tpu.dynamic_rotate %265 by %c8_i32_274 dim 1 : vector<32x128xf32>, i32 -> vector<32x128xf32>
    %cst_275 = arith.constant 0xFF800000 : f32
    %402 = vector.broadcast %cst_275 : f32 to vector<32x128xf32>
    %403 = arith.select %55, %402, %401 : vector<32x128xi1>, vector<32x128xf32>
    %c120_i32_276 = arith.constant 120 : i32
    %404 = tpu.dynamic_rotate %265 by %c120_i32_276 dim 1 : vector<32x128xf32>, i32 -> vector<32x128xf32>
    %cst_277 = arith.constant 0xFF800000 : f32
    %405 = vector.broadcast %cst_277 : f32 to vector<32x128xf32>
    %406 = arith.select %57, %405, %404 : vector<32x128xi1>, vector<32x128xf32>
    %407 = arith.maximumf %403, %406 : vector<32x128xf32>
    %408 = arith.maximumf %265, %407 : vector<32x128xf32>
    %c1_i32_278 = arith.constant 1 : i32
    %409 = tpu.dynamic_rotate %408 by %c1_i32_278 dim 0 : vector<32x128xf32>, i32 -> vector<32x128xf32>
    %cst_279 = arith.constant 0xFF800000 : f32
    %410 = vector.broadcast %cst_279 : f32 to vector<32x128xf32>
    %411 = arith.select %35, %409, %410 : vector<32x128xi1>, vector<32x128xf32>
    %c31_i32_280 = arith.constant 31 : i32
    %412 = tpu.dynamic_rotate %408 by %c31_i32_280 dim 0 : vector<32x128xf32>, i32 -> vector<32x128xf32>
    %cst_281 = arith.constant 0xFF800000 : f32
    %413 = vector.broadcast %cst_281 : f32 to vector<32x128xf32>
    %414 = arith.select %44, %412, %413 : vector<32x128xi1>, vector<32x128xf32>
    %415 = arith.maximumf %411, %414 : vector<32x128xf32>
    %416 = arith.maximumf %408, %415 : vector<32x128xf32>
    %c1_282 = arith.constant 1 : index
    %c0_283 = arith.constant 0 : index
    %c0_284 = arith.constant 0 : index
    %417 = vector.load %arg6[%c1_282, %c0_283, %c0_284] : memref<2x128x128xbf16, #tpu.memory_space<vmem>>, vector<1x128x128xbf16>
    %418 = vector.shape_cast %417 : vector<1x128x128xbf16> to vector<128x128xbf16>
    %419 = arith.truncf %416 : vector<32x128xf32> to vector<32x128xbf16>
    %cst_285 = arith.constant dense<0.000000e+00> : vector<32x128xf32>
    %420 = tpu.matmul %419, %418, %cst_285 {dimension_numbers = #tpu.dot_dimension_numbers<[1], [0], [0], [1], [0, 0, 1, 1], [], []>} : vector<32x128xbf16>, vector<128x128xbf16>, vector<32x128xf32> -> vector<32x128xf32>
    %c1_286 = arith.constant 1 : index
    %c2_287 = arith.constant 2 : index
    %c0_288 = arith.constant 0 : index
    %c0_289 = arith.constant 0 : index
    %421 = vector.load %arg9[%c1_286, %c2_287, %c0_288, %c0_289] : memref<2x5x1x128xf32, #tpu.memory_space<vmem>>, vector<1x1x1x128xf32>
    %422 = vector.shape_cast %421 : vector<1x1x1x128xf32> to vector<1x128xf32>
    %423 = vector.broadcast %422 : vector<1x128xf32> to vector<32x128xf32>
    %424 = arith.addf %420, %423 : vector<32x128xf32>
    %c1_290 = arith.constant 1 : index
    %c5_291 = arith.constant 5 : index
    %c0_292 = arith.constant 0 : index
    %c0_293 = arith.constant 0 : index
    %425 = vector.load %arg10[%c1_290, %c5_291, %c0_292, %c0_293] : memref<2x6x1x128xf32, #tpu.memory_space<vmem>>, vector<1x1x1x128xf32>
    %426 = vector.shape_cast %425 : vector<1x1x1x128xf32> to vector<1x128xf32>
    %427 = vector.broadcast %426 : vector<1x128xf32> to vector<32x128xf32>
    %428 = arith.mulf %424, %427 : vector<32x128xf32>
    %cst_294 = arith.constant 5.000000e-01 : f32
    %429 = vector.broadcast %cst_294 : f32 to vector<32x128xf32>
    %430 = arith.mulf %429, %428 : vector<32x128xf32>
    %431 = math.tanh %430 : vector<32x128xf32>
    %cst_295 = arith.constant 5.000000e-01 : f32
    %432 = vector.broadcast %cst_295 : f32 to vector<32x128xf32>
    %433 = arith.mulf %432, %431 : vector<32x128xf32>
    %cst_296 = arith.constant 5.000000e-01 : f32
    %434 = vector.broadcast %cst_296 : f32 to vector<32x128xf32>
    %435 = arith.addf %433, %434 : vector<32x128xf32>
    %436 = arith.mulf %424, %435 : vector<32x128xf32>
    %c1_297 = arith.constant 1 : index
    %c0_298 = arith.constant 0 : index
    %c0_299 = arith.constant 0 : index
    %c0_300 = arith.constant 0 : index
    %437 = vector.load %arg7[%c1_297, %c0_298, %c0_299, %c0_300] : memref<2x4x128x128xbf16, #tpu.memory_space<vmem>>, vector<1x1x128x128xbf16>
    %438 = vector.shape_cast %437 : vector<1x1x128x128xbf16> to vector<128x128xbf16>
    %439 = arith.truncf %286 : vector<32x128xf32> to vector<32x128xbf16>
    %cst_301 = arith.constant dense<0.000000e+00> : vector<32x128xf32>
    %440 = tpu.matmul %439, %438, %cst_301 {dimension_numbers = #tpu.dot_dimension_numbers<[1], [0], [0], [1], [0, 0, 1, 1], [], []>} : vector<32x128xbf16>, vector<128x128xbf16>, vector<32x128xf32> -> vector<32x128xf32>
    %c1_302 = arith.constant 1 : index
    %c1_303 = arith.constant 1 : index
    %c0_304 = arith.constant 0 : index
    %c0_305 = arith.constant 0 : index
    %441 = vector.load %arg7[%c1_302, %c1_303, %c0_304, %c0_305] : memref<2x4x128x128xbf16, #tpu.memory_space<vmem>>, vector<1x1x128x128xbf16>
    %442 = vector.shape_cast %441 : vector<1x1x128x128xbf16> to vector<128x128xbf16>
    %443 = arith.truncf %348 : vector<32x128xf32> to vector<32x128xbf16>
    %cst_306 = arith.constant dense<0.000000e+00> : vector<32x128xf32>
    %444 = tpu.matmul %443, %442, %cst_306 {dimension_numbers = #tpu.dot_dimension_numbers<[1], [0], [0], [1], [0, 0, 1, 1], [], []>} : vector<32x128xbf16>, vector<128x128xbf16>, vector<32x128xf32> -> vector<32x128xf32>
    %445 = arith.addf %440, %444 : vector<32x128xf32>
    %c1_307 = arith.constant 1 : index
    %c2_308 = arith.constant 2 : index
    %c0_309 = arith.constant 0 : index
    %c0_310 = arith.constant 0 : index
    %446 = vector.load %arg7[%c1_307, %c2_308, %c0_309, %c0_310] : memref<2x4x128x128xbf16, #tpu.memory_space<vmem>>, vector<1x1x128x128xbf16>
    %447 = vector.shape_cast %446 : vector<1x1x128x128xbf16> to vector<128x128xbf16>
    %448 = arith.truncf %400 : vector<32x128xf32> to vector<32x128xbf16>
    %cst_311 = arith.constant dense<0.000000e+00> : vector<32x128xf32>
    %449 = tpu.matmul %448, %447, %cst_311 {dimension_numbers = #tpu.dot_dimension_numbers<[1], [0], [0], [1], [0, 0, 1, 1], [], []>} : vector<32x128xbf16>, vector<128x128xbf16>, vector<32x128xf32> -> vector<32x128xf32>
    %450 = arith.addf %445, %449 : vector<32x128xf32>
    %c1_312 = arith.constant 1 : index
    %c3_313 = arith.constant 3 : index
    %c0_314 = arith.constant 0 : index
    %c0_315 = arith.constant 0 : index
    %451 = vector.load %arg7[%c1_312, %c3_313, %c0_314, %c0_315] : memref<2x4x128x128xbf16, #tpu.memory_space<vmem>>, vector<1x1x128x128xbf16>
    %452 = vector.shape_cast %451 : vector<1x1x128x128xbf16> to vector<128x128xbf16>
    %453 = arith.truncf %436 : vector<32x128xf32> to vector<32x128xbf16>
    %cst_316 = arith.constant dense<0.000000e+00> : vector<32x128xf32>
    %454 = tpu.matmul %453, %452, %cst_316 {dimension_numbers = #tpu.dot_dimension_numbers<[1], [0], [0], [1], [0, 0, 1, 1], [], []>} : vector<32x128xbf16>, vector<128x128xbf16>, vector<32x128xf32> -> vector<32x128xf32>
    %455 = arith.addf %450, %454 : vector<32x128xf32>
    %c1_317 = arith.constant 1 : index
    %c3_318 = arith.constant 3 : index
    %c0_319 = arith.constant 0 : index
    %c0_320 = arith.constant 0 : index
    %456 = vector.load %arg9[%c1_317, %c3_318, %c0_319, %c0_320] : memref<2x5x1x128xf32, #tpu.memory_space<vmem>>, vector<1x1x1x128xf32>
    %457 = vector.shape_cast %456 : vector<1x1x1x128xf32> to vector<1x128xf32>
    %458 = vector.broadcast %457 : vector<1x128xf32> to vector<32x128xf32>
    %459 = arith.addf %455, %458 : vector<32x128xf32>
    %c1_321 = arith.constant 1 : index
    %c0_322 = arith.constant 0 : index
    %c0_323 = arith.constant 0 : index
    %c0_324 = arith.constant 0 : index
    %460 = vector.load %arg8[%c1_321, %c0_322, %c0_323, %c0_324] : memref<2x2x128x128xbf16, #tpu.memory_space<vmem>>, vector<1x1x128x128xbf16>
    %461 = vector.shape_cast %460 : vector<1x1x128x128xbf16> to vector<128x128xbf16>
    %462 = arith.truncf %459 : vector<32x128xf32> to vector<32x128xbf16>
    %cst_325 = arith.constant dense<0.000000e+00> : vector<32x128xf32>
    %463 = tpu.matmul %462, %461, %cst_325 {dimension_numbers = #tpu.dot_dimension_numbers<[1], [0], [0], [1], [0, 0, 1, 1], [], []>} : vector<32x128xbf16>, vector<128x128xbf16>, vector<32x128xf32> -> vector<32x128xf32>
    %c1_326 = arith.constant 1 : index
    %c1_327 = arith.constant 1 : index
    %c0_328 = arith.constant 0 : index
    %c0_329 = arith.constant 0 : index
    %464 = vector.load %arg8[%c1_326, %c1_327, %c0_328, %c0_329] : memref<2x2x128x128xbf16, #tpu.memory_space<vmem>>, vector<1x1x128x128xbf16>
    %465 = vector.shape_cast %464 : vector<1x1x128x128xbf16> to vector<128x128xbf16>
    %466 = arith.truncf %58 : vector<32x128xf32> to vector<32x128xbf16>
    %cst_330 = arith.constant dense<0.000000e+00> : vector<32x128xf32>
    %467 = tpu.matmul %466, %465, %cst_330 {dimension_numbers = #tpu.dot_dimension_numbers<[1], [0], [0], [1], [0, 0, 1, 1], [], []>} : vector<32x128xbf16>, vector<128x128xbf16>, vector<32x128xf32> -> vector<32x128xf32>
    %468 = arith.addf %463, %467 : vector<32x128xf32>
    %c1_331 = arith.constant 1 : index
    %c4_332 = arith.constant 4 : index
    %c0_333 = arith.constant 0 : index
    %c0_334 = arith.constant 0 : index
    %469 = vector.load %arg9[%c1_331, %c4_332, %c0_333, %c0_334] : memref<2x5x1x128xf32, #tpu.memory_space<vmem>>, vector<1x1x1x128xf32>
    %470 = vector.shape_cast %469 : vector<1x1x1x128xf32> to vector<1x128xf32>
    %471 = vector.broadcast %470 : vector<1x128xf32> to vector<32x128xf32>
    %472 = arith.addf %468, %471 : vector<32x128xf32>
    %c0_335 = arith.constant 0 : index
    %c0_336 = arith.constant 0 : index
    %473 = vector.load %arg11[%c0_335, %c0_336] : memref<32x128xf32, #tpu.memory_space<vmem>>, vector<32x128xf32>
    tpu.vector_store %arg11[%c0_335, %c0_336], %472 {strides = array<i32>} : memref<32x128xf32, #tpu.memory_space<vmem>>, vector<32x128xf32>,
    return
  }
  func.func @transform_0(%arg0: i32) -> (i32, i32) {
    %c0_i32 = arith.constant 0 : i32
    %c0_i32_0 = arith.constant 0 : i32
    return %arg0, %c0_i32 : i32, i32
  }
  func.func @transform_1(%arg0: i32) -> (i32, i32, i32) {
    %c0_i32 = arith.constant 0 : i32
    %c0_i32_0 = arith.constant 0 : i32
    %c0_i32_1 = arith.constant 0 : i32
    %c0_i32_2 = arith.constant 0 : i32
    return %c0_i32, %c0_i32_0, %c0_i32_1 : i32, i32, i32
  }
  func.func @transform_2(%arg0: i32) -> (i32, i32, i32) {
    %c0_i32 = arith.constant 0 : i32
    %c0_i32_0 = arith.constant 0 : i32
    %c0_i32_1 = arith.constant 0 : i32
    %c0_i32_2 = arith.constant 0 : i32
    return %c0_i32, %c0_i32_0, %c0_i32_1 : i32, i32, i32
  }
  func.func @transform_3(%arg0: i32) -> (i32, i32, i32, i32) {
    %c0_i32 = arith.constant 0 : i32
    %c0_i32_0 = arith.constant 0 : i32
    %c0_i32_1 = arith.constant 0 : i32
    %c0_i32_2 = arith.constant 0 : i32
    %c0_i32_3 = arith.constant 0 : i32
    return %c0_i32, %c0_i32_0, %c0_i32_1, %c0_i32_2 : i32, i32, i32, i32
  }
  func.func @transform_4(%arg0: i32) -> (i32, i32, i32, i32) {
    %c0_i32 = arith.constant 0 : i32
    %c0_i32_0 = arith.constant 0 : i32
    %c0_i32_1 = arith.constant 0 : i32
    %c0_i32_2 = arith.constant 0 : i32
    %c0_i32_3 = arith.constant 0 : i32
    return %c0_i32, %c0_i32_0, %c0_i32_1, %c0_i32_2 : i32, i32, i32, i32
  }
  func.func @transform_5(%arg0: i32) -> (i32, i32, i32) {
    %c0_i32 = arith.constant 0 : i32
    %c0_i32_0 = arith.constant 0 : i32
    %c0_i32_1 = arith.constant 0 : i32
    %c0_i32_2 = arith.constant 0 : i32
    return %c0_i32, %c0_i32_0, %c0_i32_1 : i32, i32, i32
  }
  func.func @transform_6(%arg0: i32) -> (i32, i32, i32, i32) {
    %c0_i32 = arith.constant 0 : i32
    %c0_i32_0 = arith.constant 0 : i32
    %c0_i32_1 = arith.constant 0 : i32
    %c0_i32_2 = arith.constant 0 : i32
    %c0_i32_3 = arith.constant 0 : i32
    return %c0_i32, %c0_i32_0, %c0_i32_1, %c0_i32_2 : i32, i32, i32, i32
  }
  func.func @transform_7(%arg0: i32) -> (i32, i32, i32, i32) {
    %c0_i32 = arith.constant 0 : i32
    %c0_i32_0 = arith.constant 0 : i32
    %c0_i32_1 = arith.constant 0 : i32
    %c0_i32_2 = arith.constant 0 : i32
    %c0_i32_3 = arith.constant 0 : i32
    return %c0_i32, %c0_i32_0, %c0_i32_1, %c0_i32_2 : i32, i32, i32, i32
  }
  func.func @transform_8(%arg0: i32) -> (i32, i32, i32, i32) {
    %c0_i32 = arith.constant 0 : i32
    %c0_i32_0 = arith.constant 0 : i32
    %c0_i32_1 = arith.constant 0 : i32
    %c0_i32_2 = arith.constant 0 : i32
    %c0_i32_3 = arith.constant 0 : i32
    return %c0_i32, %c0_i32_0, %c0_i32_1, %c0_i32_2 : i32, i32, i32, i32
  }
  func.func @transform_9(%arg0: i32) -> (i32, i32, i32, i32) {
    %c0_i32 = arith.constant 0 : i32
    %c0_i32_0 = arith.constant 0 : i32
    %c0_i32_1 = arith.constant 0 : i32
    %c0_i32_2 = arith.constant 0 : i32
    %c0_i32_3 = arith.constant 0 : i32
    return %c0_i32, %c0_i32_0, %c0_i32_1, %c0_i32_2 : i32, i32, i32, i32
  }
  func.func @transform_10(%arg0: i32) -> (i32, i32) {
    %c0_i32 = arith.constant 0 : i32
    %c0_i32_0 = arith.constant 0 : i32
    return %arg0, %c0_i32 : i32, i32
  }
}

</mosaic_0001>

<llo_original>
// kernel: dense_block_forward.1
$region0: #{dense_block_forward.1}
  #allocation0 [shape = 'u32[]', space=smem, size = 0x4, offset = 0x4, fixed_abs, tag = 'smem constant byte address 0x4 - core index']
  #allocation1 [shape = 'u32[144,128]{1,0:T(1,128)}', space=vmem, size = 0x12000, scoped, tag = 'internal scratch']
  %s0 = inlined_call_operand.vmem [shape: f32[64,128], index: 0, kind: input, shape index: {}]
  %s1 = inlined_call_operand.vmem [shape: bf16[2,128,384], index: 1, kind: input, shape index: {}]
  %s2 = inlined_call_operand.vmem [shape: f32[2,1,384], index: 2, kind: input, shape index: {}]
  %s3 = inlined_call_operand.hbm [shape: bf16[2,3,128,128], index: 3, kind: input, shape index: {}]
  %s4 = inlined_call_operand.vmem [shape: bf16[2,5,128,128], index: 4, kind: input, shape index: {}]
  %s5 = inlined_call_operand.hbm [shape: bf16[2,128,128], index: 5, kind: input, shape index: {}]
  %s6 = inlined_call_operand.vmem [shape: bf16[2,4,128,128], index: 6, kind: input, shape index: {}]
  %s7 = inlined_call_operand.vmem [shape: bf16[2,2,128,128], index: 7, kind: input, shape index: {}]
  %s8 = inlined_call_operand.vmem [shape: f32[2,5,1,128], index: 8, kind: input, shape index: {}]
  %s9 = inlined_call_operand.vmem [shape: f32[2,6,1,128], index: 9, kind: input, shape index: {}]
  %s10 = inlined_call_operand.vmem [shape: f32[64,128], index: 10, kind: output, shape index: {}]
  %s11 = sld [smem:[#allocation0]]
  $region81: #{dense_block_forward.1} parent=0
    _
  %s13 = ssub.s32 1, %s11
  %s14 = scalar_select 0, %s13, %s11
  $region1: #{dense_block_forward.1} parent=0
    #allocation2 [shape = 'u8[196608]{0}', space=vmem, size = 0x30000, scoped, tag = 'input window, operand 3, single buffered']
    #allocation3 [shape = 's32[2]{0}', space=sflag, size = 0x8, scoped, tag = 'scoped memory for dense_block_forward.1']
    #allocation4 [shape = 'u8[65536]{0}', space=vmem, size = 0x10000, scoped, tag = 'input window, operand 5, single buffered']
    #allocation5 [shape = 's32[1]{0}', space=sflag, size = 0x4, scoped, tag = 'scoped memory for dense_block_forward.1']
    %15 = vsyncpa [#allocation3], 0
    %16 = vsyncpa [#allocation5], 0
    loop: start=0, step=1, limit=4
    $region2: #{dense_block_forward.1} parent=1 // loop_pre_header
      _
    $region3: #{dense_block_forward.1} parent=1 // loop_header
      %s18 = sphi 0, %s22
      %p19 = scmp.ge.s32.totalorder %s18, 4
      %s28 = sphi 0, %s30
      %s31 = sphi 0, %s28
      %s32 = sphi 0, %s31
      %s48 = sphi 0, %s32
      %s52 = sphi 0, %s52
      %s54 = sphi 0, %s52
      %s55 = sphi 0, %s54
      %s69 = sphi 0, %s55
      %s73 = sphi 0, %s73
      %s75 = sphi 0, %s73
      %s76 = sphi 0, %s75
      %s90 = sphi 0, %s76
      %s94 = sphi 0, %s94
      %s96 = sphi 0, %s94
      %s97 = sphi 0, %s96
      %s111 = sphi 0, %s97
      %s115 = sphi 0, %s115
      %s117 = sphi 0, %s115
      %s118 = sphi 0, %s117
      %s132 = sphi 0, %s118
      %s136 = sphi 0, %s136
      %s138 = sphi 0, %s136
      %s139 = sphi 0, %s138
      %s153 = sphi 0, %s139
      %s157 = sphi 0, %s157
      %s159 = sphi 0, %s157
      %s160 = sphi 0, %s159
      %s174 = sphi 0, %s160
      %s178 = sphi 0, %s178
      %s180 = sphi 0, %s178
      %s181 = sphi 0, %s180
      %s195 = sphi 0, %s181
      %s199 = sphi 0, %s199
      %s201 = sphi 0, %s199
      %s202 = sphi 0, %s201
      %s216 = sphi 0, %s202
      %s220 = sphi 0, %s220
      %s222 = sphi 0, %s220
      %s223 = sphi 0, %s222
      %s237 = sphi 0, %s223
      %s243 = sphi 0, %s245
      %s246 = sphi 0, %s243
      %s247 = sphi 0, %s246
      %s263 = sphi 0, %s247
    $region4: #{dense_block_forward.1} parent=1 // loop_header_branch
      %21 = sbr.rel (%p19) target = $region8
    $region5: #{dense_block_forward.1} parent=1 // loop_body
      %s23 = ssub.s32 %s18, 1
      %s24 = ssub.s32 %s18, 2
      %s25 = sadd.s32 %s18, 1
      %s26 = ssub.s32 %s18, %s25
      %p27 = scmp.eq.s32.totalorder %s26, 0
      %s29 = sadd.s32 %s28, 1
      %s30 = scalar_select %p27, %s28, %s29
      %p33 = pneg %p27
      %p34 = scmp.eq.s32.totalorder %s18, 1
      %p35 = por %p33, %p34
      %p36 = scmp.ne.s32.totalorder %s28, %s31
      %p37 = scmp.eq.s32.totalorder %s18, 0
      %p38 = por %p36, %p37
      %p39 = scmp.ne.s32.totalorder %s28, %s31
      %p40 = scmp.eq.s32.totalorder %s23, 1
      %p41 = por %p39, %p40
      %p42 = scmp.ne.s32.totalorder %s31, %s32
      %p43 = scmp.eq.s32.totalorder %s23, 0
      %p44 = por %p42, %p43
      %p45 = scmp.ne.s32.totalorder %s31, %s32
      %p46 = scmp.eq.s32.totalorder %s24, 1
      %p47 = por %p45, %p46
      %p49 = scmp.ne.s32.totalorder %s32, %s48
      %p50 = scmp.eq.s32.totalorder %s24, 0
      %p51 = por %p49, %p50
      %s53 = sadd.s32 %s52, 1
      %p56 = scmp.eq.s32.totalorder %s18, 1
      %p57 = scmp.ne.s32.totalorder %s52, %s54
      %p58 = scmp.eq.s32.totalorder %s18, 0
      %p59 = por %p57, %p58
      %p60 = scmp.ne.s32.totalorder %s52, %s54
      %p61 = scmp.eq.s32.totalorder %s23, 1
      %p62 = por %p60, %p61
      %p63 = scmp.ne.s32.totalorder %s54, %s55
      %p64 = scmp.eq.s32.totalorder %s23, 0
      %p65 = por %p63, %p64
      %p66 = scmp.ne.s32.totalorder %s54, %s55
      %p67 = scmp.eq.s32.totalorder %s24, 1
      %p68 = por %p66, %p67
      %p70 = scmp.ne.s32.totalorder %s55, %s69
      %p71 = scmp.eq.s32.totalorder %s24, 0
      %p72 = por %p70, %p71
      %s74 = sadd.s32 %s73, 1
      %p77 = scmp.eq.s32.totalorder %s18, 1
      %p78 = scmp.ne.s32.totalorder %s73, %s75
      %p79 = scmp.eq.s32.totalorder %s18, 0
      %p80 = por %p78, %p79
      %p81 = scmp.ne.s32.totalorder %s73, %s75
      %p82 = scmp.eq.s32.totalorder %s23, 1
      %p83 = por %p81, %p82
      %p84 = scmp.ne.s32.totalorder %s75, %s76
      %p85 = scmp.eq.s32.totalorder %s23, 0
      %p86 = por %p84, %p85
      %p87 = scmp.ne.s32.totalorder %s75, %s76
      %p88 = scmp.eq.s32.totalorder %s24, 1
      %p89 = por %p87, %p88
      %p91 = scmp.ne.s32.totalorder %s76, %s90
      %p92 = scmp.eq.s32.totalorder %s24, 0
      %p93 = por %p91, %p92
      %s95 = sadd.s32 %s94, 1
      %p98 = scmp.eq.s32.totalorder %s18, 1
      %p99 = scmp.ne.s32.totalorder %s94, %s96
      %p100 = scmp.eq.s32.totalorder %s18, 0
      %p101 = por %p99, %p100
      %p102 = scmp.ne.s32.totalorder %s94, %s96
      %p103 = scmp.eq.s32.totalorder %s23, 1
      %p104 = por %p102, %p103
      %p105 = scmp.ne.s32.totalorder %s96, %s97
      %p106 = scmp.eq.s32.totalorder %s23, 0
      %p107 = por %p105, %p106
      %p108 = scmp.ne.s32.totalorder %s96, %s97
      %p109 = scmp.eq.s32.totalorder %s24, 1
      %p110 = por %p108, %p109
      %p112 = scmp.ne.s32.totalorder %s97, %s111
      %p113 = scmp.eq.s32.totalorder %s24, 0
      %p114 = por %p112, %p113
      %s116 = sadd.s32 %s115, 1
      %p119 = scmp.eq.s32.totalorder %s18, 1
      %p120 = scmp.ne.s32.totalorder %s115, %s117
      %p121 = scmp.eq.s32.totalorder %s18, 0
      %p122 = por %p120, %p121
      %p123 = scmp.ne.s32.totalorder %s115, %s117
      %p124 = scmp.eq.s32.totalorder %s23, 1
      %p125 = por %p123, %p124
      %p126 = scmp.ne.s32.totalorder %s117, %s118
      %p127 = scmp.eq.s32.totalorder %s23, 0
      %p128 = por %p126, %p127
      %p129 = scmp.ne.s32.totalorder %s117, %s118
      %p130 = scmp.eq.s32.totalorder %s24, 1
      %p131 = por %p129, %p130
      %p133 = scmp.ne.s32.totalorder %s118, %s132
      %p134 = scmp.eq.s32.totalorder %s24, 0
      %p135 = por %p133, %p134
      %s137 = sadd.s32 %s136, 1
      %p140 = scmp.eq.s32.totalorder %s18, 1
      %p141 = scmp.ne.s32.totalorder %s136, %s138
      %p142 = scmp.eq.s32.totalorder %s18, 0
      %p143 = por %p141, %p142
      %p144 = scmp.ne.s32.totalorder %s136, %s138
      %p145 = scmp.eq.s32.totalorder %s23, 1
      %p146 = por %p144, %p145
      %p147 = scmp.ne.s32.totalorder %s138, %s139
      %p148 = scmp.eq.s32.totalorder %s23, 0
      %p149 = por %p147, %p148
      %p150 = scmp.ne.s32.totalorder %s138, %s139
      %p151 = scmp.eq.s32.totalorder %s24, 1
      %p152 = por %p150, %p151
      %p154 = scmp.ne.s32.totalorder %s139, %s153
      %p155 = scmp.eq.s32.totalorder %s24, 0
      %p156 = por %p154, %p155
      %s158 = sadd.s32 %s157, 1
      %p161 = scmp.eq.s32.totalorder %s18, 1
      %p162 = scmp.ne.s32.totalorder %s157, %s159
      %p163 = scmp.eq.s32.totalorder %s18, 0
      %p164 = por %p162, %p163
      %p165 = scmp.ne.s32.totalorder %s157, %s159
      %p166 = scmp.eq.s32.totalorder %s23, 1
      %p167 = por %p165, %p166
      %p168 = scmp.ne.s32.totalorder %s159, %s160
      %p169 = scmp.eq.s32.totalorder %s23, 0
      %p170 = por %p168, %p169
      %p171 = scmp.ne.s32.totalorder %s159, %s160
      %p172 = scmp.eq.s32.totalorder %s24, 1
      %p173 = por %p171, %p172
      %p175 = scmp.ne.s32.totalorder %s160, %s174
      %p176 = scmp.eq.s32.totalorder %s24, 0
      %p177 = por %p175, %p176
      %s179 = sadd.s32 %s178, 1
      %p182 = scmp.eq.s32.totalorder %s18, 1
      %p183 = scmp.ne.s32.totalorder %s178, %s180
      %p184 = scmp.eq.s32.totalorder %s18, 0
      %p185 = por %p183, %p184
      %p186 = scmp.ne.s32.totalorder %s178, %s180
      %p187 = scmp.eq.s32.totalorder %s23, 1
      %p188 = por %p186, %p187
      %p189 = scmp.ne.s32.totalorder %s180, %s181
      %p190 = scmp.eq.s32.totalorder %s23, 0
      %p191 = por %p189, %p190
      %p192 = scmp.ne.s32.totalorder %s180, %s181
      %p193 = scmp.eq.s32.totalorder %s24, 1
      %p194 = por %p192, %p193
      %p196 = scmp.ne.s32.totalorder %s181, %s195
      %p197 = scmp.eq.s32.totalorder %s24, 0
      %p198 = por %p196, %p197
      %s200 = sadd.s32 %s199, 1
      %p203 = scmp.eq.s32.totalorder %s18, 1
      %p204 = scmp.ne.s32.totalorder %s199, %s201
      %p205 = scmp.eq.s32.totalorder %s18, 0
      %p206 = por %p204, %p205
      %p207 = scmp.ne.s32.totalorder %s199, %s201
      %p208 = scmp.eq.s32.totalorder %s23, 1
      %p209 = por %p207, %p208
      %p210 = scmp.ne.s32.totalorder %s201, %s202
      %p211 = scmp.eq.s32.totalorder %s23, 0
      %p212 = por %p210, %p211
      %p213 = scmp.ne.s32.totalorder %s201, %s202
      %p214 = scmp.eq.s32.totalorder %s24, 1
      %p215 = por %p213, %p214
      %p217 = scmp.ne.s32.totalorder %s202, %s216
      %p218 = scmp.eq.s32.totalorder %s24, 0
      %p219 = por %p217, %p218
      %s221 = sadd.s32 %s220, 1
      %p224 = scmp.eq.s32.totalorder %s18, 1
      %p225 = scmp.ne.s32.totalorder %s220, %s222
      %p226 = scmp.eq.s32.totalorder %s18, 0
      %p227 = por %p225, %p226
      %p228 = scmp.ne.s32.totalorder %s220, %s222
      %p229 = scmp.eq.s32.totalorder %s23, 1
      %p230 = por %p228, %p229
      %p231 = scmp.ne.s32.totalorder %s222, %s223
      %p232 = scmp.eq.s32.totalorder %s23, 0
      %p233 = por %p231, %p232
      %p234 = scmp.ne.s32.totalorder %s222, %s223
      %p235 = scmp.eq.s32.totalorder %s24, 1
      %p236 = por %p234, %p235
      %p238 = scmp.ne.s32.totalorder %s223, %s237
      %p239 = scmp.eq.s32.totalorder %s24, 0
      %p240 = por %p238, %p239
      %s241 = ssub.s32 %s18, %s25
      %p242 = scmp.eq.s32.totalorder %s241, 0
      %s244 = sadd.s32 %s243, 1
      %s245 = scalar_select %p242, %s243, %s244
      %p248 = pneg %p242
      %p249 = scmp.eq.s32.totalorder %s18, 1
      %p250 = por %p248, %p249
      %p251 = scmp.ne.s32.totalorder %s243, %s246
      %p252 = scmp.eq.s32.totalorder %s18, 0
      %p253 = por %p251, %p252
      %p254 = scmp.ne.s32.totalorder %s243, %s246
      %p255 = scmp.eq.s32.totalorder %s23, 1
      %p256 = por %p254, %p255
      %p257 = scmp.ne.s32.totalorder %s246, %s247
      %p258 = scmp.eq.s32.totalorder %s23, 0
      %p259 = por %p257, %p258
      %p260 = scmp.ne.s32.totalorder %s246, %s247
      %p261 = scmp.eq.s32.totalorder %s24, 1
      %p262 = por %p260, %p261
      %p264 = scmp.ne.s32.totalorder %s247, %s263
      %p265 = scmp.eq.s32.totalorder %s24, 0
      %p266 = por %p264, %p265
      %p267 = scmp.le.s32.totalorder 1, %s18
      %p268 = scmp.lt.s32.totalorder %s18, 3
      %p269 = pnand %p267, %p268
      %p270 = pneg %p269
      // Predicated region
      $region9: #{dense_block_forward.1} parent=5 // pred_check
        _
      $region10: #{dense_block_forward.1} parent=5 // pred_check_branch
        %272 = sbr.rel (%p269) target = $region12
      $region11: #{dense_block_forward.1} parent=5 // pred_region
        %s273 = ssub.s32 %s18, 1
        // Predicated region
        $region13: #{dense_block_forward.1} parent=11 // pred_check
          %p274 = pneg %p65
        $region14: #{dense_block_forward.1} parent=11 // pred_check_branch
          %276 = sbr.rel (%p274) target = $region16
        $region15: #{dense_block_forward.1} parent=11 // pred_region
          _
        $region16: #{dense_block_forward.1} parent=11 // pred_fallthru
          _
        // Predicated region
        $region17: #{dense_block_forward.1} parent=11 // pred_check
          %p277 = pneg %p86
        $region18: #{dense_block_forward.1} parent=11 // pred_check_branch
          %279 = sbr.rel (%p277) target = $region20
        $region19: #{dense_block_forward.1} parent=11 // pred_region
          _
        $region20: #{dense_block_forward.1} parent=11 // pred_fallthru
          _
        // Predicated region
        $region21: #{dense_block_forward.1} parent=11 // pred_check
          %p280 = pneg %p107
        $region22: #{dense_block_forward.1} parent=11 // pred_check_branch
          %282 = sbr.rel (%p280) target = $region24
        $region23: #{dense_block_forward.1} parent=11 // pred_region
          %s284 = ssub.s32 6144, 6144
          %285 = vsyncadd [#allocation3], %s284
          %s286 = sshll.u32 [#allocation2], 4
          %s287 = int_to_ptr.vmem [resolvable:$true] %s286
          %292 = dma.hbm_to_vmem [thread:$0]  %s3, 6144, %s287, [#allocation3], 64, 64, 4
        $region24: #{dense_block_forward.1} parent=11 // pred_fallthru
          _
        // Predicated region
        $region25: #{dense_block_forward.1} parent=11 // pred_check
          %p293 = pneg %p128
        $region26: #{dense_block_forward.1} parent=11 // pred_check_branch
          %295 = sbr.rel (%p293) target = $region28
        $region27: #{dense_block_forward.1} parent=11 // pred_region
          _
        $region28: #{dense_block_forward.1} parent=11 // pred_fallthru
          _
        // Predicated region
        $region29: #{dense_block_forward.1} parent=11 // pred_check
          %p296 = pneg %p149
        $region30: #{dense_block_forward.1} parent=11 // pred_check_branch
          %298 = sbr.rel (%p296) target = $region32
        $region31: #{dense_block_forward.1} parent=11 // pred_region
          %s300 = ssub.s32 2048, 2048
          %301 = vsyncadd [#allocation5], %s300
          %s302 = sshll.u32 [#allocation4], 4
          %s303 = int_to_ptr.vmem [resolvable:$true] %s302
          %308 = dma.hbm_to_vmem [thread:$0]  %s5, 2048, %s303, [#allocation5], 64, 64, 4
        $region32: #{dense_block_forward.1} parent=11 // pred_fallthru
          _
        // Predicated region
        $region33: #{dense_block_forward.1} parent=11 // pred_check
          %p309 = pneg %p170
        $region34: #{dense_block_forward.1} parent=11 // pred_check_branch
          %311 = sbr.rel (%p309) target = $region36
        $region35: #{dense_block_forward.1} parent=11 // pred_region
          _
        $region36: #{dense_block_forward.1} parent=11 // pred_fallthru
          _
        // Predicated region
        $region37: #{dense_block_forward.1} parent=11 // pred_check
          %p312 = pneg %p191
        $region38: #{dense_block_forward.1} parent=11 // pred_check_branch
          %314 = sbr.rel (%p312) target = $region40
        $region39: #{dense_block_forward.1} parent=11 // pred_region
          _
        $region40: #{dense_block_forward.1} parent=11 // pred_fallthru
          _
        // Predicated region
        $region41: #{dense_block_forward.1} parent=11 // pred_check
          %p315 = pneg %p212
        $region42: #{dense_block_forward.1} parent=11 // pred_check_branch
          %317 = sbr.rel (%p315) target = $region44
        $region43: #{dense_block_forward.1} parent=11 // pred_region
          _
        $region44: #{dense_block_forward.1} parent=11 // pred_fallthru
          _
        // Predicated region
        $region45: #{dense_block_forward.1} parent=11 // pred_check
          %p318 = pneg %p233
        $region46: #{dense_block_forward.1} parent=11 // pred_check_branch
          %320 = sbr.rel (%p318) target = $region48
        $region47: #{dense_block_forward.1} parent=11 // pred_region
          _
        $region48: #{dense_block_forward.1} parent=11 // pred_fallthru
          _
      $region12: #{dense_block_forward.1} parent=5 // pred_fallthru
        _
      %p321 = scmp.lt.s32.totalorder %s18, 2
      // Predicated region
      $region49: #{dense_block_forward.1} parent=5 // pred_check
        %p322 = pneg %p321
      $region50: #{dense_block_forward.1} parent=5 // pred_check_branch
        %324 = sbr.rel (%p322) target = $region52
      $region51: #{dense_block_forward.1} parent=5 // pred_region
        // Predicated region
        $region53: #{dense_block_forward.1} parent=51 // pred_check
          %p325 = pneg %p38
        $region54: #{dense_block_forward.1} parent=51 // pred_check_branch
          %327 = sbr.rel (%p325) target = $region56
        $region55: #{dense_block_forward.1} parent=51 // pred_region
          %s328 = smul.u32 4, %s18
          %p329 = scmp.lt.s32.totalorder %s328, 7
          %s330 = scalar_select %p329, %s328, 7
          %s331 = smul.addr %s330, 8
          %s332 = scalar_lea.vmem %s0, %s331
          %s333 = smul.u32 4, %s18
        $region56: #{dense_block_forward.1} parent=51 // pred_fallthru
          _
      $region52: #{dense_block_forward.1} parent=5 // pred_fallthru
        _
      %p334 = scmp.le.s32.totalorder 1, %s18
      %p335 = scmp.lt.s32.totalorder %s18, 3
      %p336 = pnand %p334, %p335
      %p337 = pneg %p336
      // Predicated region
      $region57: #{dense_block_forward.1} parent=5 // pred_check
        _
      $region58: #{dense_block_forward.1} parent=5 // pred_check_branch
        %339 = sbr.rel (%p336) target = $region60
      $region59: #{dense_block_forward.1} parent=5 // pred_region
        %s340 = ssub.s32 %s18, 1
        // Predicated region
        $region61: #{dense_block_forward.1} parent=59 // pred_check
          %p341 = pneg %p107
        $region62: #{dense_block_forward.1} parent=59 // pred_check_branch
          %343 = sbr.rel (%p341) target = $region64
        $region63: #{dense_block_forward.1} parent=59 // pred_region
          %344 = dma.done [#allocation3], 6144
        $region64: #{dense_block_forward.1} parent=59 // pred_fallthru
          _
        // Predicated region
        $region65: #{dense_block_forward.1} parent=59 // pred_check
          %p345 = pneg %p149
        $region66: #{dense_block_forward.1} parent=59 // pred_check_branch
          %347 = sbr.rel (%p345) target = $region68
        $region67: #{dense_block_forward.1} parent=59 // pred_region
          %348 = dma.done [#allocation5], 2048
        $region68: #{dense_block_forward.1} parent=59 // pred_fallthru
          _
        %s349 = smul.u32 4, %s23
        %p350 = scmp.lt.s32.totalorder %s349, 7
        %s351 = scalar_select %p350, %s349, 7
        %s352 = smul.addr %s351, 8
        %s353 = scalar_lea.vmem %s0, %s352
        %p354 = pneg %p44
        %p355 = pneg %p41
        %p356 = pneg %p65
        %p357 = pneg %p62
        %p358 = pneg %p86
        %p359 = pneg %p83
        %p360 = pneg %p107
        %p361 = pneg %p104
        %p362 = pneg %p128
        %p363 = pneg %p125
        %p364 = pneg %p149
        %p365 = pneg %p146
        %p366 = pneg %p170
        %p367 = pneg %p167
        %p368 = pneg %p191
        %p369 = pneg %p188
        %p370 = pneg %p212
        %p371 = pneg %p209
        %p372 = pneg %p233
        %p373 = pneg %p230
        %p374 = pneg %p259
        %p375 = pneg %p256
        %s376 = smul.u32 4, %s23
        %p377 = scmp.lt.s32.totalorder %s376, 7
        %s378 = scalar_select %p377, %s376, 7
        %s379 = smul.addr %s378, 8
        %s380 = scalar_lea.vmem %s10, %s379
        %s381 = smul.u32 4, %s23
        %p382 = scmp.lt.s32.totalorder %s381, 7
        %s383 = scalar_select %p382, %s381, 7
        %s384 = smul.addr %s383, 8
        %s385 = scalar_lea.vmem %s0, %s384
        %s386 = smul.u32 4, %s23
        %s387 = smul.u32 4, %s23
        %p388 = scmp.lt.s32.totalorder %s387, 7
        %s389 = scalar_select %p388, %s387, 7
        %s390 = smul.addr %s389, 8
        %s391 = scalar_lea.vmem %s10, %s390
        %s392 = smul.u32 4, %s23
        %v394 = vlaneseq
        %v395 = vshrl.u32 %v394, 7
        %v396 = vadd.s32 %v395, 8
        %v397 = vadd.s32 %v395, 16
        %v398 = vadd.s32 %v395, 24
        %vm399 = vcmp.lt.s32.totalorder %v395, 0
        %v400 = vsub.s32 0, %v395
        %v401 = vsel %vm399, %v400, %v395
        %v402 = vshrl.u32 %v401, 4
        %v403 = vand.u32 %v401, 15
        %v404 = vsub.s32 0, %v403
        %v405 = vsel %vm399, %v404, %v403
        %vm406 = vcmp.lt.s32.totalorder %v396, 0
        %v407 = vsub.s32 0, %v396
        %v408 = vsel %vm406, %v407, %v396
        %v409 = vshrl.u32 %v408, 4
        %v410 = vand.u32 %v408, 15
        %v411 = vsub.s32 0, %v410
        %v412 = vsel %vm406, %v411, %v410
        %vm413 = vcmp.lt.s32.totalorder %v397, 0
        %v414 = vsub.s32 0, %v397
        %v415 = vsel %vm413, %v414, %v397
        %v416 = vshrl.u32 %v415, 4
        %v417 = vand.u32 %v415, 15
        %v418 = vsub.s32 0, %v417
        %v419 = vsel %vm413, %v418, %v417
        %vm420 = vcmp.lt.s32.totalorder %v398, 0
        %v421 = vsub.s32 0, %v398
        %v422 = vsel %vm420, %v421, %v398
        %v423 = vshrl.u32 %v422, 4
        %v424 = vand.u32 %v422, 15
        %v425 = vsub.s32 0, %v424
        %v426 = vsel %vm420, %v425, %v424
        %vm427 = vcmp.ne.s32.totalorder %v405, 0
        %vm428 = vcmp.ne.s32.totalorder %v412, 0
        %vm429 = vcmp.ne.s32.totalorder %v419, 0
        %vm430 = vcmp.ne.s32.totalorder %v426, 0
        %vm431 = vcmp.lt.s32.totalorder %v405, 0
        %vm432 = vcmp.lt.s32.totalorder %v412, 0
        %vm433 = vcmp.lt.s32.totalorder %v419, 0
        %vm434 = vcmp.lt.s32.totalorder %v426, 0
        %vm435 = vmand %vm431, %vm427
        %vm436 = vmand %vm432, %vm428
        %vm437 = vmand %vm433, %vm429
        %vm438 = vmand %vm434, %vm430
        %v439 = vadd.s32 %v405, 16
        %v440 = vadd.s32 %v412, 16
        %v441 = vadd.s32 %v419, 16
        %v442 = vadd.s32 %v426, 16
        %v443 = vsel %vm435, %v439, %v405
        %v444 = vsel %vm436, %v440, %v412
        %v445 = vsel %vm437, %v441, %v419
        %v446 = vsel %vm438, %v442, %v426
        %v447 = vlaneseq
        %v448 = vand.u32 %v447, 127
        %v449 = vadd.s32 %v443, 4294967294
        %v450 = vadd.s32 %v444, 4294967294
        %v451 = vadd.s32 %v445, 4294967294
        %v452 = vadd.s32 %v446, 4294967294
        %vm453 = vcmp.ge.s32.totalorder %v449, 0
        %vm454 = vcmp.ge.s32.totalorder %v450, 0
        %vm455 = vcmp.ge.s32.totalorder %v451, 0
        %vm456 = vcmp.ge.s32.totalorder %v452, 0
        %vm457 = vcmp.lt.s32.totalorder %v449, 16
        %vm458 = vcmp.lt.s32.totalorder %v450, 16
        %vm459 = vcmp.lt.s32.totalorder %v451, 16
        %vm460 = vcmp.lt.s32.totalorder %v452, 16
        %vm461 = vmand %vm453, %vm457
        %vm462 = vmand %vm454, %vm458
        %vm463 = vmand %vm455, %vm459
        %vm464 = vmand %vm456, %vm460
        %v465 = vadd.s32 %v443, 4294967295
        %v466 = vadd.s32 %v444, 4294967295
        %v467 = vadd.s32 %v445, 4294967295
        %v468 = vadd.s32 %v446, 4294967295
        %vm469 = vcmp.ge.s32.totalorder %v465, 0
        %vm470 = vcmp.ge.s32.totalorder %v466, 0
        %vm471 = vcmp.ge.s32.totalorder %v467, 0
        %vm472 = vcmp.ge.s32.totalorder %v468, 0
        %vm473 = vcmp.lt.s32.totalorder %v465, 16
        %vm474 = vcmp.lt.s32.totalorder %v466, 16
        %vm475 = vcmp.lt.s32.totalorder %v467, 16
        %vm476 = vcmp.lt.s32.totalorder %v468, 16
        %vm477 = vmand %vm469, %vm473
        %vm478 = vmand %vm470, %vm474
        %vm479 = vmand %vm471, %vm475
        %vm480 = vmand %vm472, %vm476
        %v481 = vadd.s32 %v443, 1
        %v482 = vadd.s32 %v444, 1
        %v483 = vadd.s32 %v445, 1
        %v484 = vadd.s32 %v446, 1
        %vm485 = vcmp.ge.s32.totalorder %v481, 0
        %vm486 = vcmp.ge.s32.totalorder %v482, 0
        %vm487 = vcmp.ge.s32.totalorder %v483, 0
        %vm488 = vcmp.ge.s32.totalorder %v484, 0
        %vm489 = vcmp.lt.s32.totalorder %v481, 16
        %vm490 = vcmp.lt.s32.totalorder %v482, 16
        %vm491 = vcmp.lt.s32.totalorder %v483, 16
        %vm492 = vcmp.lt.s32.totalorder %v484, 16
        %vm493 = vmand %vm485, %vm489
        %vm494 = vmand %vm486, %vm490
        %vm495 = vmand %vm487, %vm491
        %vm496 = vmand %vm488, %vm492
        %v497 = vadd.s32 %v443, 2
        %v498 = vadd.s32 %v444, 2
        %v499 = vadd.s32 %v445, 2
        %v500 = vadd.s32 %v446, 2
        %vm501 = vcmp.ge.s32.totalorder %v497, 0
        %vm502 = vcmp.ge.s32.totalorder %v498, 0
        %vm503 = vcmp.ge.s32.totalorder %v499, 0
        %vm504 = vcmp.ge.s32.totalorder %v500, 0
        %vm505 = vcmp.lt.s32.totalorder %v497, 16
        %vm506 = vcmp.lt.s32.totalorder %v498, 16
        %vm507 = vcmp.lt.s32.totalorder %v499, 16
        %vm508 = vcmp.lt.s32.totalorder %v500, 16
        %vm509 = vmand %vm501, %vm505
        %vm510 = vmand %vm502, %vm506
        %vm511 = vmand %vm503, %vm507
        %vm512 = vmand %vm504, %vm508
        %vm513 = vcmp.lt.s32.totalorder %v448, 8
        %vm514 = vcmp.ge.s32.totalorder %v448, 120
        %v515 = vld [vmem:[%s385] sm:$0xff]
        %v516 = vld [vmem:[%s385 + $0x8] sm:$0xff]
        %v517 = vld [vmem:[%s385 + $0x10] sm:$0xff]
        %v518 = vld [vmem:[%s385 + $0x18] sm:$0xff]
        %v519 = vld [vmem:[%s1] sm:$0xff]
        %v520 = vld [vmem:[%s1 + $0x8] sm:$0xf]
        %v521 = vld [vmem:[%s1 + $0xc] sm:$0xff]
        %v522 = vld [vmem:[%s1 + $0x14] sm:$0xf]
        %v523 = vld [vmem:[%s1 + $0x18] sm:$0xff]
        %v524 = vld [vmem:[%s1 + $0x20] sm:$0xf]
        %v525 = vld [vmem:[%s1 + $0x24] sm:$0xff]
        %v526 = vld [vmem:[%s1 + $0x2c] sm:$0xf]
        %v527 = vld [vmem:[%s1 + $0x30] sm:$0xff]
        %v528 = vld [vmem:[%s1 + $0x38] sm:$0xf]
        %v529 = vld [vmem:[%s1 + $0x3c] sm:$0xff]
        %v530 = vld [vmem:[%s1 + $0x44] sm:$0xf]
        %v531 = vld [vmem:[%s1 + $0x48] sm:$0xff]
        %v532 = vld [vmem:[%s1 + $0x50] sm:$0xf]
        %v533 = vld [vmem:[%s1 + $0x54] sm:$0xff]
        %v534 = vld [vmem:[%s1 + $0x5c] sm:$0xf]
        %v535 = vld [vmem:[%s1 + $0x60] sm:$0xff]
        %v536 = vld [vmem:[%s1 + $0x68] sm:$0xf]
        %v537 = vld [vmem:[%s1 + $0x6c] sm:$0xff]
        %v538 = vld [vmem:[%s1 + $0x74] sm:$0xf]
        %v539 = vld [vmem:[%s1 + $0x78] sm:$0xff]
        %v540 = vld [vmem:[%s1 + $0x80] sm:$0xf]
        %v541 = vld [vmem:[%s1 + $0x84] sm:$0xff]
        %v542 = vld [vmem:[%s1 + $0x8c] sm:$0xf]
        %v543 = vld [vmem:[%s1 + $0x90] sm:$0xff]
        %v544 = vld [vmem:[%s1 + $0x98] sm:$0xf]
        %v545 = vld [vmem:[%s1 + $0x9c] sm:$0xff]
        %v546 = vld [vmem:[%s1 + $0xa4] sm:$0xf]
        %v547 = vld [vmem:[%s1 + $0xa8] sm:$0xff]
        %v548 = vld [vmem:[%s1 + $0xb0] sm:$0xf]
        %v549 = vld [vmem:[%s1 + $0xb4] sm:$0xff]
        %v550 = vld [vmem:[%s1 + $0xbc] sm:$0xf]
        %v551 = vpack.c.bf16 %v516, %v515
        %v552 = vpack.c.bf16 %v518, %v517
        %v553 = vld [vmem:[%s2] sm:$0x7]
        %v555 = vlaneseq
        %v556 = vshrl.u32 %v555, 7
        %v557 = vsub.s32 0, %v556
        %v558 = vrot.slane %v553, %v557
        %v559 = vlaneseq
        %v560 = vshrl.u32 %v559, 7
        %v561 = vsub.s32 1, %v560
        %v562 = vrot.slane %v553, %v561
        %v563 = vlaneseq
        %v564 = vshrl.u32 %v563, 7
        %v565 = vsub.s32 2, %v564
        %v566 = vrot.slane %v553, %v565
        %v602 = vunpack.c.l.b16 %v519
        %v603 = vunpack.c.h.b16 %v519
        %v604 = vunpack.c.l.b16 %v520
        %v605 = vunpack.c.l.b16 %v521
        %v606 = vunpack.c.h.b16 %v521
        %v607 = vunpack.c.l.b16 %v522
        %v608 = vunpack.c.l.b16 %v523
        %v609 = vunpack.c.h.b16 %v523
        %v610 = vunpack.c.l.b16 %v524
        %v611 = vunpack.c.l.b16 %v525
        %v612 = vunpack.c.h.b16 %v525
        %v613 = vunpack.c.l.b16 %v526
        %v614 = vunpack.c.l.b16 %v527
        %v615 = vunpack.c.h.b16 %v527
        %v616 = vunpack.c.l.b16 %v528
        %v617 = vunpack.c.l.b16 %v529
        %v618 = vunpack.c.h.b16 %v529
        %v619 = vunpack.c.l.b16 %v530
        %v620 = vunpack.c.l.b16 %v531
        %v621 = vunpack.c.h.b16 %v531
        %v622 = vunpack.c.l.b16 %v532
        %v623 = vunpack.c.l.b16 %v533
        %v624 = vunpack.c.h.b16 %v533
        %v625 = vunpack.c.l.b16 %v534
        %v626 = vunpack.c.l.b16 %v535
        %v627 = vunpack.c.h.b16 %v535
        %v628 = vunpack.c.l.b16 %v536
        %v629 = vunpack.c.l.b16 %v537
        %v630 = vunpack.c.h.b16 %v537
        %v631 = vunpack.c.l.b16 %v538
        %v632 = vunpack.c.l.b16 %v539
        %v633 = vunpack.c.h.b16 %v539
        %v634 = vunpack.c.l.b16 %v540
        %v635 = vunpack.c.l.b16 %v541
        %v636 = vunpack.c.h.b16 %v541
        %v637 = vunpack.c.l.b16 %v542
        %v638 = vunpack.c.l.b16 %v543
        %v639 = vunpack.c.h.b16 %v543
        %v640 = vunpack.c.l.b16 %v544
        %v641 = vunpack.c.l.b16 %v545
        %v642 = vunpack.c.h.b16 %v545
        %v643 = vunpack.c.l.b16 %v546
        %v644 = vunpack.c.l.b16 %v547
        %v645 = vunpack.c.h.b16 %v547
        %v646 = vunpack.c.l.b16 %v548
        %v647 = vunpack.c.l.b16 %v549
        %v648 = vunpack.c.h.b16 %v549
        %v649 = vunpack.c.l.b16 %v550
        %v650 = vpack.c.b16 %v605, %v602
        %v651 = vpack.c.b16 %v606, %v603
        %v652 = vpack.c.b16 %v607, %v604
        %v653 = vpack.c.b16 %v611, %v608
        %v654 = vpack.c.b16 %v612, %v609
        %v655 = vpack.c.b16 %v613, %v610
        %v656 = vpack.c.b16 %v617, %v614
        %v657 = vpack.c.b16 %v618, %v615
        %v658 = vpack.c.b16 %v619, %v616
        %v659 = vpack.c.b16 %v623, %v620
        %v660 = vpack.c.b16 %v624, %v621
        %v661 = vpack.c.b16 %v625, %v622
        %v662 = vpack.c.b16 %v629, %v626
        %v663 = vpack.c.b16 %v630, %v627
        %v664 = vpack.c.b16 %v631, %v628
        %v665 = vpack.c.b16 %v635, %v632
        %v666 = vpack.c.b16 %v636, %v633
        %v667 = vpack.c.b16 %v637, %v634
        %v668 = vpack.c.b16 %v641, %v638
        %v669 = vpack.c.b16 %v642, %v639
        %v670 = vpack.c.b16 %v643, %v640
        %v671 = vpack.c.b16 %v647, %v644
        %v672 = vpack.c.b16 %v648, %v645
        %v673 = vpack.c.b16 %v649, %v646
        %698 = vmatprep.subr.bf16.mxu0 %v651
        %699 = vmatpush1.bf16.msra.mxu0 %v650
        %700 = vmatprep.subr.bf16.mxu0 %v654
        %701 = vmatpush1.bf16.msra.mxu0 %v653
        %702 = vmatprep.subr.bf16.mxu0 %v657
        %703 = vmatpush1.bf16.msra.mxu0 %v656
        %704 = vmatprep.subr.bf16.mxu0 %v660
        %705 = vmatpush1.bf16.msra.mxu0 %v659
        %706 = vmatprep.subr.bf16.mxu0 %v663
        %707 = vmatpush1.bf16.msra.mxu0 %v662
        %708 = vmatprep.subr.bf16.mxu0 %v666
        %709 = vmatpush1.bf16.msra.mxu0 %v665
        %710 = vmatprep.subr.bf16.mxu0 %v669
        %711 = vmatpush1.bf16.msra.mxu0 %v668
        %712 = vmatprep.subr.bf16.mxu0 %v672
        %713 = vmatpush1.bf16.msra.mxu0 %v671
        %714 = vmatprep.subr.bf16.mxu0 0
        %715 = vmatpush1.bf16.msra.mxu0 0
        %716 = vmatprep.subr.bf16.mxu0 0
        %717 = vmatpush1.bf16.msra.mxu0 0
        %718 = vmatprep.subr.bf16.mxu0 0
        %719 = vmatpush1.bf16.msra.mxu0 0
        %720 = vmatprep.subr.bf16.mxu0 0
        %721 = vmatpush1.bf16.msra.mxu0 0
        %722 = vmatprep.subr.bf16.mxu0 0
        %723 = vmatpush1.bf16.msra.mxu0 0
        %724 = vmatprep.subr.bf16.mxu0 0
        %725 = vmatpush1.bf16.msra.mxu0 0
        %726 = vmatprep.subr.bf16.mxu0 0
        %727 = vmatpush1.bf16.msra.mxu0 0
        %728 = vmatprep.subr.bf16.mxu0 0
        %729 = vmatpush1.bf16.msra.mxu0 0
        %730 = vmatprep.mubr.bf16.mxu0 0
        %731 = vmatmul.mubr.bf16.gmra.mrb[0].mxu0 %v551
        %v732 = vpop.f32.mrb[0].mxu0
        %v733 = vadd.f32 %v558, %v732
        %v734 = vpop.f32.mrb[0].mxu0
        %v735 = vadd.f32 %v562, %v734
        %v736 = vpop.f32.mrb[0].mxu0
        %v737 = vadd.f32 %v558, %v736
        %v738 = vpop.f32.mrb[0].mxu0
        %v739 = vadd.f32 %v562, %v738
        %740 = vmatprep.mubr.bf16.mxu0 0
        %741 = vmatmul.mubr.bf16.gmra.mrb[0].mxu0 %v552
        %v742 = vpop.f32.mrb[0].mxu0
        %v743 = vadd.f32 %v558, %v742
        %v744 = vpop.f32.mrb[0].mxu0
        %v745 = vadd.f32 %v562, %v744
        %v746 = vpop.f32.mrb[0].mxu0
        %v747 = vadd.f32 %v558, %v746
        %v748 = vpop.f32.mrb[0].mxu0
        %v749 = vadd.f32 %v562, %v748
        %750 = vdwg.mxu0
        %751 = vmatprep.subr.bf16.mxu0 0
        %752 = vmatpush1.bf16.msra.mxu0 %v652
        %753 = vmatprep.subr.bf16.mxu0 0
        %754 = vmatpush1.bf16.msra.mxu0 %v655
        %755 = vmatprep.subr.bf16.mxu0 0
        %756 = vmatpush1.bf16.msra.mxu0 %v658
        %757 = vmatprep.subr.bf16.mxu0 0
        %758 = vmatpush1.bf16.msra.mxu0 %v661
        %759 = vmatprep.subr.bf16.mxu0 0
        %760 = vmatpush1.bf16.msra.mxu0 %v664
        %761 = vmatprep.subr.bf16.mxu0 0
        %762 = vmatpush1.bf16.msra.mxu0 %v667
        %763 = vmatprep.subr.bf16.mxu0 0
        %764 = vmatpush1.bf16.msra.mxu0 %v670
        %765 = vmatprep.subr.bf16.mxu0 0
        %766 = vmatpush1.bf16.msra.mxu0 %v673
        %767 = vmatprep.subr.bf16.mxu0 0
        %768 = vmatpush1.bf16.msra.mxu0 0
        %769 = vmatprep.subr.bf16.mxu0 0
        %770 = vmatpush1.bf16.msra.mxu0 0
        %771 = vmatprep.subr.bf16.mxu0 0
        %772 = vmatpush1.bf16.msra.mxu0 0
        %773 = vmatprep.subr.bf16.mxu0 0
        %774 = vmatpush1.bf16.msra.mxu0 0
        %775 = vmatprep.subr.bf16.mxu0 0
        %776 = vmatpush1.bf16.msra.mxu0 0
        %777 = vmatprep.subr.bf16.mxu0 0
        %778 = vmatpush1.bf16.msra.mxu0 0
        %779 = vmatprep.subr.bf16.mxu0 0
        %780 = vmatpush1.bf16.msra.mxu0 0
        %781 = vmatprep.subr.bf16.mxu0 0
        %782 = vmatpush1.bf16.msra.mxu0 0
        %783 = vmatprep.mubr.bf16.mxu0 0
        %784 = vmatmul.mubr.bf16.gmra.mrb[0].mxu0 %v551
        %v785 = vpop.f32.mrb[0].mxu0
        %v786 = vadd.f32 %v566, %v785
        %v787 = vpop.f32.mrb[0].mxu0
        %v788 = vpop.f32.mrb[0].mxu0
        %v789 = vadd.f32 %v566, %v788
        %v790 = vpop.f32.mrb[0].mxu0
        %791 = vmatprep.mubr.bf16.mxu0 0
        %792 = vmatmul.mubr.bf16.gmra.mrb[0].mxu0 %v552
        %v793 = vpop.f32.mrb[0].mxu0
        %v794 = vadd.f32 %v566, %v793
        %v795 = vpop.f32.mrb[0].mxu0
        %v796 = vpop.f32.mrb[0].mxu0
        %v797 = vadd.f32 %v566, %v796
        %v798 = vpop.f32.mrb[0].mxu0
        %799 = vdwg.mxu0
        %v800 = vld [vmem:[%s9] sm:$0x1]
        %v802 = vlaneseq
        %v803 = vshrl.u32 %v802, 7
        %v804 = vsub.s32 0, %v803
        %v805 = vrot.slane %v800, %v804
        %v807 = vmul.f32 %v733, %v805
        %v808 = vmul.f32 %v737, %v805
        %v809 = vmul.f32 %v743, %v805
        %v810 = vmul.f32 %v747, %v805
        %v811 = vmul.f32 %v807, 0.5
        %v812 = vmul.f32 %v808, 0.5
        %v813 = vmul.f32 %v809, 0.5
        %v814 = vmul.f32 %v810, 0.5
        %v815 = vtanh.pop %v811
        %v816 = vtanh.pop %v812
        %v817 = vtanh.pop %v813
        %v818 = vtanh.pop %v814
        %v819 = vmul.f32 %v815, 0.5
        %v820 = vmul.f32 %v816, 0.5
        %v821 = vmul.f32 %v817, 0.5
        %v822 = vmul.f32 %v818, 0.5
        %v823 = vadd.f32 %v819, 0.5
        %v824 = vadd.f32 %v820, 0.5
        %v825 = vadd.f32 %v821, 0.5
        %v826 = vadd.f32 %v822, 0.5
        %v827 = vmul.f32 %v733, %v823
        %v828 = vmul.f32 %v737, %v824
        %v829 = vmul.f32 %v743, %v825
        %v830 = vmul.f32 %v747, %v826
        %s831 = scalar_lea.vmem %s9, 1
        %v832 = vld [vmem:[%s831] sm:$0x1]
        %v834 = vlaneseq
        %v835 = vshrl.u32 %v834, 7
        %v836 = vsub.s32 0, %v835
        %v837 = vrot.slane %v832, %v836
        %v839 = vmul.f32 %v735, %v837
        %v840 = vmul.f32 %v739, %v837
        %v841 = vmul.f32 %v745, %v837
        %v842 = vmul.f32 %v749, %v837
        %v843 = vmul.f32 %v839, 0.5
        %v844 = vmul.f32 %v840, 0.5
        %v845 = vmul.f32 %v841, 0.5
        %v846 = vmul.f32 %v842, 0.5
        %v847 = vtanh.pop %v843
        %v848 = vtanh.pop %v844
        %v849 = vtanh.pop %v845
        %v850 = vtanh.pop %v846
        %v851 = vmul.f32 %v847, 0.5
        %v852 = vmul.f32 %v848, 0.5
        %v853 = vmul.f32 %v849, 0.5
        %v854 = vmul.f32 %v850, 0.5
        %v855 = vadd.f32 %v851, 0.5
        %v856 = vadd.f32 %v852, 0.5
        %v857 = vadd.f32 %v853, 0.5
        %v858 = vadd.f32 %v854, 0.5
        %v859 = vmul.f32 %v735, %v855
        %v860 = vmul.f32 %v739, %v856
        %v861 = vmul.f32 %v745, %v857
        %v862 = vmul.f32 %v749, %v858
        %s863 = scalar_lea.vmem %s9, 3
        %v864 = vld [vmem:[%s863] sm:$0x1]
        %v866 = vlaneseq
        %v867 = vshrl.u32 %v866, 7
        %v868 = vsub.s32 0, %v867
        %v869 = vrot.slane %v864, %v868
        %v871 = vmul.f32 %v786, %v869
        %v872 = vmul.f32 %v789, %v869
        %v873 = vmul.f32 %v794, %v869
        %v874 = vmul.f32 %v797, %v869
        %v875 = vmul.f32 %v871, 0.5
        %v876 = vmul.f32 %v872, 0.5
        %v877 = vmul.f32 %v873, 0.5
        %v878 = vmul.f32 %v874, 0.5
        %v879 = vtanh.pop %v875
        %v880 = vtanh.pop %v876
        %v881 = vtanh.pop %v877
        %v882 = vtanh.pop %v878
        %v883 = vmul.f32 %v879, 0.5
        %v884 = vmul.f32 %v880, 0.5
        %v885 = vmul.f32 %v881, 0.5
        %v886 = vmul.f32 %v882, 0.5
        %v887 = vadd.f32 %v883, 0.5
        %v888 = vadd.f32 %v884, 0.5
        %v889 = vadd.f32 %v885, 0.5
        %v890 = vadd.f32 %v886, 0.5
        %v891 = vmul.f32 %v786, %v887
        %v892 = vmul.f32 %v789, %v888
        %v893 = vmul.f32 %v794, %v889
        %v894 = vmul.f32 %v797, %v890
        %v895 = vld [vmem:[%s8] sm:$0x1]
        %s896 = scalar_lea.vmem %s9, 2
        %v897 = vld [vmem:[%s896] sm:$0x1]
        %s898 = scalar_lea.vmem [#allocation2], 64
        %v899 = vld [vmem:[%s898] sm:$0xf]
        %v900 = vld [vmem:[%s898 + $0x4] sm:$0xf]
        %v901 = vld [vmem:[%s898 + $0x8] sm:$0xf]
        %v902 = vld [vmem:[%s898 + $0xc] sm:$0xf]
        %v903 = vld [vmem:[%s898 + $0x10] sm:$0xf]
        %v904 = vld [vmem:[%s898 + $0x14] sm:$0xf]
        %v905 = vld [vmem:[%s898 + $0x18] sm:$0xf]
        %v906 = vld [vmem:[%s898 + $0x1c] sm:$0xf]
        %v907 = vld [vmem:[%s898 + $0x20] sm:$0xf]
        %v908 = vld [vmem:[%s898 + $0x24] sm:$0xf]
        %v909 = vld [vmem:[%s898 + $0x28] sm:$0xf]
        %v910 = vld [vmem:[%s898 + $0x2c] sm:$0xf]
        %v911 = vld [vmem:[%s898 + $0x30] sm:$0xf]
        %v912 = vld [vmem:[%s898 + $0x34] sm:$0xf]
        %v913 = vld [vmem:[%s898 + $0x38] sm:$0xf]
        %v914 = vld [vmem:[%s898 + $0x3c] sm:$0xf]
        %v915 = vpack.c.bf16 %v860, %v859
        %v916 = vpack.c.bf16 %v862, %v861
        %v917 = vrot.slane %v859, 7
        %v918 = vrot.slane %v860, 7
        %v919 = vrot.slane %v861, 7
        %v920 = vrot.slane %v862, 7
        %vm921 = vcmp.lt.s32.totalorder %v395, 1
        %v922 = vsel %vm921, %v919, %v920
        %v923 = vsel %vm921, %v918, %v919
        %v924 = vsel %vm921, %v917, %v918
        %v925 = vsel %vm921, %v920, %v917
        %v926 = vsel %vm477, %v925, 0.0
        %v927 = vsel %vm478, %v924, 0.0
        %v928 = vsel %vm479, %v923, 0.0
        %v929 = vsel %vm480, %v922, 0.0
        %v930 = vld [vmem:[#allocation2] sm:$0xf]
        %v931 = vld [vmem:[#allocation2 + $0x4] sm:$0xf]
        %v932 = vld [vmem:[#allocation2 + $0x8] sm:$0xf]
        %v933 = vld [vmem:[#allocation2 + $0xc] sm:$0xf]
        %v934 = vld [vmem:[#allocation2 + $0x10] sm:$0xf]
        %v935 = vld [vmem:[#allocation2 + $0x14] sm:$0xf]
        %v936 = vld [vmem:[#allocation2 + $0x18] sm:$0xf]
        %v937 = vld [vmem:[#allocation2 + $0x1c] sm:$0xf]
        %v938 = vld [vmem:[#allocation2 + $0x20] sm:$0xf]
        %v939 = vld [vmem:[#allocation2 + $0x24] sm:$0xf]
        %v940 = vld [vmem:[#allocation2 + $0x28] sm:$0xf]
        %v941 = vld [vmem:[#allocation2 + $0x2c] sm:$0xf]
        %v942 = vld [vmem:[#allocation2 + $0x30] sm:$0xf]
        %v943 = vld [vmem:[#allocation2 + $0x34] sm:$0xf]
        %v944 = vld [vmem:[#allocation2 + $0x38] sm:$0xf]
        %v945 = vld [vmem:[#allocation2 + $0x3c] sm:$0xf]
        %v946 = vpack.c.bf16 %v927, %v926
        %v947 = vpack.c.bf16 %v929, %v928
        %v964 = vunpack.c.l.b16 %v930
        %v965 = vunpack.c.l.b16 %v931
        %v966 = vunpack.c.l.b16 %v932
        %v967 = vunpack.c.l.b16 %v933
        %v968 = vunpack.c.l.b16 %v934
        %v969 = vunpack.c.l.b16 %v935
        %v970 = vunpack.c.l.b16 %v936
        %v971 = vunpack.c.l.b16 %v937
        %v972 = vunpack.c.l.b16 %v938
        %v973 = vunpack.c.l.b16 %v939
        %v974 = vunpack.c.l.b16 %v940
        %v975 = vunpack.c.l.b16 %v941
        %v976 = vunpack.c.l.b16 %v942
        %v977 = vunpack.c.l.b16 %v943
        %v978 = vunpack.c.l.b16 %v944
        %v979 = vunpack.c.l.b16 %v945
        %v980 = vpack.c.b16 %v965, %v964
        %v981 = vpack.c.b16 %v967, %v966
        %v982 = vpack.c.b16 %v969, %v968
        %v983 = vpack.c.b16 %v971, %v970
        %v984 = vpack.c.b16 %v973, %v972
        %v985 = vpack.c.b16 %v975, %v974
        %v986 = vpack.c.b16 %v977, %v976
        %v987 = vpack.c.b16 %v979, %v978
        %996 = vmatprep.subr.bf16.mxu0 0
        %997 = vmatpush1.bf16.msra.mxu0 %v980
        %998 = vmatprep.subr.bf16.mxu0 0
        %999 = vmatpush1.bf16.msra.mxu0 %v981
        %1000 = vmatprep.subr.bf16.mxu0 0
        %1001 = vmatpush1.bf16.msra.mxu0 %v982
        %1002 = vmatprep.subr.bf16.mxu0 0
        %1003 = vmatpush1.bf16.msra.mxu0 %v983
        %1004 = vmatprep.subr.bf16.mxu0 0
        %1005 = vmatpush1.bf16.msra.mxu0 %v984
        %1006 = vmatprep.subr.bf16.mxu0 0
        %1007 = vmatpush1.bf16.msra.mxu0 %v985
        %1008 = vmatprep.subr.bf16.mxu0 0
        %1009 = vmatpush1.bf16.msra.mxu0 %v986
        %1010 = vmatprep.subr.bf16.mxu0 0
        %1011 = vmatpush1.bf16.msra.mxu0 %v987
        %1012 = vmatprep.subr.bf16.mxu0 0
        %1013 = vmatpush1.bf16.msra.mxu0 0
        %1014 = vmatprep.subr.bf16.mxu0 0
        %1015 = vmatpush1.bf16.msra.mxu0 0
        %1016 = vmatprep.subr.bf16.mxu0 0
        %1017 = vmatpush1.bf16.msra.mxu0 0
        %1018 = vmatprep.subr.bf16.mxu0 0
        %1019 = vmatpush1.bf16.msra.mxu0 0
        %1020 = vmatprep.subr.bf16.mxu0 0
        %1021 = vmatpush1.bf16.msra.mxu0 0
        %1022 = vmatprep.subr.bf16.mxu0 0
        %1023 = vmatpush1.bf16.msra.mxu0 0
        %1024 = vmatprep.subr.bf16.mxu0 0
        %1025 = vmatpush1.bf16.msra.mxu0 0
        %1026 = vmatprep.subr.bf16.mxu0 0
        %1027 = vmatpush1.bf16.msra.mxu0 0
        %1028 = vmatprep.mubr.bf16.mxu0 0
        %1029 = vmatmul.mubr.bf16.gmra.mrb[0].mxu0 %v946
        %v1030 = vpop.f32.mrb[0].mxu0
        %v1031 = vadd.f32 0.0, %v1030
        %v1032 = vpop.f32.mrb[0].mxu0
        %v1033 = vpop.f32.mrb[0].mxu0
        %v1034 = vadd.f32 0.0, %v1033
        %v1035 = vpop.f32.mrb[0].mxu0
        %1036 = vmatprep.mubr.bf16.mxu0 0
        %1037 = vmatmul.mubr.bf16.gmra.mrb[0].mxu0 %v947
        %v1038 = vpop.f32.mrb[0].mxu0
        %v1039 = vadd.f32 0.0, %v1038
        %v1040 = vpop.f32.mrb[0].mxu0
        %v1041 = vpop.f32.mrb[0].mxu0
        %v1042 = vadd.f32 0.0, %v1041
        %v1043 = vpop.f32.mrb[0].mxu0
        %1044 = vdwg.mxu0
        %v1061 = vunpack.c.l.b16 %v899
        %v1062 = vunpack.c.l.b16 %v900
        %v1063 = vunpack.c.l.b16 %v901
        %v1064 = vunpack.c.l.b16 %v902
        %v1065 = vunpack.c.l.b16 %v903
        %v1066 = vunpack.c.l.b16 %v904
        %v1067 = vunpack.c.l.b16 %v905
        %v1068 = vunpack.c.l.b16 %v906
        %v1069 = vunpack.c.l.b16 %v907
        %v1070 = vunpack.c.l.b16 %v908
        %v1071 = vunpack.c.l.b16 %v909
        %v1072 = vunpack.c.l.b16 %v910
        %v1073 = vunpack.c.l.b16 %v911
        %v1074 = vunpack.c.l.b16 %v912
        %v1075 = vunpack.c.l.b16 %v913
        %v1076 = vunpack.c.l.b16 %v914
        %v1077 = vpack.c.b16 %v1062, %v1061
        %v1078 = vpack.c.b16 %v1064, %v1063
        %v1079 = vpack.c.b16 %v1066, %v1065
        %v1080 = vpack.c.b16 %v1068, %v1067
        %v1081 = vpack.c.b16 %v1070, %v1069
        %v1082 = vpack.c.b16 %v1072, %v1071
        %v1083 = vpack.c.b16 %v1074, %v1073
        %v1084 = vpack.c.b16 %v1076, %v1075
        %1093 = vmatprep.subr.bf16.mxu0 0
        %1094 = vmatpush1.bf16.msra.mxu0 %v1077
        %1095 = vmatprep.subr.bf16.mxu0 0
        %1096 = vmatpush1.bf16.msra.mxu0 %v1078
        %1097 = vmatprep.subr.bf16.mxu0 0
        %1098 = vmatpush1.bf16.msra.mxu0 %v1079
        %1099 = vmatprep.subr.bf16.mxu0 0
        %1100 = vmatpush1.bf16.msra.mxu0 %v1080
        %1101 = vmatprep.subr.bf16.mxu0 0
        %1102 = vmatpush1.bf16.msra.mxu0 %v1081
        %1103 = vmatprep.subr.bf16.mxu0 0
        %1104 = vmatpush1.bf16.msra.mxu0 %v1082
        %1105 = vmatprep.subr.bf16.mxu0 0
        %1106 = vmatpush1.bf16.msra.mxu0 %v1083
        %1107 = vmatprep.subr.bf16.mxu0 0
        %1108 = vmatpush1.bf16.msra.mxu0 %v1084
        %1109 = vmatprep.subr.bf16.mxu0 0
        %1110 = vmatpush1.bf16.msra.mxu0 0
        %1111 = vmatprep.subr.bf16.mxu0 0
        %1112 = vmatpush1.bf16.msra.mxu0 0
        %1113 = vmatprep.subr.bf16.mxu0 0
        %1114 = vmatpush1.bf16.msra.mxu0 0
        %1115 = vmatprep.subr.bf16.mxu0 0
        %1116 = vmatpush1.bf16.msra.mxu0 0
        %1117 = vmatprep.subr.bf16.mxu0 0
        %1118 = vmatpush1.bf16.msra.mxu0 0
        %1119 = vmatprep.subr.bf16.mxu0 0
        %1120 = vmatpush1.bf16.msra.mxu0 0
        %1121 = vmatprep.subr.bf16.mxu0 0
        %1122 = vmatpush1.bf16.msra.mxu0 0
        %1123 = vmatprep.subr.bf16.mxu0 0
        %1124 = vmatpush1.bf16.msra.mxu0 0
        %1125 = vmatprep.mubr.bf16.mxu0 0
        %1126 = vmatmul.mubr.bf16.gmra.mrb[0].mxu0 %v915
        %v1127 = vpop.f32.mrb[0].mxu0
        %v1128 = vadd.f32 %v1031, %v1127
        %v1129 = vpop.f32.mrb[0].mxu0
        %v1130 = vpop.f32.mrb[0].mxu0
        %v1131 = vadd.f32 %v1034, %v1130
        %v1132 = vpop.f32.mrb[0].mxu0
        %1133 = vmatprep.mubr.bf16.mxu0 0
        %1134 = vmatmul.mubr.bf16.gmra.mrb[0].mxu0 %v916
        %v1135 = vpop.f32.mrb[0].mxu0
        %v1136 = vadd.f32 %v1039, %v1135
        %v1137 = vpop.f32.mrb[0].mxu0
        %v1138 = vpop.f32.mrb[0].mxu0
        %v1139 = vadd.f32 %v1042, %v1138
        %v1140 = vpop.f32.mrb[0].mxu0
        %1141 = vdwg.mxu0
        %v1142 = vrot.slane %v859, 1
        %v1143 = vrot.slane %v860, 1
        %v1144 = vrot.slane %v861, 1
        %v1145 = vrot.slane %v862, 1
        %vm1146 = vcmp.lt.s32.totalorder %v395, 7
        %v1147 = vsel %vm1146, %v1144, %v1145
        %v1148 = vsel %vm1146, %v1143, %v1144
        %v1149 = vsel %vm1146, %v1142, %v1143
        %v1150 = vsel %vm1146, %v1145, %v1142
        %v1151 = vsel %vm493, %v1149, 0.0
        %v1152 = vsel %vm494, %v1148, 0.0
        %v1153 = vsel %vm495, %v1147, 0.0
        %v1154 = vsel %vm496, %v1150, 0.0
        %s1155 = scalar_lea.vmem [#allocation2], 128
        %v1156 = vld [vmem:[%s1155] sm:$0xf]
        %v1157 = vld [vmem:[%s1155 + $0x4] sm:$0xf]
        %v1158 = vld [vmem:[%s1155 + $0x8] sm:$0xf]
        %v1159 = vld [vmem:[%s1155 + $0xc] sm:$0xf]
        %v1160 = vld [vmem:[%s1155 + $0x10] sm:$0xf]
        %v1161 = vld [vmem:[%s1155 + $0x14] sm:$0xf]
        %v1162 = vld [vmem:[%s1155 + $0x18] sm:$0xf]
        %v1163 = vld [vmem:[%s1155 + $0x1c] sm:$0xf]
        %v1164 = vld [vmem:[%s1155 + $0x20] sm:$0xf]
        %v1165 = vld [vmem:[%s1155 + $0x24] sm:$0xf]
        %v1166 = vld [vmem:[%s1155 + $0x28] sm:$0xf]
        %v1167 = vld [vmem:[%s1155 + $0x2c] sm:$0xf]
        %v1168 = vld [vmem:[%s1155 + $0x30] sm:$0xf]
        %v1169 = vld [vmem:[%s1155 + $0x34] sm:$0xf]
        %v1170 = vld [vmem:[%s1155 + $0x38] sm:$0xf]
        %v1171 = vld [vmem:[%s1155 + $0x3c] sm:$0xf]
        %v1172 = vpack.c.bf16 %v1152, %v1151
        %v1173 = vpack.c.bf16 %v1154, %v1153
        %v1190 = vunpack.c.l.b16 %v1156
        %v1191 = vunpack.c.l.b16 %v1157
        %v1192 = vunpack.c.l.b16 %v1158
        %v1193 = vunpack.c.l.b16 %v1159
        %v1194 = vunpack.c.l.b16 %v1160
        %v1195 = vunpack.c.l.b16 %v1161
        %v1196 = vunpack.c.l.b16 %v1162
        %v1197 = vunpack.c.l.b16 %v1163
        %v1198 = vunpack.c.l.b16 %v1164
        %v1199 = vunpack.c.l.b16 %v1165
        %v1200 = vunpack.c.l.b16 %v1166
        %v1201 = vunpack.c.l.b16 %v1167
        %v1202 = vunpack.c.l.b16 %v1168
        %v1203 = vunpack.c.l.b16 %v1169
        %v1204 = vunpack.c.l.b16 %v1170
        %v1205 = vunpack.c.l.b16 %v1171
        %v1206 = vpack.c.b16 %v1191, %v1190
        %v1207 = vpack.c.b16 %v1193, %v1192
        %v1208 = vpack.c.b16 %v1195, %v1194
        %v1209 = vpack.c.b16 %v1197, %v1196
        %v1210 = vpack.c.b16 %v1199, %v1198
        %v1211 = vpack.c.b16 %v1201, %v1200
        %v1212 = vpack.c.b16 %v1203, %v1202
        %v1213 = vpack.c.b16 %v1205, %v1204
        %1222 = vmatprep.subr.bf16.mxu0 0
        %1223 = vmatpush1.bf16.msra.mxu0 %v1206
        %1224 = vmatprep.subr.bf16.mxu0 0
        %1225 = vmatpush1.bf16.msra.mxu0 %v1207
        %1226 = vmatprep.subr.bf16.mxu0 0
        %1227 = vmatpush1.bf16.msra.mxu0 %v1208
        %1228 = vmatprep.subr.bf16.mxu0 0
        %1229 = vmatpush1.bf16.msra.mxu0 %v1209
        %1230 = vmatprep.subr.bf16.mxu0 0
        %1231 = vmatpush1.bf16.msra.mxu0 %v1210
        %1232 = vmatprep.subr.bf16.mxu0 0
        %1233 = vmatpush1.bf16.msra.mxu0 %v1211
        %1234 = vmatprep.subr.bf16.mxu0 0
        %1235 = vmatpush1.bf16.msra.mxu0 %v1212
        %1236 = vmatprep.subr.bf16.mxu0 0
        %1237 = vmatpush1.bf16.msra.mxu0 %v1213
        %1238 = vmatprep.subr.bf16.mxu0 0
        %1239 = vmatpush1.bf16.msra.mxu0 0
        %1240 = vmatprep.subr.bf16.mxu0 0
        %1241 = vmatpush1.bf16.msra.mxu0 0
        %1242 = vmatprep.subr.bf16.mxu0 0
        %1243 = vmatpush1.bf16.msra.mxu0 0
        %1244 = vmatprep.subr.bf16.mxu0 0
        %1245 = vmatpush1.bf16.msra.mxu0 0
        %1246 = vmatprep.subr.bf16.mxu0 0
        %1247 = vmatpush1.bf16.msra.mxu0 0
        %1248 = vmatprep.subr.bf16.mxu0 0
        %1249 = vmatpush1.bf16.msra.mxu0 0
        %1250 = vmatprep.subr.bf16.mxu0 0
        %1251 = vmatpush1.bf16.msra.mxu0 0
        %1252 = vmatprep.subr.bf16.mxu0 0
        %1253 = vmatpush1.bf16.msra.mxu0 0
        %1254 = vmatprep.mubr.bf16.mxu0 0
        %1255 = vmatmul.mubr.bf16.gmra.mrb[0].mxu0 %v1172
        %v1256 = vpop.f32.mrb[0].mxu0
        %v1257 = vadd.f32 0.0, %v1256
        %v1258 = vpop.f32.mrb[0].mxu0
        %v1259 = vpop.f32.mrb[0].mxu0
        %v1260 = vadd.f32 0.0, %v1259
        %v1261 = vpop.f32.mrb[0].mxu0
        %1262 = vmatprep.mubr.bf16.mxu0 0
        %1263 = vmatmul.mubr.bf16.gmra.mrb[0].mxu0 %v1173
        %v1264 = vpop.f32.mrb[0].mxu0
        %v1265 = vadd.f32 0.0, %v1264
        %v1266 = vpop.f32.mrb[0].mxu0
        %v1267 = vpop.f32.mrb[0].mxu0
        %v1268 = vadd.f32 0.0, %v1267
        %v1269 = vpop.f32.mrb[0].mxu0
        %1270 = vdwg.mxu0
        %v1271 = vadd.f32 %v1128, %v1257
        %v1272 = vadd.f32 %v1131, %v1260
        %v1273 = vadd.f32 %v1136, %v1265
        %v1274 = vadd.f32 %v1139, %v1268
        %v1276 = vlaneseq
        %v1277 = vshrl.u32 %v1276, 7
        %v1278 = vsub.s32 0, %v1277
        %v1279 = vrot.slane %v895, %v1278
        %v1281 = vadd.f32 %v1271, %v1279
        %v1282 = vadd.f32 %v1272, %v1279
        %v1283 = vadd.f32 %v1273, %v1279
        %v1284 = vadd.f32 %v1274, %v1279
        %v1286 = vlaneseq
        %v1287 = vshrl.u32 %v1286, 7
        %v1288 = vsub.s32 0, %v1287
        %v1289 = vrot.slane %v897, %v1288
        %v1291 = vmul.f32 %v1281, %v1289
        %v1292 = vmul.f32 %v1282, %v1289
        %v1293 = vmul.f32 %v1283, %v1289
        %v1294 = vmul.f32 %v1284, %v1289
        %v1295 = vmul.f32 %v1291, 0.5
        %v1296 = vmul.f32 %v1292, 0.5
        %v1297 = vmul.f32 %v1293, 0.5
        %v1298 = vmul.f32 %v1294, 0.5
        %v1299 = vtanh.pop %v1295
        %v1300 = vtanh.pop %v1296
        %v1301 = vtanh.pop %v1297
        %v1302 = vtanh.pop %v1298
        %v1303 = vmul.f32 %v1299, 0.5
        %v1304 = vmul.f32 %v1300, 0.5
        %v1305 = vmul.f32 %v1301, 0.5
        %v1306 = vmul.f32 %v1302, 0.5
        %v1307 = vadd.f32 %v1303, 0.5
        %v1308 = vadd.f32 %v1304, 0.5
        %v1309 = vadd.f32 %v1305, 0.5
        %v1310 = vadd.f32 %v1306, 0.5
        %v1311 = vmul.f32 %v1281, %v1307
        %v1312 = vmul.f32 %v1282, %v1308
        %v1313 = vmul.f32 %v1283, %v1309
        %v1314 = vmul.f32 %v1284, %v1310
        %s1315 = scalar_lea.vmem %s8, 1
        %v1316 = vld [vmem:[%s1315] sm:$0x1]
        %s1317 = scalar_lea.vmem %s9, 4
        %v1318 = vld [vmem:[%s1317] sm:$0x1]
        %s1319 = scalar_lea.vmem %s4, 128
        %v1320 = vld [vmem:[%s1319] sm:$0xf]
        %v1321 = vld [vmem:[%s1319 + $0x4] sm:$0xf]
        %v1322 = vld [vmem:[%s1319 + $0x8] sm:$0xf]
        %v1323 = vld [vmem:[%s1319 + $0xc] sm:$0xf]
        %v1324 = vld [vmem:[%s1319 + $0x10] sm:$0xf]
        %v1325 = vld [vmem:[%s1319 + $0x14] sm:$0xf]
        %v1326 = vld [vmem:[%s1319 + $0x18] sm:$0xf]
        %v1327 = vld [vmem:[%s1319 + $0x1c] sm:$0xf]
        %v1328 = vld [vmem:[%s1319 + $0x20] sm:$0xf]
        %v1329 = vld [vmem:[%s1319 + $0x24] sm:$0xf]
        %v1330 = vld [vmem:[%s1319 + $0x28] sm:$0xf]
        %v1331 = vld [vmem:[%s1319 + $0x2c] sm:$0xf]
        %v1332 = vld [vmem:[%s1319 + $0x30] sm:$0xf]
        %v1333 = vld [vmem:[%s1319 + $0x34] sm:$0xf]
        %v1334 = vld [vmem:[%s1319 + $0x38] sm:$0xf]
        %v1335 = vld [vmem:[%s1319 + $0x3c] sm:$0xf]
        %v1336 = vpack.c.bf16 %v892, %v891
        %v1337 = vpack.c.bf16 %v894, %v893
        %v1338 = vrot.slane %v891, 6
        %v1339 = vrot.slane %v892, 6
        %v1340 = vrot.slane %v893, 6
        %v1341 = vrot.slane %v894, 6
        %vm1342 = vcmp.lt.s32.totalorder %v395, 2
        %v1343 = vsel %vm1342, %v1340, %v1341
        %v1344 = vsel %vm1342, %v1339, %v1340
        %v1345 = vsel %vm1342, %v1338, %v1339
        %v1346 = vsel %vm1342, %v1341, %v1338
        %v1347 = vsel %vm461, %v1346, 0.0
        %v1348 = vsel %vm462, %v1345, 0.0
        %v1349 = vsel %vm463, %v1344, 0.0
        %v1350 = vsel %vm464, %v1343, 0.0
        %v1351 = vld [vmem:[%s4] sm:$0xf]
        %v1352 = vld [vmem:[%s4 + $0x4] sm:$0xf]
        %v1353 = vld [vmem:[%s4 + $0x8] sm:$0xf]
        %v1354 = vld [vmem:[%s4 + $0xc] sm:$0xf]
        %v1355 = vld [vmem:[%s4 + $0x10] sm:$0xf]
        %v1356 = vld [vmem:[%s4 + $0x14] sm:$0xf]
        %v1357 = vld [vmem:[%s4 + $0x18] sm:$0xf]
        %v1358 = vld [vmem:[%s4 + $0x1c] sm:$0xf]
        %v1359 = vld [vmem:[%s4 + $0x20] sm:$0xf]
        %v1360 = vld [vmem:[%s4 + $0x24] sm:$0xf]
        %v1361 = vld [vmem:[%s4 + $0x28] sm:$0xf]
        %v1362 = vld [vmem:[%s4 + $0x2c] sm:$0xf]
        %v1363 = vld [vmem:[%s4 + $0x30] sm:$0xf]
        %v1364 = vld [vmem:[%s4 + $0x34] sm:$0xf]
        %v1365 = vld [vmem:[%s4 + $0x38] sm:$0xf]
        %v1366 = vld [vmem:[%s4 + $0x3c] sm:$0xf]
        %v1367 = vpack.c.bf16 %v1348, %v1347
        %v1368 = vpack.c.bf16 %v1350, %v1349
        %v1385 = vunpack.c.l.b16 %v1351
        %v1386 = vunpack.c.l.b16 %v1352
        %v1387 = vunpack.c.l.b16 %v1353
        %v1388 = vunpack.c.l.b16 %v1354
        %v1389 = vunpack.c.l.b16 %v1355
        %v1390 = vunpack.c.l.b16 %v1356
        %v1391 = vunpack.c.l.b16 %v1357
        %v1392 = vunpack.c.l.b16 %v1358
        %v1393 = vunpack.c.l.b16 %v1359
        %v1394 = vunpack.c.l.b16 %v1360
        %v1395 = vunpack.c.l.b16 %v1361
        %v1396 = vunpack.c.l.b16 %v1362
        %v1397 = vunpack.c.l.b16 %v1363
        %v1398 = vunpack.c.l.b16 %v1364
        %v1399 = vunpack.c.l.b16 %v1365
        %v1400 = vunpack.c.l.b16 %v1366
        %v1401 = vpack.c.b16 %v1386, %v1385
        %v1402 = vpack.c.b16 %v1388, %v1387
        %v1403 = vpack.c.b16 %v1390, %v1389
        %v1404 = vpack.c.b16 %v1392, %v1391
        %v1405 = vpack.c.b16 %v1394, %v1393
        %v1406 = vpack.c.b16 %v1396, %v1395
        %v1407 = vpack.c.b16 %v1398, %v1397
        %v1408 = vpack.c.b16 %v1400, %v1399
        %1417 = vmatprep.subr.bf16.mxu0 0
        %1418 = vmatpush1.bf16.msra.mxu0 %v1401
        %1419 = vmatprep.subr.bf16.mxu0 0
        %1420 = vmatpush1.bf16.msra.mxu0 %v1402
        %1421 = vmatprep.subr.bf16.mxu0 0
        %1422 = vmatpush1.bf16.msra.mxu0 %v1403
        %1423 = vmatprep.subr.bf16.mxu0 0
        %1424 = vmatpush1.bf16.msra.mxu0 %v1404
        %1425 = vmatprep.subr.bf16.mxu0 0
        %1426 = vmatpush1.bf16.msra.mxu0 %v1405
        %1427 = vmatprep.subr.bf16.mxu0 0
        %1428 = vmatpush1.bf16.msra.mxu0 %v1406
        %1429 = vmatprep.subr.bf16.mxu0 0
        %1430 = vmatpush1.bf16.msra.mxu0 %v1407
        %1431 = vmatprep.subr.bf16.mxu0 0
        %1432 = vmatpush1.bf16.msra.mxu0 %v1408
        %1433 = vmatprep.subr.bf16.mxu0 0
        %1434 = vmatpush1.bf16.msra.mxu0 0
        %1435 = vmatprep.subr.bf16.mxu0 0
        %1436 = vmatpush1.bf16.msra.mxu0 0
        %1437 = vmatprep.subr.bf16.mxu0 0
        %1438 = vmatpush1.bf16.msra.mxu0 0
        %1439 = vmatprep.subr.bf16.mxu0 0
        %1440 = vmatpush1.bf16.msra.mxu0 0
        %1441 = vmatprep.subr.bf16.mxu0 0
        %1442 = vmatpush1.bf16.msra.mxu0 0
        %1443 = vmatprep.subr.bf16.mxu0 0
        %1444 = vmatpush1.bf16.msra.mxu0 0
        %1445 = vmatprep.subr.bf16.mxu0 0
        %1446 = vmatpush1.bf16.msra.mxu0 0
        %1447 = vmatprep.subr.bf16.mxu0 0
        %1448 = vmatpush1.bf16.msra.mxu0 0
        %1449 = vmatprep.mubr.bf16.mxu0 0
        %1450 = vmatmul.mubr.bf16.gmra.mrb[0].mxu0 %v1367
        %v1451 = vpop.f32.mrb[0].mxu0
        %v1452 = vadd.f32 0.0, %v1451
        %v1453 = vpop.f32.mrb[0].mxu0
        %v1454 = vpop.f32.mrb[0].mxu0
        %v1455 = vadd.f32 0.0, %v1454
        %v1456 = vpop.f32.mrb[0].mxu0
        %1457 = vmatprep.mubr.bf16.mxu0 0
        %1458 = vmatmul.mubr.bf16.gmra.mrb[0].mxu0 %v1368
        %v1459 = vpop.f32.mrb[0].mxu0
        %v1460 = vadd.f32 0.0, %v1459
        %v1461 = vpop.f32.mrb[0].mxu0
        %v1462 = vpop.f32.mrb[0].mxu0
        %v1463 = vadd.f32 0.0, %v1462
        %v1464 = vpop.f32.mrb[0].mxu0
        %1465 = vdwg.mxu0
        %v1482 = vunpack.c.l.b16 %v1320
        %v1483 = vunpack.c.l.b16 %v1321
        %v1484 = vunpack.c.l.b16 %v1322
        %v1485 = vunpack.c.l.b16 %v1323
        %v1486 = vunpack.c.l.b16 %v1324
        %v1487 = vunpack.c.l.b16 %v1325
        %v1488 = vunpack.c.l.b16 %v1326
        %v1489 = vunpack.c.l.b16 %v1327
        %v1490 = vunpack.c.l.b16 %v1328
        %v1491 = vunpack.c.l.b16 %v1329
        %v1492 = vunpack.c.l.b16 %v1330
        %v1493 = vunpack.c.l.b16 %v1331
        %v1494 = vunpack.c.l.b16 %v1332
        %v1495 = vunpack.c.l.b16 %v1333
        %v1496 = vunpack.c.l.b16 %v1334
        %v1497 = vunpack.c.l.b16 %v1335
        %v1498 = vpack.c.b16 %v1483, %v1482
        %v1499 = vpack.c.b16 %v1485, %v1484
        %v1500 = vpack.c.b16 %v1487, %v1486
        %v1501 = vpack.c.b16 %v1489, %v1488
        %v1502 = vpack.c.b16 %v1491, %v1490
        %v1503 = vpack.c.b16 %v1493, %v1492
        %v1504 = vpack.c.b16 %v1495, %v1494
        %v1505 = vpack.c.b16 %v1497, %v1496
        %1514 = vmatprep.subr.bf16.mxu0 0
        %1515 = vmatpush1.bf16.msra.mxu0 %v1498
        %1516 = vmatprep.subr.bf16.mxu0 0
        %1517 = vmatpush1.bf16.msra.mxu0 %v1499
        %1518 = vmatprep.subr.bf16.mxu0 0
        %1519 = vmatpush1.bf16.msra.mxu0 %v1500
        %1520 = vmatprep.subr.bf16.mxu0 0
        %1521 = vmatpush1.bf16.msra.mxu0 %v1501
        %1522 = vmatprep.subr.bf16.mxu0 0
        %1523 = vmatpush1.bf16.msra.mxu0 %v1502
        %1524 = vmatprep.subr.bf16.mxu0 0
        %1525 = vmatpush1.bf16.msra.mxu0 %v1503
        %1526 = vmatprep.subr.bf16.mxu0 0
        %1527 = vmatpush1.bf16.msra.mxu0 %v1504
        %1528 = vmatprep.subr.bf16.mxu0 0
        %1529 = vmatpush1.bf16.msra.mxu0 %v1505
        %1530 = vmatprep.subr.bf16.mxu0 0
        %1531 = vmatpush1.bf16.msra.mxu0 0
        %1532 = vmatprep.subr.bf16.mxu0 0
        %1533 = vmatpush1.bf16.msra.mxu0 0
        %1534 = vmatprep.subr.bf16.mxu0 0
        %1535 = vmatpush1.bf16.msra.mxu0 0
        %1536 = vmatprep.subr.bf16.mxu0 0
        %1537 = vmatpush1.bf16.msra.mxu0 0
        %1538 = vmatprep.subr.bf16.mxu0 0
        %1539 = vmatpush1.bf16.msra.mxu0 0
        %1540 = vmatprep.subr.bf16.mxu0 0
        %1541 = vmatpush1.bf16.msra.mxu0 0
        %1542 = vmatprep.subr.bf16.mxu0 0
        %1543 = vmatpush1.bf16.msra.mxu0 0
        %1544 = vmatprep.subr.bf16.mxu0 0
        %1545 = vmatpush1.bf16.msra.mxu0 0
        %1546 = vmatprep.mubr.bf16.mxu0 0
        %1547 = vmatmul.mubr.bf16.gmra.mrb[0].mxu0 %v1336
        %v1548 = vpop.f32.mrb[0].mxu0
        %v1549 = vadd.f32 %v1452, %v1548
        %v1550 = vpop.f32.mrb[0].mxu0
        %v1551 = vpop.f32.mrb[0].mxu0
        %v1552 = vadd.f32 %v1455, %v1551
        %v1553 = vpop.f32.mrb[0].mxu0
        %1554 = vmatprep.mubr.bf16.mxu0 0
        %1555 = vmatmul.mubr.bf16.gmra.mrb[0].mxu0 %v1337
        %v1556 = vpop.f32.mrb[0].mxu0
        %v1557 = vadd.f32 %v1460, %v1556
        %v1558 = vpop.f32.mrb[0].mxu0
        %v1559 = vpop.f32.mrb[0].mxu0
        %v1560 = vadd.f32 %v1463, %v1559
        %v1561 = vpop.f32.mrb[0].mxu0
        %1562 = vdwg.mxu0
        %v1563 = vrot.slane %v891, 7
        %v1564 = vrot.slane %v892, 7
        %v1565 = vrot.slane %v893, 7
        %v1566 = vrot.slane %v894, 7
        %v1567 = vsel %vm921, %v1565, %v1566
        %v1568 = vsel %vm921, %v1564, %v1565
        %v1569 = vsel %vm921, %v1563, %v1564
        %v1570 = vsel %vm921, %v1566, %v1563
        %v1571 = vsel %vm477, %v1570, 0.0
        %v1572 = vsel %vm478, %v1569, 0.0
        %v1573 = vsel %vm479, %v1568, 0.0
        %v1574 = vsel %vm480, %v1567, 0.0
        %s1575 = scalar_lea.vmem %s4, 64
        %v1576 = vld [vmem:[%s1575] sm:$0xf]
        %v1577 = vld [vmem:[%s1575 + $0x4] sm:$0xf]
        %v1578 = vld [vmem:[%s1575 + $0x8] sm:$0xf]
        %v1579 = vld [vmem:[%s1575 + $0xc] sm:$0xf]
        %v1580 = vld [vmem:[%s1575 + $0x10] sm:$0xf]
        %v1581 = vld [vmem:[%s1575 + $0x14] sm:$0xf]
        %v1582 = vld [vmem:[%s1575 + $0x18] sm:$0xf]
        %v1583 = vld [vmem:[%s1575 + $0x1c] sm:$0xf]
        %v1584 = vld [vmem:[%s1575 + $0x20] sm:$0xf]
        %v1585 = vld [vmem:[%s1575 + $0x24] sm:$0xf]
        %v1586 = vld [vmem:[%s1575 + $0x28] sm:$0xf]
        %v1587 = vld [vmem:[%s1575 + $0x2c] sm:$0xf]
        %v1588 = vld [vmem:[%s1575 + $0x30] sm:$0xf]
        %v1589 = vld [vmem:[%s1575 + $0x34] sm:$0xf]
        %v1590 = vld [vmem:[%s1575 + $0x38] sm:$0xf]
        %v1591 = vld [vmem:[%s1575 + $0x3c] sm:$0xf]
        %v1592 = vpack.c.bf16 %v1572, %v1571
        %v1593 = vpack.c.bf16 %v1574, %v1573
        %v1610 = vunpack.c.l.b16 %v1576
        %v1611 = vunpack.c.l.b16 %v1577
        %v1612 = vunpack.c.l.b16 %v1578
        %v1613 = vunpack.c.l.b16 %v1579
        %v1614 = vunpack.c.l.b16 %v1580
        %v1615 = vunpack.c.l.b16 %v1581
        %v1616 = vunpack.c.l.b16 %v1582
        %v1617 = vunpack.c.l.b16 %v1583
        %v1618 = vunpack.c.l.b16 %v1584
        %v1619 = vunpack.c.l.b16 %v1585
        %v1620 = vunpack.c.l.b16 %v1586
        %v1621 = vunpack.c.l.b16 %v1587
        %v1622 = vunpack.c.l.b16 %v1588
        %v1623 = vunpack.c.l.b16 %v1589
        %v1624 = vunpack.c.l.b16 %v1590
        %v1625 = vunpack.c.l.b16 %v1591
        %v1626 = vpack.c.b16 %v1611, %v1610
        %v1627 = vpack.c.b16 %v1613, %v1612
        %v1628 = vpack.c.b16 %v1615, %v1614
        %v1629 = vpack.c.b16 %v1617, %v1616
        %v1630 = vpack.c.b16 %v1619, %v1618
        %v1631 = vpack.c.b16 %v1621, %v1620
        %v1632 = vpack.c.b16 %v1623, %v1622
        %v1633 = vpack.c.b16 %v1625, %v1624
        %1642 = vmatprep.subr.bf16.mxu0 0
        %1643 = vmatpush1.bf16.msra.mxu0 %v1626
        %1644 = vmatprep.subr.bf16.mxu0 0
        %1645 = vmatpush1.bf16.msra.mxu0 %v1627
        %1646 = vmatprep.subr.bf16.mxu0 0
        %1647 = vmatpush1.bf16.msra.mxu0 %v1628
        %1648 = vmatprep.subr.bf16.mxu0 0
        %1649 = vmatpush1.bf16.msra.mxu0 %v1629
        %1650 = vmatprep.subr.bf16.mxu0 0
        %1651 = vmatpush1.bf16.msra.mxu0 %v1630
        %1652 = vmatprep.subr.bf16.mxu0 0
        %1653 = vmatpush1.bf16.msra.mxu0 %v1631
        %1654 = vmatprep.subr.bf16.mxu0 0
        %1655 = vmatpush1.bf16.msra.mxu0 %v1632
        %1656 = vmatprep.subr.bf16.mxu0 0
        %1657 = vmatpush1.bf16.msra.mxu0 %v1633
        %1658 = vmatprep.subr.bf16.mxu0 0
        %1659 = vmatpush1.bf16.msra.mxu0 0
        %1660 = vmatprep.subr.bf16.mxu0 0
        %1661 = vmatpush1.bf16.msra.mxu0 0
        %1662 = vmatprep.subr.bf16.mxu0 0
        %1663 = vmatpush1.bf16.msra.mxu0 0
        %1664 = vmatprep.subr.bf16.mxu0 0
        %1665 = vmatpush1.bf16.msra.mxu0 0
        %1666 = vmatprep.subr.bf16.mxu0 0
        %1667 = vmatpush1.bf16.msra.mxu0 0
        %1668 = vmatprep.subr.bf16.mxu0 0
        %1669 = vmatpush1.bf16.msra.mxu0 0
        %1670 = vmatprep.subr.bf16.mxu0 0
        %1671 = vmatpush1.bf16.msra.mxu0 0
        %1672 = vmatprep.subr.bf16.mxu0 0
        %1673 = vmatpush1.bf16.msra.mxu0 0
        %1674 = vmatprep.mubr.bf16.mxu0 0
        %1675 = vmatmul.mubr.bf16.gmra.mrb[0].mxu0 %v1592
        %v1676 = vpop.f32.mrb[0].mxu0
        %v1677 = vadd.f32 0.0, %v1676
        %v1678 = vpop.f32.mrb[0].mxu0
        %v1679 = vpop.f32.mrb[0].mxu0
        %v1680 = vadd.f32 0.0, %v1679
        %v1681 = vpop.f32.mrb[0].mxu0
        %1682 = vmatprep.mubr.bf16.mxu0 0
        %1683 = vmatmul.mubr.bf16.gmra.mrb[0].mxu0 %v1593
        %v1684 = vpop.f32.mrb[0].mxu0
        %v1685 = vadd.f32 0.0, %v1684
        %v1686 = vpop.f32.mrb[0].mxu0
        %v1687 = vpop.f32.mrb[0].mxu0
        %v1688 = vadd.f32 0.0, %v1687
        %v1689 = vpop.f32.mrb[0].mxu0
        %1690 = vdwg.mxu0
        %v1691 = vadd.f32 %v1549, %v1677
        %v1692 = vadd.f32 %v1552, %v1680
        %v1693 = vadd.f32 %v1557, %v1685
        %v1694 = vadd.f32 %v1560, %v1688
        %v1695 = vrot.slane %v891, 1
        %v1696 = vrot.slane %v892, 1
        %v1697 = vrot.slane %v893, 1
        %v1698 = vrot.slane %v894, 1
        %v1699 = vsel %vm1146, %v1697, %v1698
        %v1700 = vsel %vm1146, %v1696, %v1697
        %v1701 = vsel %vm1146, %v1695, %v1696
        %v1702 = vsel %vm1146, %v1698, %v1695
        %v1703 = vsel %vm493, %v1701, 0.0
        %v1704 = vsel %vm494, %v1700, 0.0
        %v1705 = vsel %vm495, %v1699, 0.0
        %v1706 = vsel %vm496, %v1702, 0.0
        %s1707 = scalar_lea.vmem %s4, 192
        %v1708 = vld [vmem:[%s1707] sm:$0xf]
        %v1709 = vld [vmem:[%s1707 + $0x4] sm:$0xf]
        %v1710 = vld [vmem:[%s1707 + $0x8] sm:$0xf]
        %v1711 = vld [vmem:[%s1707 + $0xc] sm:$0xf]
        %v1712 = vld [vmem:[%s1707 + $0x10] sm:$0xf]
        %v1713 = vld [vmem:[%s1707 + $0x14] sm:$0xf]
        %v1714 = vld [vmem:[%s1707 + $0x18] sm:$0xf]
        %v1715 = vld [vmem:[%s1707 + $0x1c] sm:$0xf]
        %v1716 = vld [vmem:[%s1707 + $0x20] sm:$0xf]
        %v1717 = vld [vmem:[%s1707 + $0x24] sm:$0xf]
        %v1718 = vld [vmem:[%s1707 + $0x28] sm:$0xf]
        %v1719 = vld [vmem:[%s1707 + $0x2c] sm:$0xf]
        %v1720 = vld [vmem:[%s1707 + $0x30] sm:$0xf]
        %v1721 = vld [vmem:[%s1707 + $0x34] sm:$0xf]
        %v1722 = vld [vmem:[%s1707 + $0x38] sm:$0xf]
        %v1723 = vld [vmem:[%s1707 + $0x3c] sm:$0xf]
        %v1724 = vpack.c.bf16 %v1704, %v1703
        %v1725 = vpack.c.bf16 %v1706, %v1705
        %v1742 = vunpack.c.l.b16 %v1708
        %v1743 = vunpack.c.l.b16 %v1709
        %v1744 = vunpack.c.l.b16 %v1710
        %v1745 = vunpack.c.l.b16 %v1711
        %v1746 = vunpack.c.l.b16 %v1712
        %v1747 = vunpack.c.l.b16 %v1713
        %v1748 = vunpack.c.l.b16 %v1714
        %v1749 = vunpack.c.l.b16 %v1715
        %v1750 = vunpack.c.l.b16 %v1716
        %v1751 = vunpack.c.l.b16 %v1717
        %v1752 = vunpack.c.l.b16 %v1718
        %v1753 = vunpack.c.l.b16 %v1719
        %v1754 = vunpack.c.l.b16 %v1720
        %v1755 = vunpack.c.l.b16 %v1721
        %v1756 = vunpack.c.l.b16 %v1722
        %v1757 = vunpack.c.l.b16 %v1723
        %v1758 = vpack.c.b16 %v1743, %v1742
        %v1759 = vpack.c.b16 %v1745, %v1744
        %v1760 = vpack.c.b16 %v1747, %v1746
        %v1761 = vpack.c.b16 %v1749, %v1748
        %v1762 = vpack.c.b16 %v1751, %v1750
        %v1763 = vpack.c.b16 %v1753, %v1752
        %v1764 = vpack.c.b16 %v1755, %v1754
        %v1765 = vpack.c.b16 %v1757, %v1756
        %1774 = vmatprep.subr.bf16.mxu0 0
        %1775 = vmatpush1.bf16.msra.mxu0 %v1758
        %1776 = vmatprep.subr.bf16.mxu0 0
        %1777 = vmatpush1.bf16.msra.mxu0 %v1759
        %1778 = vmatprep.subr.bf16.mxu0 0
        %1779 = vmatpush1.bf16.msra.mxu0 %v1760
        %1780 = vmatprep.subr.bf16.mxu0 0
        %1781 = vmatpush1.bf16.msra.mxu0 %v1761
        %1782 = vmatprep.subr.bf16.mxu0 0
        %1783 = vmatpush1.bf16.msra.mxu0 %v1762
        %1784 = vmatprep.subr.bf16.mxu0 0
        %1785 = vmatpush1.bf16.msra.mxu0 %v1763
        %1786 = vmatprep.subr.bf16.mxu0 0
        %1787 = vmatpush1.bf16.msra.mxu0 %v1764
        %1788 = vmatprep.subr.bf16.mxu0 0
        %1789 = vmatpush1.bf16.msra.mxu0 %v1765
        %1790 = vmatprep.subr.bf16.mxu0 0
        %1791 = vmatpush1.bf16.msra.mxu0 0
        %1792 = vmatprep.subr.bf16.mxu0 0
        %1793 = vmatpush1.bf16.msra.mxu0 0
        %1794 = vmatprep.subr.bf16.mxu0 0
        %1795 = vmatpush1.bf16.msra.mxu0 0
        %1796 = vmatprep.subr.bf16.mxu0 0
        %1797 = vmatpush1.bf16.msra.mxu0 0
        %1798 = vmatprep.subr.bf16.mxu0 0
        %1799 = vmatpush1.bf16.msra.mxu0 0
        %1800 = vmatprep.subr.bf16.mxu0 0
        %1801 = vmatpush1.bf16.msra.mxu0 0
        %1802 = vmatprep.subr.bf16.mxu0 0
        %1803 = vmatpush1.bf16.msra.mxu0 0
        %1804 = vmatprep.subr.bf16.mxu0 0
        %1805 = vmatpush1.bf16.msra.mxu0 0
        %1806 = vmatprep.mubr.bf16.mxu0 0
        %1807 = vmatmul.mubr.bf16.gmra.mrb[0].mxu0 %v1724
        %v1808 = vpop.f32.mrb[0].mxu0
        %v1809 = vadd.f32 0.0, %v1808
        %v1810 = vpop.f32.mrb[0].mxu0
        %v1811 = vpop.f32.mrb[0].mxu0
        %v1812 = vadd.f32 0.0, %v1811
        %v1813 = vpop.f32.mrb[0].mxu0
        %1814 = vmatprep.mubr.bf16.mxu0 0
        %1815 = vmatmul.mubr.bf16.gmra.mrb[0].mxu0 %v1725
        %v1816 = vpop.f32.mrb[0].mxu0
        %v1817 = vadd.f32 0.0, %v1816
        %v1818 = vpop.f32.mrb[0].mxu0
        %v1819 = vpop.f32.mrb[0].mxu0
        %v1820 = vadd.f32 0.0, %v1819
        %v1821 = vpop.f32.mrb[0].mxu0
        %1822 = vdwg.mxu0
        %v1823 = vadd.f32 %v1691, %v1809
        %v1824 = vadd.f32 %v1692, %v1812
        %v1825 = vadd.f32 %v1693, %v1817
        %v1826 = vadd.f32 %v1694, %v1820
        %v1827 = vrot.slane %v891, 2
        %v1828 = vrot.slane %v892, 2
        %v1829 = vrot.slane %v893, 2
        %v1830 = vrot.slane %v894, 2
        %vm1831 = vcmp.lt.s32.totalorder %v395, 6
        %v1832 = vsel %vm1831, %v1829, %v1830
        %v1833 = vsel %vm1831, %v1828, %v1829
        %v1834 = vsel %vm1831, %v1827, %v1828
        %v1835 = vsel %vm1831, %v1830, %v1827
        %v1836 = vsel %vm509, %v1834, 0.0
        %v1837 = vsel %vm510, %v1833, 0.0
        %v1838 = vsel %vm511, %v1832, 0.0
        %v1839 = vsel %vm512, %v1835, 0.0
        %s1840 = scalar_lea.vmem %s4, 256
        %v1841 = vld [vmem:[%s1840] sm:$0xf]
        %v1842 = vld [vmem:[%s1840 + $0x4] sm:$0xf]
        %v1843 = vld [vmem:[%s1840 + $0x8] sm:$0xf]
        %v1844 = vld [vmem:[%s1840 + $0xc] sm:$0xf]
        %v1845 = vld [vmem:[%s1840 + $0x10] sm:$0xf]
        %v1846 = vld [vmem:[%s1840 + $0x14] sm:$0xf]
        %v1847 = vld [vmem:[%s1840 + $0x18] sm:$0xf]
        %v1848 = vld [vmem:[%s1840 + $0x1c] sm:$0xf]
        %v1849 = vld [vmem:[%s1840 + $0x20] sm:$0xf]
        %v1850 = vld [vmem:[%s1840 + $0x24] sm:$0xf]
        %v1851 = vld [vmem:[%s1840 + $0x28] sm:$0xf]
        %v1852 = vld [vmem:[%s1840 + $0x2c] sm:$0xf]
        %v1853 = vld [vmem:[%s1840 + $0x30] sm:$0xf]
        %v1854 = vld [vmem:[%s1840 + $0x34] sm:$0xf]
        %v1855 = vld [vmem:[%s1840 + $0x38] sm:$0xf]
        %v1856 = vld [vmem:[%s1840 + $0x3c] sm:$0xf]
        %v1857 = vpack.c.bf16 %v1837, %v1836
        %v1858 = vpack.c.bf16 %v1839, %v1838
        %v1875 = vunpack.c.l.b16 %v1841
        %v1876 = vunpack.c.l.b16 %v1842
        %v1877 = vunpack.c.l.b16 %v1843
        %v1878 = vunpack.c.l.b16 %v1844
        %v1879 = vunpack.c.l.b16 %v1845
        %v1880 = vunpack.c.l.b16 %v1846
        %v1881 = vunpack.c.l.b16 %v1847
        %v1882 = vunpack.c.l.b16 %v1848
        %v1883 = vunpack.c.l.b16 %v1849
        %v1884 = vunpack.c.l.b16 %v1850
        %v1885 = vunpack.c.l.b16 %v1851
        %v1886 = vunpack.c.l.b16 %v1852
        %v1887 = vunpack.c.l.b16 %v1853
        %v1888 = vunpack.c.l.b16 %v1854
        %v1889 = vunpack.c.l.b16 %v1855
        %v1890 = vunpack.c.l.b16 %v1856
        %v1891 = vpack.c.b16 %v1876, %v1875
        %v1892 = vpack.c.b16 %v1878, %v1877
        %v1893 = vpack.c.b16 %v1880, %v1879
        %v1894 = vpack.c.b16 %v1882, %v1881
        %v1895 = vpack.c.b16 %v1884, %v1883
        %v1896 = vpack.c.b16 %v1886, %v1885
        %v1897 = vpack.c.b16 %v1888, %v1887
        %v1898 = vpack.c.b16 %v1890, %v1889
        %1907 = vmatprep.subr.bf16.mxu0 0
        %1908 = vmatpush1.bf16.msra.mxu0 %v1891
        %1909 = vmatprep.subr.bf16.mxu0 0
        %1910 = vmatpush1.bf16.msra.mxu0 %v1892
        %1911 = vmatprep.subr.bf16.mxu0 0
        %1912 = vmatpush1.bf16.msra.mxu0 %v1893
        %1913 = vmatprep.subr.bf16.mxu0 0
        %1914 = vmatpush1.bf16.msra.mxu0 %v1894
        %1915 = vmatprep.subr.bf16.mxu0 0
        %1916 = vmatpush1.bf16.msra.mxu0 %v1895
        %1917 = vmatprep.subr.bf16.mxu0 0
        %1918 = vmatpush1.bf16.msra.mxu0 %v1896
        %1919 = vmatprep.subr.bf16.mxu0 0
        %1920 = vmatpush1.bf16.msra.mxu0 %v1897
        %1921 = vmatprep.subr.bf16.mxu0 0
        %1922 = vmatpush1.bf16.msra.mxu0 %v1898
        %1923 = vmatprep.subr.bf16.mxu0 0
        %1924 = vmatpush1.bf16.msra.mxu0 0
        %1925 = vmatprep.subr.bf16.mxu0 0
        %1926 = vmatpush1.bf16.msra.mxu0 0
        %1927 = vmatprep.subr.bf16.mxu0 0
        %1928 = vmatpush1.bf16.msra.mxu0 0
        %1929 = vmatprep.subr.bf16.mxu0 0
        %1930 = vmatpush1.bf16.msra.mxu0 0
        %1931 = vmatprep.subr.bf16.mxu0 0
        %1932 = vmatpush1.bf16.msra.mxu0 0
        %1933 = vmatprep.subr.bf16.mxu0 0
        %1934 = vmatpush1.bf16.msra.mxu0 0
        %1935 = vmatprep.subr.bf16.mxu0 0
        %1936 = vmatpush1.bf16.msra.mxu0 0
        %1937 = vmatprep.subr.bf16.mxu0 0
        %1938 = vmatpush1.bf16.msra.mxu0 0
        %1939 = vmatprep.mubr.bf16.mxu0 0
        %1940 = vmatmul.mubr.bf16.gmra.mrb[0].mxu0 %v1857
        %v1941 = vpop.f32.mrb[0].mxu0
        %v1942 = vadd.f32 0.0, %v1941
        %v1943 = vpop.f32.mrb[0].mxu0
        %v1944 = vpop.f32.mrb[0].mxu0
        %v1945 = vadd.f32 0.0, %v1944
        %v1946 = vpop.f32.mrb[0].mxu0
        %1947 = vmatprep.mubr.bf16.mxu0 0
        %1948 = vmatmul.mubr.bf16.gmra.mrb[0].mxu0 %v1858
        %v1949 = vpop.f32.mrb[0].mxu0
        %v1950 = vadd.f32 0.0, %v1949
        %v1951 = vpop.f32.mrb[0].mxu0
        %v1952 = vpop.f32.mrb[0].mxu0
        %v1953 = vadd.f32 0.0, %v1952
        %v1954 = vpop.f32.mrb[0].mxu0
        %1955 = vdwg.mxu0
        %v1956 = vadd.f32 %v1823, %v1942
        %v1957 = vadd.f32 %v1824, %v1945
        %v1958 = vadd.f32 %v1825, %v1950
        %v1959 = vadd.f32 %v1826, %v1953
        %v1961 = vlaneseq
        %v1962 = vshrl.u32 %v1961, 7
        %v1963 = vsub.s32 0, %v1962
        %v1964 = vrot.slane %v1316, %v1963
        %v1966 = vadd.f32 %v1956, %v1964
        %v1967 = vadd.f32 %v1957, %v1964
        %v1968 = vadd.f32 %v1958, %v1964
        %v1969 = vadd.f32 %v1959, %v1964
        %v1971 = vlaneseq
        %v1972 = vshrl.u32 %v1971, 7
        %v1973 = vsub.s32 0, %v1972
        %v1974 = vrot.slane %v1318, %v1973
        %v1976 = vmul.f32 %v1966, %v1974
        %v1977 = vmul.f32 %v1967, %v1974
        %v1978 = vmul.f32 %v1968, %v1974
        %v1979 = vmul.f32 %v1969, %v1974
        %v1980 = vmul.f32 %v1976, 0.5
        %v1981 = vmul.f32 %v1977, 0.5
        %v1982 = vmul.f32 %v1978, 0.5
        %v1983 = vmul.f32 %v1979, 0.5
        %v1984 = vtanh.pop %v1980
        %v1985 = vtanh.pop %v1981
        %v1986 = vtanh.pop %v1982
        %v1987 = vtanh.pop %v1983
        %v1988 = vmul.f32 %v1984, 0.5
        %v1989 = vmul.f32 %v1985, 0.5
        %v1990 = vmul.f32 %v1986, 0.5
        %v1991 = vmul.f32 %v1987, 0.5
        %v1992 = vadd.f32 %v1988, 0.5
        %v1993 = vadd.f32 %v1989, 0.5
        %v1994 = vadd.f32 %v1990, 0.5
        %v1995 = vadd.f32 %v1991, 0.5
        %v1996 = vmul.f32 %v1966, %v1992
        %v1997 = vmul.f32 %v1967, %v1993
        %v1998 = vmul.f32 %v1968, %v1994
        %v1999 = vmul.f32 %v1969, %v1995
        %2000 = vrot.lane.b32.xlu0 %v515, 8
        %v2001 = vpop.permute.xlu0 %2000
        %2002 = vrot.lane.b32.xlu0 %v516, 8
        %v2003 = vpop.permute.xlu0 %2002
        %2004 = vrot.lane.b32.xlu0 %v517, 8
        %v2005 = vpop.permute.xlu0 %2004
        %2006 = vrot.lane.b32.xlu0 %v518, 8
        %v2007 = vpop.permute.xlu0 %2006
        %v2008 = vsel %vm513, -inf, %v2001
        %v2009 = vsel %vm513, -inf, %v2003
        %v2010 = vsel %vm513, -inf, %v2005
        %v2011 = vsel %vm513, -inf, %v2007
        %2012 = vrot.lane.b32.xlu0 %v515, 120
        %v2013 = vpop.permute.xlu0 %2012
        %2014 = vrot.lane.b32.xlu0 %v516, 120
        %v2015 = vpop.permute.xlu0 %2014
        %2016 = vrot.lane.b32.xlu0 %v517, 120
        %v2017 = vpop.permute.xlu0 %2016
        %2018 = vrot.lane.b32.xlu0 %v518, 120
        %v2019 = vpop.permute.xlu0 %2018
        %v2020 = vsel %vm514, -inf, %v2013
        %v2021 = vsel %vm514, -inf, %v2015
        %v2022 = vsel %vm514, -inf, %v2017
        %v2023 = vsel %vm514, -inf, %v2019
        %v2024 = vmax.f32 %v2008, %v2020
        %v2025 = vmax.f32 %v2009, %v2021
        %v2026 = vmax.f32 %v2010, %v2022
        %v2027 = vmax.f32 %v2011, %v2023
        %v2028 = vmax.f32 %v515, %v2024
        %v2029 = vmax.f32 %v516, %v2025
        %v2030 = vmax.f32 %v517, %v2026
        %v2031 = vmax.f32 %v518, %v2027
        %v2032 = vrot.slane %v2028, 7
        %v2033 = vrot.slane %v2029, 7
        %v2034 = vrot.slane %v2030, 7
        %v2035 = vrot.slane %v2031, 7
        %v2036 = vsel %vm921, %v2034, %v2035
        %v2037 = vsel %vm921, %v2033, %v2034
        %v2038 = vsel %vm921, %v2032, %v2033
        %v2039 = vsel %vm921, %v2035, %v2032
        %v2040 = vsel %vm477, %v2039, -inf
        %v2041 = vsel %vm478, %v2038, -inf
        %v2042 = vsel %vm479, %v2037, -inf
        %v2043 = vsel %vm480, %v2036, -inf
        %v2044 = vrot.slane %v2028, 1
        %v2045 = vrot.slane %v2029, 1
        %v2046 = vrot.slane %v2030, 1
        %v2047 = vrot.slane %v2031, 1
        %v2048 = vsel %vm1146, %v2046, %v2047
        %v2049 = vsel %vm1146, %v2045, %v2046
        %v2050 = vsel %vm1146, %v2044, %v2045
        %v2051 = vsel %vm1146, %v2047, %v2044
        %v2052 = vsel %vm493, %v2050, -inf
        %v2053 = vsel %vm494, %v2049, -inf
        %v2054 = vsel %vm495, %v2048, -inf
        %v2055 = vsel %vm496, %v2051, -inf
        %v2056 = vmax.f32 %v2040, %v2052
        %v2057 = vmax.f32 %v2041, %v2053
        %v2058 = vmax.f32 %v2042, %v2054
        %v2059 = vmax.f32 %v2043, %v2055
        %v2060 = vmax.f32 %v2028, %v2056
        %v2061 = vmax.f32 %v2029, %v2057
        %v2062 = vmax.f32 %v2030, %v2058
        %v2063 = vmax.f32 %v2031, %v2059
        %v2064 = vld [vmem:[#allocation4] sm:$0xf]
        %v2065 = vld [vmem:[#allocation4 + $0x4] sm:$0xf]
        %v2066 = vld [vmem:[#allocation4 + $0x8] sm:$0xf]
        %v2067 = vld [vmem:[#allocation4 + $0xc] sm:$0xf]
        %v2068 = vld [vmem:[#allocation4 + $0x10] sm:$0xf]
        %v2069 = vld [vmem:[#allocation4 + $0x14] sm:$0xf]
        %v2070 = vld [vmem:[#allocation4 + $0x18] sm:$0xf]
        %v2071 = vld [vmem:[#allocation4 + $0x1c] sm:$0xf]
        %v2072 = vld [vmem:[#allocation4 + $0x20] sm:$0xf]
        %v2073 = vld [vmem:[#allocation4 + $0x24] sm:$0xf]
        %v2074 = vld [vmem:[#allocation4 + $0x28] sm:$0xf]
        %v2075 = vld [vmem:[#allocation4 + $0x2c] sm:$0xf]
        %v2076 = vld [vmem:[#allocation4 + $0x30] sm:$0xf]
        %v2077 = vld [vmem:[#allocation4 + $0x34] sm:$0xf]
        %v2078 = vld [vmem:[#allocation4 + $0x38] sm:$0xf]
        %v2079 = vld [vmem:[#allocation4 + $0x3c] sm:$0xf]
        %v2080 = vpack.c.bf16 %v2061, %v2060
        %v2081 = vpack.c.bf16 %v2063, %v2062
        %s2082 = scalar_lea.vmem %s8, 2
        %v2083 = vld [vmem:[%s2082] sm:$0x1]
        %v2085 = vlaneseq
        %v2086 = vshrl.u32 %v2085, 7
        %v2087 = vsub.s32 0, %v2086
        %v2088 = vrot.slane %v2083, %v2087
        %v2106 = vunpack.c.l.b16 %v2064
        %v2107 = vunpack.c.l.b16 %v2065
        %v2108 = vunpack.c.l.b16 %v2066
        %v2109 = vunpack.c.l.b16 %v2067
        %v2110 = vunpack.c.l.b16 %v2068
        %v2111 = vunpack.c.l.b16 %v2069
        %v2112 = vunpack.c.l.b16 %v2070
        %v2113 = vunpack.c.l.b16 %v2071
        %v2114 = vunpack.c.l.b16 %v2072
        %v2115 = vunpack.c.l.b16 %v2073
        %v2116 = vunpack.c.l.b16 %v2074
        %v2117 = vunpack.c.l.b16 %v2075
        %v2118 = vunpack.c.l.b16 %v2076
        %v2119 = vunpack.c.l.b16 %v2077
        %v2120 = vunpack.c.l.b16 %v2078
        %v2121 = vunpack.c.l.b16 %v2079
        %v2122 = vpack.c.b16 %v2107, %v2106
        %v2123 = vpack.c.b16 %v2109, %v2108
        %v2124 = vpack.c.b16 %v2111, %v2110
        %v2125 = vpack.c.b16 %v2113, %v2112
        %v2126 = vpack.c.b16 %v2115, %v2114
        %v2127 = vpack.c.b16 %v2117, %v2116
        %v2128 = vpack.c.b16 %v2119, %v2118
        %v2129 = vpack.c.b16 %v2121, %v2120
        %2138 = vmatprep.subr.bf16.mxu0 0
        %2139 = vmatpush1.bf16.msra.mxu0 %v2122
        %2140 = vmatprep.subr.bf16.mxu0 0
        %2141 = vmatpush1.bf16.msra.mxu0 %v2123
        %2142 = vmatprep.subr.bf16.mxu0 0
        %2143 = vmatpush1.bf16.msra.mxu0 %v2124
        %2144 = vmatprep.subr.bf16.mxu0 0
        %2145 = vmatpush1.bf16.msra.mxu0 %v2125
        %2146 = vmatprep.subr.bf16.mxu0 0
        %2147 = vmatpush1.bf16.msra.mxu0 %v2126
        %2148 = vmatprep.subr.bf16.mxu0 0
        %2149 = vmatpush1.bf16.msra.mxu0 %v2127
        %2150 = vmatprep.subr.bf16.mxu0 0
        %2151 = vmatpush1.bf16.msra.mxu0 %v2128
        %2152 = vmatprep.subr.bf16.mxu0 0
        %2153 = vmatpush1.bf16.msra.mxu0 %v2129
        %2154 = vmatprep.subr.bf16.mxu0 0
        %2155 = vmatpush1.bf16.msra.mxu0 0
        %2156 = vmatprep.subr.bf16.mxu0 0
        %2157 = vmatpush1.bf16.msra.mxu0 0
        %2158 = vmatprep.subr.bf16.mxu0 0
        %2159 = vmatpush1.bf16.msra.mxu0 0
        %2160 = vmatprep.subr.bf16.mxu0 0
        %2161 = vmatpush1.bf16.msra.mxu0 0
        %2162 = vmatprep.subr.bf16.mxu0 0
        %2163 = vmatpush1.bf16.msra.mxu0 0
        %2164 = vmatprep.subr.bf16.mxu0 0
        %2165 = vmatpush1.bf16.msra.mxu0 0
        %2166 = vmatprep.subr.bf16.mxu0 0
        %2167 = vmatpush1.bf16.msra.mxu0 0
        %2168 = vmatprep.subr.bf16.mxu0 0
        %2169 = vmatpush1.bf16.msra.mxu0 0
        %2170 = vmatprep.mubr.bf16.mxu0 0
        %2171 = vmatmul.mubr.bf16.gmra.mrb[0].mxu0 %v2080
        %v2172 = vpop.f32.mrb[0].mxu0
        %v2173 = vadd.f32 %v2088, %v2172
        %v2174 = vpop.f32.mrb[0].mxu0
        %v2175 = vpop.f32.mrb[0].mxu0
        %v2176 = vadd.f32 %v2088, %v2175
        %v2177 = vpop.f32.mrb[0].mxu0
        %2178 = vmatprep.mubr.bf16.mxu0 0
        %2179 = vmatmul.mubr.bf16.gmra.mrb[0].mxu0 %v2081
        %v2180 = vpop.f32.mrb[0].mxu0
        %v2181 = vadd.f32 %v2088, %v2180
        %v2182 = vpop.f32.mrb[0].mxu0
        %v2183 = vpop.f32.mrb[0].mxu0
        %v2184 = vadd.f32 %v2088, %v2183
        %v2185 = vpop.f32.mrb[0].mxu0
        %2186 = vdwg.mxu0
        %s2187 = scalar_lea.vmem %s9, 5
        %v2188 = vld [vmem:[%s2187] sm:$0x1]
        %v2190 = vlaneseq
        %v2191 = vshrl.u32 %v2190, 7
        %v2192 = vsub.s32 0, %v2191
        %v2193 = vrot.slane %v2188, %v2192
        %v2195 = vmul.f32 %v2173, %v2193
        %v2196 = vmul.f32 %v2176, %v2193
        %v2197 = vmul.f32 %v2181, %v2193
        %v2198 = vmul.f32 %v2184, %v2193
        %v2199 = vmul.f32 %v2195, 0.5
        %v2200 = vmul.f32 %v2196, 0.5
        %v2201 = vmul.f32 %v2197, 0.5
        %v2202 = vmul.f32 %v2198, 0.5
        %v2203 = vtanh.pop %v2199
        %v2204 = vtanh.pop %v2200
        %v2205 = vtanh.pop %v2201
        %v2206 = vtanh.pop %v2202
        %v2207 = vmul.f32 %v2203, 0.5
        %v2208 = vmul.f32 %v2204, 0.5
        %v2209 = vmul.f32 %v2205, 0.5
        %v2210 = vmul.f32 %v2206, 0.5
        %v2211 = vadd.f32 %v2207, 0.5
        %v2212 = vadd.f32 %v2208, 0.5
        %v2213 = vadd.f32 %v2209, 0.5
        %v2214 = vadd.f32 %v2210, 0.5
        %v2215 = vmul.f32 %v2173, %v2211
        %v2216 = vmul.f32 %v2176, %v2212
        %v2217 = vmul.f32 %v2181, %v2213
        %v2218 = vmul.f32 %v2184, %v2214
        %v2219 = vld [vmem:[%s6] sm:$0xf]
        %v2220 = vld [vmem:[%s6 + $0x4] sm:$0xf]
        %v2221 = vld [vmem:[%s6 + $0x8] sm:$0xf]
        %v2222 = vld [vmem:[%s6 + $0xc] sm:$0xf]
        %v2223 = vld [vmem:[%s6 + $0x10] sm:$0xf]
        %v2224 = vld [vmem:[%s6 + $0x14] sm:$0xf]
        %v2225 = vld [vmem:[%s6 + $0x18] sm:$0xf]
        %v2226 = vld [vmem:[%s6 + $0x1c] sm:$0xf]
        %v2227 = vld [vmem:[%s6 + $0x20] sm:$0xf]
        %v2228 = vld [vmem:[%s6 + $0x24] sm:$0xf]
        %v2229 = vld [vmem:[%s6 + $0x28] sm:$0xf]
        %v2230 = vld [vmem:[%s6 + $0x2c] sm:$0xf]
        %v2231 = vld [vmem:[%s6 + $0x30] sm:$0xf]
        %v2232 = vld [vmem:[%s6 + $0x34] sm:$0xf]
        %v2233 = vld [vmem:[%s6 + $0x38] sm:$0xf]
        %v2234 = vld [vmem:[%s6 + $0x3c] sm:$0xf]
        %v2235 = vpack.c.bf16 %v828, %v827
        %v2236 = vpack.c.bf16 %v830, %v829
        %s2237 = scalar_lea.vmem %s6, 64
        %v2238 = vld [vmem:[%s2237] sm:$0xf]
        %v2239 = vld [vmem:[%s2237 + $0x4] sm:$0xf]
        %v2240 = vld [vmem:[%s2237 + $0x8] sm:$0xf]
        %v2241 = vld [vmem:[%s2237 + $0xc] sm:$0xf]
        %v2242 = vld [vmem:[%s2237 + $0x10] sm:$0xf]
        %v2243 = vld [vmem:[%s2237 + $0x14] sm:$0xf]
        %v2244 = vld [vmem:[%s2237 + $0x18] sm:$0xf]
        %v2245 = vld [vmem:[%s2237 + $0x1c] sm:$0xf]
        %v2246 = vld [vmem:[%s2237 + $0x20] sm:$0xf]
        %v2247 = vld [vmem:[%s2237 + $0x24] sm:$0xf]
        %v2248 = vld [vmem:[%s2237 + $0x28] sm:$0xf]
        %v2249 = vld [vmem:[%s2237 + $0x2c] sm:$0xf]
        %v2250 = vld [vmem:[%s2237 + $0x30] sm:$0xf]
        %v2251 = vld [vmem:[%s2237 + $0x34] sm:$0xf]
        %v2252 = vld [vmem:[%s2237 + $0x38] sm:$0xf]
        %v2253 = vld [vmem:[%s2237 + $0x3c] sm:$0xf]
        %v2254 = vpack.c.bf16 %v1312, %v1311
        %v2255 = vpack.c.bf16 %v1314, %v1313
        %v2272 = vunpack.c.l.b16 %v2238
        %v2273 = vunpack.c.l.b16 %v2239
        %v2274 = vunpack.c.l.b16 %v2240
        %v2275 = vunpack.c.l.b16 %v2241
        %v2276 = vunpack.c.l.b16 %v2242
        %v2277 = vunpack.c.l.b16 %v2243
        %v2278 = vunpack.c.l.b16 %v2244
        %v2279 = vunpack.c.l.b16 %v2245
        %v2280 = vunpack.c.l.b16 %v2246
        %v2281 = vunpack.c.l.b16 %v2247
        %v2282 = vunpack.c.l.b16 %v2248
        %v2283 = vunpack.c.l.b16 %v2249
        %v2284 = vunpack.c.l.b16 %v2250
        %v2285 = vunpack.c.l.b16 %v2251
        %v2286 = vunpack.c.l.b16 %v2252
        %v2287 = vunpack.c.l.b16 %v2253
        %v2288 = vpack.c.b16 %v2273, %v2272
        %v2289 = vpack.c.b16 %v2275, %v2274
        %v2290 = vpack.c.b16 %v2277, %v2276
        %v2291 = vpack.c.b16 %v2279, %v2278
        %v2292 = vpack.c.b16 %v2281, %v2280
        %v2293 = vpack.c.b16 %v2283, %v2282
        %v2294 = vpack.c.b16 %v2285, %v2284
        %v2295 = vpack.c.b16 %v2287, %v2286
        %2304 = vmatprep.subr.bf16.mxu0 0
        %2305 = vmatpush1.bf16.msra.mxu0 %v2288
        %2306 = vmatprep.subr.bf16.mxu0 0
        %2307 = vmatpush1.bf16.msra.mxu0 %v2289
        %2308 = vmatprep.subr.bf16.mxu0 0
        %2309 = vmatpush1.bf16.msra.mxu0 %v2290
        %2310 = vmatprep.subr.bf16.mxu0 0
        %2311 = vmatpush1.bf16.msra.mxu0 %v2291
        %2312 = vmatprep.subr.bf16.mxu0 0
        %2313 = vmatpush1.bf16.msra.mxu0 %v2292
        %2314 = vmatprep.subr.bf16.mxu0 0
        %2315 = vmatpush1.bf16.msra.mxu0 %v2293
        %2316 = vmatprep.subr.bf16.mxu0 0
        %2317 = vmatpush1.bf16.msra.mxu0 %v2294
        %2318 = vmatprep.subr.bf16.mxu0 0
        %2319 = vmatpush1.bf16.msra.mxu0 %v2295
        %2320 = vmatprep.subr.bf16.mxu0 0
        %2321 = vmatpush1.bf16.msra.mxu0 0
        %2322 = vmatprep.subr.bf16.mxu0 0
        %2323 = vmatpush1.bf16.msra.mxu0 0
        %2324 = vmatprep.subr.bf16.mxu0 0
        %2325 = vmatpush1.bf16.msra.mxu0 0
        %2326 = vmatprep.subr.bf16.mxu0 0
        %2327 = vmatpush1.bf16.msra.mxu0 0
        %2328 = vmatprep.subr.bf16.mxu0 0
        %2329 = vmatpush1.bf16.msra.mxu0 0
        %2330 = vmatprep.subr.bf16.mxu0 0
        %2331 = vmatpush1.bf16.msra.mxu0 0
        %2332 = vmatprep.subr.bf16.mxu0 0
        %2333 = vmatpush1.bf16.msra.mxu0 0
        %2334 = vmatprep.subr.bf16.mxu0 0
        %2335 = vmatpush1.bf16.msra.mxu0 0
        %2336 = vmatprep.mubr.bf16.mxu0 0
        %2337 = vmatmul.mubr.bf16.gmra.mrb[0].mxu0 %v2254
        %v2338 = vpop.f32.mrb[0].mxu0
        %v2339 = vadd.f32 0.0, %v2338
        %v2340 = vpop.f32.mrb[0].mxu0
        %v2341 = vpop.f32.mrb[0].mxu0
        %v2342 = vadd.f32 0.0, %v2341
        %v2343 = vpop.f32.mrb[0].mxu0
        %2344 = vmatprep.mubr.bf16.mxu0 0
        %2345 = vmatmul.mubr.bf16.gmra.mrb[0].mxu0 %v2255
        %v2346 = vpop.f32.mrb[0].mxu0
        %v2347 = vadd.f32 0.0, %v2346
        %v2348 = vpop.f32.mrb[0].mxu0
        %v2349 = vpop.f32.mrb[0].mxu0
        %v2350 = vadd.f32 0.0, %v2349
        %v2351 = vpop.f32.mrb[0].mxu0
        %2352 = vdwg.mxu0
        %v2369 = vunpack.c.l.b16 %v2219
        %v2370 = vunpack.c.l.b16 %v2220
        %v2371 = vunpack.c.l.b16 %v2221
        %v2372 = vunpack.c.l.b16 %v2222
        %v2373 = vunpack.c.l.b16 %v2223
        %v2374 = vunpack.c.l.b16 %v2224
        %v2375 = vunpack.c.l.b16 %v2225
        %v2376 = vunpack.c.l.b16 %v2226
        %v2377 = vunpack.c.l.b16 %v2227
        %v2378 = vunpack.c.l.b16 %v2228
        %v2379 = vunpack.c.l.b16 %v2229
        %v2380 = vunpack.c.l.b16 %v2230
        %v2381 = vunpack.c.l.b16 %v2231
        %v2382 = vunpack.c.l.b16 %v2232
        %v2383 = vunpack.c.l.b16 %v2233
        %v2384 = vunpack.c.l.b16 %v2234
        %v2385 = vpack.c.b16 %v2370, %v2369
        %v2386 = vpack.c.b16 %v2372, %v2371
        %v2387 = vpack.c.b16 %v2374, %v2373
        %v2388 = vpack.c.b16 %v2376, %v2375
        %v2389 = vpack.c.b16 %v2378, %v2377
        %v2390 = vpack.c.b16 %v2380, %v2379
        %v2391 = vpack.c.b16 %v2382, %v2381
        %v2392 = vpack.c.b16 %v2384, %v2383
        %2401 = vmatprep.subr.bf16.mxu0 0
        %2402 = vmatpush1.bf16.msra.mxu0 %v2385
        %2403 = vmatprep.subr.bf16.mxu0 0
        %2404 = vmatpush1.bf16.msra.mxu0 %v2386
        %2405 = vmatprep.subr.bf16.mxu0 0
        %2406 = vmatpush1.bf16.msra.mxu0 %v2387
        %2407 = vmatprep.subr.bf16.mxu0 0
        %2408 = vmatpush1.bf16.msra.mxu0 %v2388
        %2409 = vmatprep.subr.bf16.mxu0 0
        %2410 = vmatpush1.bf16.msra.mxu0 %v2389
        %2411 = vmatprep.subr.bf16.mxu0 0
        %2412 = vmatpush1.bf16.msra.mxu0 %v2390
        %2413 = vmatprep.subr.bf16.mxu0 0
        %2414 = vmatpush1.bf16.msra.mxu0 %v2391
        %2415 = vmatprep.subr.bf16.mxu0 0
        %2416 = vmatpush1.bf16.msra.mxu0 %v2392
        %2417 = vmatprep.subr.bf16.mxu0 0
        %2418 = vmatpush1.bf16.msra.mxu0 0
        %2419 = vmatprep.subr.bf16.mxu0 0
        %2420 = vmatpush1.bf16.msra.mxu0 0
        %2421 = vmatprep.subr.bf16.mxu0 0
        %2422 = vmatpush1.bf16.msra.mxu0 0
        %2423 = vmatprep.subr.bf16.mxu0 0
        %2424 = vmatpush1.bf16.msra.mxu0 0
        %2425 = vmatprep.subr.bf16.mxu0 0
        %2426 = vmatpush1.bf16.msra.mxu0 0
        %2427 = vmatprep.subr.bf16.mxu0 0
        %2428 = vmatpush1.bf16.msra.mxu0 0
        %2429 = vmatprep.subr.bf16.mxu0 0
        %2430 = vmatpush1.bf16.msra.mxu0 0
        %2431 = vmatprep.subr.bf16.mxu0 0
        %2432 = vmatpush1.bf16.msra.mxu0 0
        %2433 = vmatprep.mubr.bf16.mxu0 0
        %2434 = vmatmul.mubr.bf16.gmra.mrb[0].mxu0 %v2235
        %v2435 = vpop.f32.mrb[0].mxu0
        %v2436 = vadd.f32 %v2339, %v2435
        %v2437 = vpop.f32.mrb[0].mxu0
        %v2438 = vpop.f32.mrb[0].mxu0
        %v2439 = vadd.f32 %v2342, %v2438
        %v2440 = vpop.f32.mrb[0].mxu0
        %2441 = vmatprep.mubr.bf16.mxu0 0
        %2442 = vmatmul.mubr.bf16.gmra.mrb[0].mxu0 %v2236
        %v2443 = vpop.f32.mrb[0].mxu0
        %v2444 = vadd.f32 %v2347, %v2443
        %v2445 = vpop.f32.mrb[0].mxu0
        %v2446 = vpop.f32.mrb[0].mxu0
        %v2447 = vadd.f32 %v2350, %v2446
        %v2448 = vpop.f32.mrb[0].mxu0
        %2449 = vdwg.mxu0
        %s2450 = scalar_lea.vmem %s6, 128
        %v2451 = vld [vmem:[%s2450] sm:$0xf]
        %v2452 = vld [vmem:[%s2450 + $0x4] sm:$0xf]
        %v2453 = vld [vmem:[%s2450 + $0x8] sm:$0xf]
        %v2454 = vld [vmem:[%s2450 + $0xc] sm:$0xf]
        %v2455 = vld [vmem:[%s2450 + $0x10] sm:$0xf]
        %v2456 = vld [vmem:[%s2450 + $0x14] sm:$0xf]
        %v2457 = vld [vmem:[%s2450 + $0x18] sm:$0xf]
        %v2458 = vld [vmem:[%s2450 + $0x1c] sm:$0xf]
        %v2459 = vld [vmem:[%s2450 + $0x20] sm:$0xf]
        %v2460 = vld [vmem:[%s2450 + $0x24] sm:$0xf]
        %v2461 = vld [vmem:[%s2450 + $0x28] sm:$0xf]
        %v2462 = vld [vmem:[%s2450 + $0x2c] sm:$0xf]
        %v2463 = vld [vmem:[%s2450 + $0x30] sm:$0xf]
        %v2464 = vld [vmem:[%s2450 + $0x34] sm:$0xf]
        %v2465 = vld [vmem:[%s2450 + $0x38] sm:$0xf]
        %v2466 = vld [vmem:[%s2450 + $0x3c] sm:$0xf]
        %v2467 = vpack.c.bf16 %v1997, %v1996
        %v2468 = vpack.c.bf16 %v1999, %v1998
        %v2485 = vunpack.c.l.b16 %v2451
        %v2486 = vunpack.c.l.b16 %v2452
        %v2487 = vunpack.c.l.b16 %v2453
        %v2488 = vunpack.c.l.b16 %v2454
        %v2489 = vunpack.c.l.b16 %v2455
        %v2490 = vunpack.c.l.b16 %v2456
        %v2491 = vunpack.c.l.b16 %v2457
        %v2492 = vunpack.c.l.b16 %v2458
        %v2493 = vunpack.c.l.b16 %v2459
        %v2494 = vunpack.c.l.b16 %v2460
        %v2495 = vunpack.c.l.b16 %v2461
        %v2496 = vunpack.c.l.b16 %v2462
        %v2497 = vunpack.c.l.b16 %v2463
        %v2498 = vunpack.c.l.b16 %v2464
        %v2499 = vunpack.c.l.b16 %v2465
        %v2500 = vunpack.c.l.b16 %v2466
        %v2501 = vpack.c.b16 %v2486, %v2485
        %v2502 = vpack.c.b16 %v2488, %v2487
        %v2503 = vpack.c.b16 %v2490, %v2489
        %v2504 = vpack.c.b16 %v2492, %v2491
        %v2505 = vpack.c.b16 %v2494, %v2493
        %v2506 = vpack.c.b16 %v2496, %v2495
        %v2507 = vpack.c.b16 %v2498, %v2497
        %v2508 = vpack.c.b16 %v2500, %v2499
        %2517 = vmatprep.subr.bf16.mxu0 0
        %2518 = vmatpush1.bf16.msra.mxu0 %v2501
        %2519 = vmatprep.subr.bf16.mxu0 0
        %2520 = vmatpush1.bf16.msra.mxu0 %v2502
        %2521 = vmatprep.subr.bf16.mxu0 0
        %2522 = vmatpush1.bf16.msra.mxu0 %v2503
        %2523 = vmatprep.subr.bf16.mxu0 0
        %2524 = vmatpush1.bf16.msra.mxu0 %v2504
        %2525 = vmatprep.subr.bf16.mxu0 0
        %2526 = vmatpush1.bf16.msra.mxu0 %v2505
        %2527 = vmatprep.subr.bf16.mxu0 0
        %2528 = vmatpush1.bf16.msra.mxu0 %v2506
        %2529 = vmatprep.subr.bf16.mxu0 0
        %2530 = vmatpush1.bf16.msra.mxu0 %v2507
        %2531 = vmatprep.subr.bf16.mxu0 0
        %2532 = vmatpush1.bf16.msra.mxu0 %v2508
        %2533 = vmatprep.subr.bf16.mxu0 0
        %2534 = vmatpush1.bf16.msra.mxu0 0
        %2535 = vmatprep.subr.bf16.mxu0 0
        %2536 = vmatpush1.bf16.msra.mxu0 0
        %2537 = vmatprep.subr.bf16.mxu0 0
        %2538 = vmatpush1.bf16.msra.mxu0 0
        %2539 = vmatprep.subr.bf16.mxu0 0
        %2540 = vmatpush1.bf16.msra.mxu0 0
        %2541 = vmatprep.subr.bf16.mxu0 0
        %2542 = vmatpush1.bf16.msra.mxu0 0
        %2543 = vmatprep.subr.bf16.mxu0 0
        %2544 = vmatpush1.bf16.msra.mxu0 0
        %2545 = vmatprep.subr.bf16.mxu0 0
        %2546 = vmatpush1.bf16.msra.mxu0 0
        %2547 = vmatprep.subr.bf16.mxu0 0
        %2548 = vmatpush1.bf16.msra.mxu0 0
        %2549 = vmatprep.mubr.bf16.mxu0 0
        %2550 = vmatmul.mubr.bf16.gmra.mrb[0].mxu0 %v2467
        %v2551 = vpop.f32.mrb[0].mxu0
        %v2552 = vadd.f32 0.0, %v2551
        %v2553 = vpop.f32.mrb[0].mxu0
        %v2554 = vpop.f32.mrb[0].mxu0
        %v2555 = vadd.f32 0.0, %v2554
        %v2556 = vpop.f32.mrb[0].mxu0
        %2557 = vmatprep.mubr.bf16.mxu0 0
        %2558 = vmatmul.mubr.bf16.gmra.mrb[0].mxu0 %v2468
        %v2559 = vpop.f32.mrb[0].mxu0
        %v2560 = vadd.f32 0.0, %v2559
        %v2561 = vpop.f32.mrb[0].mxu0
        %v2562 = vpop.f32.mrb[0].mxu0
        %v2563 = vadd.f32 0.0, %v2562
        %v2564 = vpop.f32.mrb[0].mxu0
        %2565 = vdwg.mxu0
        %v2566 = vadd.f32 %v2436, %v2552
        %v2567 = vadd.f32 %v2439, %v2555
        %v2568 = vadd.f32 %v2444, %v2560
        %v2569 = vadd.f32 %v2447, %v2563
        %s2570 = scalar_lea.vmem %s6, 192
        %v2571 = vld [vmem:[%s2570] sm:$0xf]
        %v2572 = vld [vmem:[%s2570 + $0x4] sm:$0xf]
        %v2573 = vld [vmem:[%s2570 + $0x8] sm:$0xf]
        %v2574 = vld [vmem:[%s2570 + $0xc] sm:$0xf]
        %v2575 = vld [vmem:[%s2570 + $0x10] sm:$0xf]
        %v2576 = vld [vmem:[%s2570 + $0x14] sm:$0xf]
        %v2577 = vld [vmem:[%s2570 + $0x18] sm:$0xf]
        %v2578 = vld [vmem:[%s2570 + $0x1c] sm:$0xf]
        %v2579 = vld [vmem:[%s2570 + $0x20] sm:$0xf]
        %v2580 = vld [vmem:[%s2570 + $0x24] sm:$0xf]
        %v2581 = vld [vmem:[%s2570 + $0x28] sm:$0xf]
        %v2582 = vld [vmem:[%s2570 + $0x2c] sm:$0xf]
        %v2583 = vld [vmem:[%s2570 + $0x30] sm:$0xf]
        %v2584 = vld [vmem:[%s2570 + $0x34] sm:$0xf]
        %v2585 = vld [vmem:[%s2570 + $0x38] sm:$0xf]
        %v2586 = vld [vmem:[%s2570 + $0x3c] sm:$0xf]
        %v2587 = vpack.c.bf16 %v2216, %v2215
        %v2588 = vpack.c.bf16 %v2218, %v2217
        %v2605 = vunpack.c.l.b16 %v2571
        %v2606 = vunpack.c.l.b16 %v2572
        %v2607 = vunpack.c.l.b16 %v2573
        %v2608 = vunpack.c.l.b16 %v2574
        %v2609 = vunpack.c.l.b16 %v2575
        %v2610 = vunpack.c.l.b16 %v2576
        %v2611 = vunpack.c.l.b16 %v2577
        %v2612 = vunpack.c.l.b16 %v2578
        %v2613 = vunpack.c.l.b16 %v2579
        %v2614 = vunpack.c.l.b16 %v2580
        %v2615 = vunpack.c.l.b16 %v2581
        %v2616 = vunpack.c.l.b16 %v2582
        %v2617 = vunpack.c.l.b16 %v2583
        %v2618 = vunpack.c.l.b16 %v2584
        %v2619 = vunpack.c.l.b16 %v2585
        %v2620 = vunpack.c.l.b16 %v2586
        %v2621 = vpack.c.b16 %v2606, %v2605
        %v2622 = vpack.c.b16 %v2608, %v2607
        %v2623 = vpack.c.b16 %v2610, %v2609
        %v2624 = vpack.c.b16 %v2612, %v2611
        %v2625 = vpack.c.b16 %v2614, %v2613
        %v2626 = vpack.c.b16 %v2616, %v2615
        %v2627 = vpack.c.b16 %v2618, %v2617
        %v2628 = vpack.c.b16 %v2620, %v2619
        %2637 = vmatprep.subr.bf16.mxu0 0
        %2638 = vmatpush1.bf16.msra.mxu0 %v2621
        %2639 = vmatprep.subr.bf16.mxu0 0
        %2640 = vmatpush1.bf16.msra.mxu0 %v2622
        %2641 = vmatprep.subr.bf16.mxu0 0
        %2642 = vmatpush1.bf16.msra.mxu0 %v2623
        %2643 = vmatprep.subr.bf16.mxu0 0
        %2644 = vmatpush1.bf16.msra.mxu0 %v2624
        %2645 = vmatprep.subr.bf16.mxu0 0
        %2646 = vmatpush1.bf16.msra.mxu0 %v2625
        %2647 = vmatprep.subr.bf16.mxu0 0
        %2648 = vmatpush1.bf16.msra.mxu0 %v2626
        %2649 = vmatprep.subr.bf16.mxu0 0
        %2650 = vmatpush1.bf16.msra.mxu0 %v2627
        %2651 = vmatprep.subr.bf16.mxu0 0
        %2652 = vmatpush1.bf16.msra.mxu0 %v2628
        %2653 = vmatprep.subr.bf16.mxu0 0
        %2654 = vmatpush1.bf16.msra.mxu0 0
        %2655 = vmatprep.subr.bf16.mxu0 0
        %2656 = vmatpush1.bf16.msra.mxu0 0
        %2657 = vmatprep.subr.bf16.mxu0 0
        %2658 = vmatpush1.bf16.msra.mxu0 0
        %2659 = vmatprep.subr.bf16.mxu0 0
        %2660 = vmatpush1.bf16.msra.mxu0 0
        %2661 = vmatprep.subr.bf16.mxu0 0
        %2662 = vmatpush1.bf16.msra.mxu0 0
        %2663 = vmatprep.subr.bf16.mxu0 0
        %2664 = vmatpush1.bf16.msra.mxu0 0
        %2665 = vmatprep.subr.bf16.mxu0 0
        %2666 = vmatpush1.bf16.msra.mxu0 0
        %2667 = vmatprep.subr.bf16.mxu0 0
        %2668 = vmatpush1.bf16.msra.mxu0 0
        %2669 = vmatprep.mubr.bf16.mxu0 0
        %2670 = vmatmul.mubr.bf16.gmra.mrb[0].mxu0 %v2587
        %v2671 = vpop.f32.mrb[0].mxu0
        %v2672 = vadd.f32 0.0, %v2671
        %v2673 = vpop.f32.mrb[0].mxu0
        %v2674 = vpop.f32.mrb[0].mxu0
        %v2675 = vadd.f32 0.0, %v2674
        %v2676 = vpop.f32.mrb[0].mxu0
        %2677 = vmatprep.mubr.bf16.mxu0 0
        %2678 = vmatmul.mubr.bf16.gmra.mrb[0].mxu0 %v2588
        %v2679 = vpop.f32.mrb[0].mxu0
        %v2680 = vadd.f32 0.0, %v2679
        %v2681 = vpop.f32.mrb[0].mxu0
        %v2682 = vpop.f32.mrb[0].mxu0
        %v2683 = vadd.f32 0.0, %v2682
        %v2684 = vpop.f32.mrb[0].mxu0
        %2685 = vdwg.mxu0
        %v2686 = vadd.f32 %v2566, %v2672
        %v2687 = vadd.f32 %v2567, %v2675
        %v2688 = vadd.f32 %v2568, %v2680
        %v2689 = vadd.f32 %v2569, %v2683
        %s2690 = scalar_lea.vmem %s8, 3
        %v2691 = vld [vmem:[%s2690] sm:$0x1]
        %v2693 = vlaneseq
        %v2694 = vshrl.u32 %v2693, 7
        %v2695 = vsub.s32 0, %v2694
        %v2696 = vrot.slane %v2691, %v2695
        %v2698 = vadd.f32 %v2686, %v2696
        %v2699 = vadd.f32 %v2687, %v2696
        %v2700 = vadd.f32 %v2688, %v2696
        %v2701 = vadd.f32 %v2689, %v2696
        %v2702 = vld [vmem:[%s7] sm:$0xf]
        %v2703 = vld [vmem:[%s7 + $0x4] sm:$0xf]
        %v2704 = vld [vmem:[%s7 + $0x8] sm:$0xf]
        %v2705 = vld [vmem:[%s7 + $0xc] sm:$0xf]
        %v2706 = vld [vmem:[%s7 + $0x10] sm:$0xf]
        %v2707 = vld [vmem:[%s7 + $0x14] sm:$0xf]
        %v2708 = vld [vmem:[%s7 + $0x18] sm:$0xf]
        %v2709 = vld [vmem:[%s7 + $0x1c] sm:$0xf]
        %v2710 = vld [vmem:[%s7 + $0x20] sm:$0xf]
        %v2711 = vld [vmem:[%s7 + $0x24] sm:$0xf]
        %v2712 = vld [vmem:[%s7 + $0x28] sm:$0xf]
        %v2713 = vld [vmem:[%s7 + $0x2c] sm:$0xf]
        %v2714 = vld [vmem:[%s7 + $0x30] sm:$0xf]
        %v2715 = vld [vmem:[%s7 + $0x34] sm:$0xf]
        %v2716 = vld [vmem:[%s7 + $0x38] sm:$0xf]
        %v2717 = vld [vmem:[%s7 + $0x3c] sm:$0xf]
        %v2718 = vpack.c.bf16 %v2699, %v2698
        %v2719 = vpack.c.bf16 %v2701, %v2700
        %s2720 = scalar_lea.vmem %s7, 64
        %v2721 = vld [vmem:[%s2720] sm:$0xf]
        %v2722 = vld [vmem:[%s2720 + $0x4] sm:$0xf]
        %v2723 = vld [vmem:[%s2720 + $0x8] sm:$0xf]
        %v2724 = vld [vmem:[%s2720 + $0xc] sm:$0xf]
        %v2725 = vld [vmem:[%s2720 + $0x10] sm:$0xf]
        %v2726 = vld [vmem:[%s2720 + $0x14] sm:$0xf]
        %v2727 = vld [vmem:[%s2720 + $0x18] sm:$0xf]
        %v2728 = vld [vmem:[%s2720 + $0x1c] sm:$0xf]
        %v2729 = vld [vmem:[%s2720 + $0x20] sm:$0xf]
        %v2730 = vld [vmem:[%s2720 + $0x24] sm:$0xf]
        %v2731 = vld [vmem:[%s2720 + $0x28] sm:$0xf]
        %v2732 = vld [vmem:[%s2720 + $0x2c] sm:$0xf]
        %v2733 = vld [vmem:[%s2720 + $0x30] sm:$0xf]
        %v2734 = vld [vmem:[%s2720 + $0x34] sm:$0xf]
        %v2735 = vld [vmem:[%s2720 + $0x38] sm:$0xf]
        %v2736 = vld [vmem:[%s2720 + $0x3c] sm:$0xf]
        %v2753 = vunpack.c.l.b16 %v2721
        %v2754 = vunpack.c.l.b16 %v2722
        %v2755 = vunpack.c.l.b16 %v2723
        %v2756 = vunpack.c.l.b16 %v2724
        %v2757 = vunpack.c.l.b16 %v2725
        %v2758 = vunpack.c.l.b16 %v2726
        %v2759 = vunpack.c.l.b16 %v2727
        %v2760 = vunpack.c.l.b16 %v2728
        %v2761 = vunpack.c.l.b16 %v2729
        %v2762 = vunpack.c.l.b16 %v2730
        %v2763 = vunpack.c.l.b16 %v2731
        %v2764 = vunpack.c.l.b16 %v2732
        %v2765 = vunpack.c.l.b16 %v2733
        %v2766 = vunpack.c.l.b16 %v2734
        %v2767 = vunpack.c.l.b16 %v2735
        %v2768 = vunpack.c.l.b16 %v2736
        %v2769 = vpack.c.b16 %v2754, %v2753
        %v2770 = vpack.c.b16 %v2756, %v2755
        %v2771 = vpack.c.b16 %v2758, %v2757
        %v2772 = vpack.c.b16 %v2760, %v2759
        %v2773 = vpack.c.b16 %v2762, %v2761
        %v2774 = vpack.c.b16 %v2764, %v2763
        %v2775 = vpack.c.b16 %v2766, %v2765
        %v2776 = vpack.c.b16 %v2768, %v2767
        %2785 = vmatprep.subr.bf16.mxu0 0
        %2786 = vmatpush1.bf16.msra.mxu0 %v2769
        %2787 = vmatprep.subr.bf16.mxu0 0
        %2788 = vmatpush1.bf16.msra.mxu0 %v2770
        %2789 = vmatprep.subr.bf16.mxu0 0
        %2790 = vmatpush1.bf16.msra.mxu0 %v2771
        %2791 = vmatprep.subr.bf16.mxu0 0
        %2792 = vmatpush1.bf16.msra.mxu0 %v2772
        %2793 = vmatprep.subr.bf16.mxu0 0
        %2794 = vmatpush1.bf16.msra.mxu0 %v2773
        %2795 = vmatprep.subr.bf16.mxu0 0
        %2796 = vmatpush1.bf16.msra.mxu0 %v2774
        %2797 = vmatprep.subr.bf16.mxu0 0
        %2798 = vmatpush1.bf16.msra.mxu0 %v2775
        %2799 = vmatprep.subr.bf16.mxu0 0
        %2800 = vmatpush1.bf16.msra.mxu0 %v2776
        %2801 = vmatprep.subr.bf16.mxu0 0
        %2802 = vmatpush1.bf16.msra.mxu0 0
        %2803 = vmatprep.subr.bf16.mxu0 0
        %2804 = vmatpush1.bf16.msra.mxu0 0
        %2805 = vmatprep.subr.bf16.mxu0 0
        %2806 = vmatpush1.bf16.msra.mxu0 0
        %2807 = vmatprep.subr.bf16.mxu0 0
        %2808 = vmatpush1.bf16.msra.mxu0 0
        %2809 = vmatprep.subr.bf16.mxu0 0
        %2810 = vmatpush1.bf16.msra.mxu0 0
        %2811 = vmatprep.subr.bf16.mxu0 0
        %2812 = vmatpush1.bf16.msra.mxu0 0
        %2813 = vmatprep.subr.bf16.mxu0 0
        %2814 = vmatpush1.bf16.msra.mxu0 0
        %2815 = vmatprep.subr.bf16.mxu0 0
        %2816 = vmatpush1.bf16.msra.mxu0 0
        %2817 = vmatprep.mubr.bf16.mxu0 0
        %2818 = vmatmul.mubr.bf16.gmra.mrb[0].mxu0 %v551
        %v2819 = vpop.f32.mrb[0].mxu0
        %v2820 = vadd.f32 0.0, %v2819
        %v2821 = vpop.f32.mrb[0].mxu0
        %v2822 = vpop.f32.mrb[0].mxu0
        %v2823 = vadd.f32 0.0, %v2822
        %v2824 = vpop.f32.mrb[0].mxu0
        %2825 = vmatprep.mubr.bf16.mxu0 0
        %2826 = vmatmul.mubr.bf16.gmra.mrb[0].mxu0 %v552
        %v2827 = vpop.f32.mrb[0].mxu0
        %v2828 = vadd.f32 0.0, %v2827
        %v2829 = vpop.f32.mrb[0].mxu0
        %v2830 = vpop.f32.mrb[0].mxu0
        %v2831 = vadd.f32 0.0, %v2830
        %v2832 = vpop.f32.mrb[0].mxu0
        %2833 = vdwg.mxu0
        %v2850 = vunpack.c.l.b16 %v2702
        %v2851 = vunpack.c.l.b16 %v2703
        %v2852 = vunpack.c.l.b16 %v2704
        %v2853 = vunpack.c.l.b16 %v2705
        %v2854 = vunpack.c.l.b16 %v2706
        %v2855 = vunpack.c.l.b16 %v2707
        %v2856 = vunpack.c.l.b16 %v2708
        %v2857 = vunpack.c.l.b16 %v2709
        %v2858 = vunpack.c.l.b16 %v2710
        %v2859 = vunpack.c.l.b16 %v2711
        %v2860 = vunpack.c.l.b16 %v2712
        %v2861 = vunpack.c.l.b16 %v2713
        %v2862 = vunpack.c.l.b16 %v2714
        %v2863 = vunpack.c.l.b16 %v2715
        %v2864 = vunpack.c.l.b16 %v2716
        %v2865 = vunpack.c.l.b16 %v2717
        %v2866 = vpack.c.b16 %v2851, %v2850
        %v2867 = vpack.c.b16 %v2853, %v2852
        %v2868 = vpack.c.b16 %v2855, %v2854
        %v2869 = vpack.c.b16 %v2857, %v2856
        %v2870 = vpack.c.b16 %v2859, %v2858
        %v2871 = vpack.c.b16 %v2861, %v2860
        %v2872 = vpack.c.b16 %v2863, %v2862
        %v2873 = vpack.c.b16 %v2865, %v2864
        %2882 = vmatprep.subr.bf16.mxu0 0
        %2883 = vmatpush1.bf16.msra.mxu0 %v2866
        %2884 = vmatprep.subr.bf16.mxu0 0
        %2885 = vmatpush1.bf16.msra.mxu0 %v2867
        %2886 = vmatprep.subr.bf16.mxu0 0
        %2887 = vmatpush1.bf16.msra.mxu0 %v2868
        %2888 = vmatprep.subr.bf16.mxu0 0
        %2889 = vmatpush1.bf16.msra.mxu0 %v2869
        %2890 = vmatprep.subr.bf16.mxu0 0
        %2891 = vmatpush1.bf16.msra.mxu0 %v2870
        %2892 = vmatprep.subr.bf16.mxu0 0
        %2893 = vmatpush1.bf16.msra.mxu0 %v2871
        %2894 = vmatprep.subr.bf16.mxu0 0
        %2895 = vmatpush1.bf16.msra.mxu0 %v2872
        %2896 = vmatprep.subr.bf16.mxu0 0
        %2897 = vmatpush1.bf16.msra.mxu0 %v2873
        %2898 = vmatprep.subr.bf16.mxu0 0
        %2899 = vmatpush1.bf16.msra.mxu0 0
        %2900 = vmatprep.subr.bf16.mxu0 0
        %2901 = vmatpush1.bf16.msra.mxu0 0
        %2902 = vmatprep.subr.bf16.mxu0 0
        %2903 = vmatpush1.bf16.msra.mxu0 0
        %2904 = vmatprep.subr.bf16.mxu0 0
        %2905 = vmatpush1.bf16.msra.mxu0 0
        %2906 = vmatprep.subr.bf16.mxu0 0
        %2907 = vmatpush1.bf16.msra.mxu0 0
        %2908 = vmatprep.subr.bf16.mxu0 0
        %2909 = vmatpush1.bf16.msra.mxu0 0
        %2910 = vmatprep.subr.bf16.mxu0 0
        %2911 = vmatpush1.bf16.msra.mxu0 0
        %2912 = vmatprep.subr.bf16.mxu0 0
        %2913 = vmatpush1.bf16.msra.mxu0 0
        %2914 = vmatprep.mubr.bf16.mxu0 0
        %2915 = vmatmul.mubr.bf16.gmra.mrb[0].mxu0 %v2718
        %v2916 = vpop.f32.mrb[0].mxu0
        %v2917 = vadd.f32 %v2820, %v2916
        %v2918 = vpop.f32.mrb[0].mxu0
        %v2919 = vpop.f32.mrb[0].mxu0
        %v2920 = vadd.f32 %v2823, %v2919
        %v2921 = vpop.f32.mrb[0].mxu0
        %2922 = vmatprep.mubr.bf16.mxu0 0
        %2923 = vmatmul.mubr.bf16.gmra.mrb[0].mxu0 %v2719
        %v2924 = vpop.f32.mrb[0].mxu0
        %v2925 = vadd.f32 %v2828, %v2924
        %v2926 = vpop.f32.mrb[0].mxu0
        %v2927 = vpop.f32.mrb[0].mxu0
        %v2928 = vadd.f32 %v2831, %v2927
        %v2929 = vpop.f32.mrb[0].mxu0
        %2930 = vdwg.mxu0
        %s2931 = scalar_lea.vmem %s8, 4
        %v2932 = vld [vmem:[%s2931] sm:$0x1]
        %v2934 = vlaneseq
        %v2935 = vshrl.u32 %v2934, 7
        %v2936 = vsub.s32 0, %v2935
        %v2937 = vrot.slane %v2932, %v2936
        %v2939 = vadd.f32 %v2917, %v2937
        %v2940 = vadd.f32 %v2920, %v2937
        %v2941 = vadd.f32 %v2925, %v2937
        %v2942 = vadd.f32 %v2928, %v2937
        %s2943 = scalar_lea.vmem %s1, 192
        %v2944 = vld [vmem:[%s2943] sm:$0xff]
        %v2945 = vld [vmem:[%s2943 + $0x8] sm:$0xf]
        %v2946 = vld [vmem:[%s2943 + $0xc] sm:$0xff]
        %v2947 = vld [vmem:[%s2943 + $0x14] sm:$0xf]
        %v2948 = vld [vmem:[%s2943 + $0x18] sm:$0xff]
        %v2949 = vld [vmem:[%s2943 + $0x20] sm:$0xf]
        %v2950 = vld [vmem:[%s2943 + $0x24] sm:$0xff]
        %v2951 = vld [vmem:[%s2943 + $0x2c] sm:$0xf]
        %v2952 = vld [vmem:[%s2943 + $0x30] sm:$0xff]
        %v2953 = vld [vmem:[%s2943 + $0x38] sm:$0xf]
        %v2954 = vld [vmem:[%s2943 + $0x3c] sm:$0xff]
        %v2955 = vld [vmem:[%s2943 + $0x44] sm:$0xf]
        %v2956 = vld [vmem:[%s2943 + $0x48] sm:$0xff]
        %v2957 = vld [vmem:[%s2943 + $0x50] sm:$0xf]
        %v2958 = vld [vmem:[%s2943 + $0x54] sm:$0xff]
        %v2959 = vld [vmem:[%s2943 + $0x5c] sm:$0xf]
        %v2960 = vld [vmem:[%s2943 + $0x60] sm:$0xff]
        %v2961 = vld [vmem:[%s2943 + $0x68] sm:$0xf]
        %v2962 = vld [vmem:[%s2943 + $0x6c] sm:$0xff]
        %v2963 = vld [vmem:[%s2943 + $0x74] sm:$0xf]
        %v2964 = vld [vmem:[%s2943 + $0x78] sm:$0xff]
        %v2965 = vld [vmem:[%s2943 + $0x80] sm:$0xf]
        %v2966 = vld [vmem:[%s2943 + $0x84] sm:$0xff]
        %v2967 = vld [vmem:[%s2943 + $0x8c] sm:$0xf]
        %v2968 = vld [vmem:[%s2943 + $0x90] sm:$0xff]
        %v2969 = vld [vmem:[%s2943 + $0x98] sm:$0xf]
        %v2970 = vld [vmem:[%s2943 + $0x9c] sm:$0xff]
        %v2971 = vld [vmem:[%s2943 + $0xa4] sm:$0xf]
        %v2972 = vld [vmem:[%s2943 + $0xa8] sm:$0xff]
        %v2973 = vld [vmem:[%s2943 + $0xb0] sm:$0xf]
        %v2974 = vld [vmem:[%s2943 + $0xb4] sm:$0xff]
        %v2975 = vld [vmem:[%s2943 + $0xbc] sm:$0xf]
        %v2976 = vpack.c.bf16 %v2940, %v2939
        %v2977 = vpack.c.bf16 %v2942, %v2941
        %s2978 = scalar_lea.vmem %s2, 3
        %v2979 = vld [vmem:[%s2978] sm:$0x7]
        %v2981 = vlaneseq
        %v2982 = vshrl.u32 %v2981, 7
        %v2983 = vsub.s32 0, %v2982
        %v2984 = vrot.slane %v2979, %v2983
        %v2985 = vlaneseq
        %v2986 = vshrl.u32 %v2985, 7
        %v2987 = vsub.s32 1, %v2986
        %v2988 = vrot.slane %v2979, %v2987
        %v2989 = vlaneseq
        %v2990 = vshrl.u32 %v2989, 7
        %v2991 = vsub.s32 2, %v2990
        %v2992 = vrot.slane %v2979, %v2991
        %v3028 = vunpack.c.l.b16 %v2944
        %v3029 = vunpack.c.h.b16 %v2944
        %v3030 = vunpack.c.l.b16 %v2945
        %v3031 = vunpack.c.l.b16 %v2946
        %v3032 = vunpack.c.h.b16 %v2946
        %v3033 = vunpack.c.l.b16 %v2947
        %v3034 = vunpack.c.l.b16 %v2948
        %v3035 = vunpack.c.h.b16 %v2948
        %v3036 = vunpack.c.l.b16 %v2949
        %v3037 = vunpack.c.l.b16 %v2950
        %v3038 = vunpack.c.h.b16 %v2950
        %v3039 = vunpack.c.l.b16 %v2951
        %v3040 = vunpack.c.l.b16 %v2952
        %v3041 = vunpack.c.h.b16 %v2952
        %v3042 = vunpack.c.l.b16 %v2953
        %v3043 = vunpack.c.l.b16 %v2954
        %v3044 = vunpack.c.h.b16 %v2954
        %v3045 = vunpack.c.l.b16 %v2955
        %v3046 = vunpack.c.l.b16 %v2956
        %v3047 = vunpack.c.h.b16 %v2956
        %v3048 = vunpack.c.l.b16 %v2957
        %v3049 = vunpack.c.l.b16 %v2958
        %v3050 = vunpack.c.h.b16 %v2958
        %v3051 = vunpack.c.l.b16 %v2959
        %v3052 = vunpack.c.l.b16 %v2960
        %v3053 = vunpack.c.h.b16 %v2960
        %v3054 = vunpack.c.l.b16 %v2961
        %v3055 = vunpack.c.l.b16 %v2962
        %v3056 = vunpack.c.h.b16 %v2962
        %v3057 = vunpack.c.l.b16 %v2963
        %v3058 = vunpack.c.l.b16 %v2964
        %v3059 = vunpack.c.h.b16 %v2964
        %v3060 = vunpack.c.l.b16 %v2965
        %v3061 = vunpack.c.l.b16 %v2966
        %v3062 = vunpack.c.h.b16 %v2966
        %v3063 = vunpack.c.l.b16 %v2967
        %v3064 = vunpack.c.l.b16 %v2968
        %v3065 = vunpack.c.h.b16 %v2968
        %v3066 = vunpack.c.l.b16 %v2969
        %v3067 = vunpack.c.l.b16 %v2970
        %v3068 = vunpack.c.h.b16 %v2970
        %v3069 = vunpack.c.l.b16 %v2971
        %v3070 = vunpack.c.l.b16 %v2972
        %v3071 = vunpack.c.h.b16 %v2972
        %v3072 = vunpack.c.l.b16 %v2973
        %v3073 = vunpack.c.l.b16 %v2974
        %v3074 = vunpack.c.h.b16 %v2974
        %v3075 = vunpack.c.l.b16 %v2975
        %v3076 = vpack.c.b16 %v3031, %v3028
        %v3077 = vpack.c.b16 %v3032, %v3029
        %v3078 = vpack.c.b16 %v3033, %v3030
        %v3079 = vpack.c.b16 %v3037, %v3034
        %v3080 = vpack.c.b16 %v3038, %v3035
        %v3081 = vpack.c.b16 %v3039, %v3036
        %v3082 = vpack.c.b16 %v3043, %v3040
        %v3083 = vpack.c.b16 %v3044, %v3041
        %v3084 = vpack.c.b16 %v3045, %v3042
        %v3085 = vpack.c.b16 %v3049, %v3046
        %v3086 = vpack.c.b16 %v3050, %v3047
        %v3087 = vpack.c.b16 %v3051, %v3048
        %v3088 = vpack.c.b16 %v3055, %v3052
        %v3089 = vpack.c.b16 %v3056, %v3053
        %v3090 = vpack.c.b16 %v3057, %v3054
        %v3091 = vpack.c.b16 %v3061, %v3058
        %v3092 = vpack.c.b16 %v3062, %v3059
        %v3093 = vpack.c.b16 %v3063, %v3060
        %v3094 = vpack.c.b16 %v3067, %v3064
        %v3095 = vpack.c.b16 %v3068, %v3065
        %v3096 = vpack.c.b16 %v3069, %v3066
        %v3097 = vpack.c.b16 %v3073, %v3070
        %v3098 = vpack.c.b16 %v3074, %v3071
        %v3099 = vpack.c.b16 %v3075, %v3072
        %3124 = vmatprep.subr.bf16.mxu0 %v3077
        %3125 = vmatpush1.bf16.msra.mxu0 %v3076
        %3126 = vmatprep.subr.bf16.mxu0 %v3080
        %3127 = vmatpush1.bf16.msra.mxu0 %v3079
        %3128 = vmatprep.subr.bf16.mxu0 %v3083
        %3129 = vmatpush1.bf16.msra.mxu0 %v3082
        %3130 = vmatprep.subr.bf16.mxu0 %v3086
        %3131 = vmatpush1.bf16.msra.mxu0 %v3085
        %3132 = vmatprep.subr.bf16.mxu0 %v3089
        %3133 = vmatpush1.bf16.msra.mxu0 %v3088
        %3134 = vmatprep.subr.bf16.mxu0 %v3092
        %3135 = vmatpush1.bf16.msra.mxu0 %v3091
        %3136 = vmatprep.subr.bf16.mxu0 %v3095
        %3137 = vmatpush1.bf16.msra.mxu0 %v3094
        %3138 = vmatprep.subr.bf16.mxu0 %v3098
        %3139 = vmatpush1.bf16.msra.mxu0 %v3097
        %3140 = vmatprep.subr.bf16.mxu0 0
        %3141 = vmatpush1.bf16.msra.mxu0 0
        %3142 = vmatprep.subr.bf16.mxu0 0
        %3143 = vmatpush1.bf16.msra.mxu0 0
        %3144 = vmatprep.subr.bf16.mxu0 0
        %3145 = vmatpush1.bf16.msra.mxu0 0
        %3146 = vmatprep.subr.bf16.mxu0 0
        %3147 = vmatpush1.bf16.msra.mxu0 0
        %3148 = vmatprep.subr.bf16.mxu0 0
        %3149 = vmatpush1.bf16.msra.mxu0 0
        %3150 = vmatprep.subr.bf16.mxu0 0
        %3151 = vmatpush1.bf16.msra.mxu0 0
        %3152 = vmatprep.subr.bf16.mxu0 0
        %3153 = vmatpush1.bf16.msra.mxu0 0
        %3154 = vmatprep.subr.bf16.mxu0 0
        %3155 = vmatpush1.bf16.msra.mxu0 0
        %3156 = vmatprep.mubr.bf16.mxu0 0
        %3157 = vmatmul.mubr.bf16.gmra.mrb[0].mxu0 %v2976
        %v3158 = vpop.f32.mrb[0].mxu0
        %v3159 = vadd.f32 %v2984, %v3158
        %v3160 = vpop.f32.mrb[0].mxu0
        %v3161 = vadd.f32 %v2988, %v3160
        %v3162 = vpop.f32.mrb[0].mxu0
        %v3163 = vadd.f32 %v2984, %v3162
        %v3164 = vpop.f32.mrb[0].mxu0
        %v3165 = vadd.f32 %v2988, %v3164
        %3166 = vmatprep.mubr.bf16.mxu0 0
        %3167 = vmatmul.mubr.bf16.gmra.mrb[0].mxu0 %v2977
        %v3168 = vpop.f32.mrb[0].mxu0
        %v3169 = vadd.f32 %v2984, %v3168
        %v3170 = vpop.f32.mrb[0].mxu0
        %v3171 = vadd.f32 %v2988, %v3170
        %v3172 = vpop.f32.mrb[0].mxu0
        %v3173 = vadd.f32 %v2984, %v3172
        %v3174 = vpop.f32.mrb[0].mxu0
        %v3175 = vadd.f32 %v2988, %v3174
        %3176 = vdwg.mxu0
        %3177 = vmatprep.subr.bf16.mxu0 0
        %3178 = vmatpush1.bf16.msra.mxu0 %v3078
        %3179 = vmatprep.subr.bf16.mxu0 0
        %3180 = vmatpush1.bf16.msra.mxu0 %v3081
        %3181 = vmatprep.subr.bf16.mxu0 0
        %3182 = vmatpush1.bf16.msra.mxu0 %v3084
        %3183 = vmatprep.subr.bf16.mxu0 0
        %3184 = vmatpush1.bf16.msra.mxu0 %v3087
        %3185 = vmatprep.subr.bf16.mxu0 0
        %3186 = vmatpush1.bf16.msra.mxu0 %v3090
        %3187 = vmatprep.subr.bf16.mxu0 0
        %3188 = vmatpush1.bf16.msra.mxu0 %v3093
        %3189 = vmatprep.subr.bf16.mxu0 0
        %3190 = vmatpush1.bf16.msra.mxu0 %v3096
        %3191 = vmatprep.subr.bf16.mxu0 0
        %3192 = vmatpush1.bf16.msra.mxu0 %v3099
        %3193 = vmatprep.subr.bf16.mxu0 0
        %3194 = vmatpush1.bf16.msra.mxu0 0
        %3195 = vmatprep.subr.bf16.mxu0 0
        %3196 = vmatpush1.bf16.msra.mxu0 0
        %3197 = vmatprep.subr.bf16.mxu0 0
        %3198 = vmatpush1.bf16.msra.mxu0 0
        %3199 = vmatprep.subr.bf16.mxu0 0
        %3200 = vmatpush1.bf16.msra.mxu0 0
        %3201 = vmatprep.subr.bf16.mxu0 0
        %3202 = vmatpush1.bf16.msra.mxu0 0
        %3203 = vmatprep.subr.bf16.mxu0 0
        %3204 = vmatpush1.bf16.msra.mxu0 0
        %3205 = vmatprep.subr.bf16.mxu0 0
        %3206 = vmatpush1.bf16.msra.mxu0 0
        %3207 = vmatprep.subr.bf16.mxu0 0
        %3208 = vmatpush1.bf16.msra.mxu0 0
        %3209 = vmatprep.mubr.bf16.mxu0 0
        %3210 = vmatmul.mubr.bf16.gmra.mrb[0].mxu0 %v2976
        %v3211 = vpop.f32.mrb[0].mxu0
        %v3212 = vadd.f32 %v2992, %v3211
        %v3213 = vpop.f32.mrb[0].mxu0
        %v3214 = vpop.f32.mrb[0].mxu0
        %v3215 = vadd.f32 %v2992, %v3214
        %v3216 = vpop.f32.mrb[0].mxu0
        %3217 = vmatprep.mubr.bf16.mxu0 0
        %3218 = vmatmul.mubr.bf16.gmra.mrb[0].mxu0 %v2977
        %v3219 = vpop.f32.mrb[0].mxu0
        %v3220 = vadd.f32 %v2992, %v3219
        %v3221 = vpop.f32.mrb[0].mxu0
        %v3222 = vpop.f32.mrb[0].mxu0
        %v3223 = vadd.f32 %v2992, %v3222
        %v3224 = vpop.f32.mrb[0].mxu0
        %3225 = vdwg.mxu0
        %s3226 = scalar_lea.vmem %s9, 6
        %v3227 = vld [vmem:[%s3226] sm:$0x1]
        %v3229 = vlaneseq
        %v3230 = vshrl.u32 %v3229, 7
        %v3231 = vsub.s32 0, %v3230
        %v3232 = vrot.slane %v3227, %v3231
        %v3234 = vmul.f32 %v3159, %v3232
        %v3235 = vmul.f32 %v3163, %v3232
        %v3236 = vmul.f32 %v3169, %v3232
        %v3237 = vmul.f32 %v3173, %v3232
        %v3238 = vmul.f32 %v3234, 0.5
        %v3239 = vmul.f32 %v3235, 0.5
        %v3240 = vmul.f32 %v3236, 0.5
        %v3241 = vmul.f32 %v3237, 0.5
        %v3242 = vtanh.pop %v3238
        %v3243 = vtanh.pop %v3239
        %v3244 = vtanh.pop %v3240
        %v3245 = vtanh.pop %v3241
        %v3246 = vmul.f32 %v3242, 0.5
        %v3247 = vmul.f32 %v3243, 0.5
        %v3248 = vmul.f32 %v3244, 0.5
        %v3249 = vmul.f32 %v3245, 0.5
        %v3250 = vadd.f32 %v3246, 0.5
        %v3251 = vadd.f32 %v3247, 0.5
        %v3252 = vadd.f32 %v3248, 0.5
        %v3253 = vadd.f32 %v3249, 0.5
        %v3254 = vmul.f32 %v3159, %v3250
        %v3255 = vmul.f32 %v3163, %v3251
        %v3256 = vmul.f32 %v3169, %v3252
        %v3257 = vmul.f32 %v3173, %v3253
        %s3258 = scalar_lea.vmem %s9, 7
        %v3259 = vld [vmem:[%s3258] sm:$0x1]
        %v3261 = vlaneseq
        %v3262 = vshrl.u32 %v3261, 7
        %v3263 = vsub.s32 0, %v3262
        %v3264 = vrot.slane %v3259, %v3263
        %v3266 = vmul.f32 %v3161, %v3264
        %v3267 = vmul.f32 %v3165, %v3264
        %v3268 = vmul.f32 %v3171, %v3264
        %v3269 = vmul.f32 %v3175, %v3264
        %v3270 = vmul.f32 %v3266, 0.5
        %v3271 = vmul.f32 %v3267, 0.5
        %v3272 = vmul.f32 %v3268, 0.5
        %v3273 = vmul.f32 %v3269, 0.5
        %v3274 = vtanh.pop %v3270
        %v3275 = vtanh.pop %v3271
        %v3276 = vtanh.pop %v3272
        %v3277 = vtanh.pop %v3273
        %v3278 = vmul.f32 %v3274, 0.5
        %v3279 = vmul.f32 %v3275, 0.5
        %v3280 = vmul.f32 %v3276, 0.5
        %v3281 = vmul.f32 %v3277, 0.5
        %v3282 = vadd.f32 %v3278, 0.5
        %v3283 = vadd.f32 %v3279, 0.5
        %v3284 = vadd.f32 %v3280, 0.5
        %v3285 = vadd.f32 %v3281, 0.5
        %v3286 = vmul.f32 %v3161, %v3282
        %v3287 = vmul.f32 %v3165, %v3283
        %v3288 = vmul.f32 %v3171, %v3284
        %v3289 = vmul.f32 %v3175, %v3285
        %s3290 = scalar_lea.vmem %s9, 9
        %v3291 = vld [vmem:[%s3290] sm:$0x1]
        %v3293 = vlaneseq
        %v3294 = vshrl.u32 %v3293, 7
        %v3295 = vsub.s32 0, %v3294
        %v3296 = vrot.slane %v3291, %v3295
        %v3298 = vmul.f32 %v3212, %v3296
        %v3299 = vmul.f32 %v3215, %v3296
        %v3300 = vmul.f32 %v3220, %v3296
        %v3301 = vmul.f32 %v3223, %v3296
        %v3302 = vmul.f32 %v3298, 0.5
        %v3303 = vmul.f32 %v3299, 0.5
        %v3304 = vmul.f32 %v3300, 0.5
        %v3305 = vmul.f32 %v3301, 0.5
        %v3306 = vtanh.pop %v3302
        %v3307 = vtanh.pop %v3303
        %v3308 = vtanh.pop %v3304
        %v3309 = vtanh.pop %v3305
        %v3310 = vmul.f32 %v3306, 0.5
        %v3311 = vmul.f32 %v3307, 0.5
        %v3312 = vmul.f32 %v3308, 0.5
        %v3313 = vmul.f32 %v3309, 0.5
        %v3314 = vadd.f32 %v3310, 0.5
        %v3315 = vadd.f32 %v3311, 0.5
        %v3316 = vadd.f32 %v3312, 0.5
        %v3317 = vadd.f32 %v3313, 0.5
        %v3318 = vmul.f32 %v3212, %v3314
        %v3319 = vmul.f32 %v3215, %v3315
        %v3320 = vmul.f32 %v3220, %v3316
        %v3321 = vmul.f32 %v3223, %v3317
        %s3322 = scalar_lea.vmem %s8, 5
        %v3323 = vld [vmem:[%s3322] sm:$0x1]
        %s3324 = scalar_lea.vmem %s9, 8
        %v3325 = vld [vmem:[%s3324] sm:$0x1]
        %s3326 = scalar_lea.vmem [#allocation2], 256
        %v3327 = vld [vmem:[%s3326] sm:$0xf]
        %v3328 = vld [vmem:[%s3326 + $0x4] sm:$0xf]
        %v3329 = vld [vmem:[%s3326 + $0x8] sm:$0xf]
        %v3330 = vld [vmem:[%s3326 + $0xc] sm:$0xf]
        %v3331 = vld [vmem:[%s3326 + $0x10] sm:$0xf]
        %v3332 = vld [vmem:[%s3326 + $0x14] sm:$0xf]
        %v3333 = vld [vmem:[%s3326 + $0x18] sm:$0xf]
        %v3334 = vld [vmem:[%s3326 + $0x1c] sm:$0xf]
        %v3335 = vld [vmem:[%s3326 + $0x20] sm:$0xf]
        %v3336 = vld [vmem:[%s3326 + $0x24] sm:$0xf]
        %v3337 = vld [vmem:[%s3326 + $0x28] sm:$0xf]
        %v3338 = vld [vmem:[%s3326 + $0x2c] sm:$0xf]
        %v3339 = vld [vmem:[%s3326 + $0x30] sm:$0xf]
        %v3340 = vld [vmem:[%s3326 + $0x34] sm:$0xf]
        %v3341 = vld [vmem:[%s3326 + $0x38] sm:$0xf]
        %v3342 = vld [vmem:[%s3326 + $0x3c] sm:$0xf]
        %v3343 = vpack.c.bf16 %v3287, %v3286
        %v3344 = vpack.c.bf16 %v3289, %v3288
        %v3345 = vrot.slane %v3286, 7
        %v3346 = vrot.slane %v3287, 7
        %v3347 = vrot.slane %v3288, 7
        %v3348 = vrot.slane %v3289, 7
        %v3349 = vsel %vm921, %v3347, %v3348
        %v3350 = vsel %vm921, %v3346, %v3347
        %v3351 = vsel %vm921, %v3345, %v3346
        %v3352 = vsel %vm921, %v3348, %v3345
        %v3353 = vsel %vm477, %v3352, 0.0
        %v3354 = vsel %vm478, %v3351, 0.0
        %v3355 = vsel %vm479, %v3350, 0.0
        %v3356 = vsel %vm480, %v3349, 0.0
        %s3357 = scalar_lea.vmem [#allocation2], 192
        %v3358 = vld [vmem:[%s3357] sm:$0xf]
        %v3359 = vld [vmem:[%s3357 + $0x4] sm:$0xf]
        %v3360 = vld [vmem:[%s3357 + $0x8] sm:$0xf]
        %v3361 = vld [vmem:[%s3357 + $0xc] sm:$0xf]
        %v3362 = vld [vmem:[%s3357 + $0x10] sm:$0xf]
        %v3363 = vld [vmem:[%s3357 + $0x14] sm:$0xf]
        %v3364 = vld [vmem:[%s3357 + $0x18] sm:$0xf]
        %v3365 = vld [vmem:[%s3357 + $0x1c] sm:$0xf]
        %v3366 = vld [vmem:[%s3357 + $0x20] sm:$0xf]
        %v3367 = vld [vmem:[%s3357 + $0x24] sm:$0xf]
        %v3368 = vld [vmem:[%s3357 + $0x28] sm:$0xf]
        %v3369 = vld [vmem:[%s3357 + $0x2c] sm:$0xf]
        %v3370 = vld [vmem:[%s3357 + $0x30] sm:$0xf]
        %v3371 = vld [vmem:[%s3357 + $0x34] sm:$0xf]
        %v3372 = vld [vmem:[%s3357 + $0x38] sm:$0xf]
        %v3373 = vld [vmem:[%s3357 + $0x3c] sm:$0xf]
        %v3374 = vpack.c.bf16 %v3354, %v3353
        %v3375 = vpack.c.bf16 %v3356, %v3355
        %v3392 = vunpack.c.l.b16 %v3358
        %v3393 = vunpack.c.l.b16 %v3359
        %v3394 = vunpack.c.l.b16 %v3360
        %v3395 = vunpack.c.l.b16 %v3361
        %v3396 = vunpack.c.l.b16 %v3362
        %v3397 = vunpack.c.l.b16 %v3363
        %v3398 = vunpack.c.l.b16 %v3364
        %v3399 = vunpack.c.l.b16 %v3365
        %v3400 = vunpack.c.l.b16 %v3366
        %v3401 = vunpack.c.l.b16 %v3367
        %v3402 = vunpack.c.l.b16 %v3368
        %v3403 = vunpack.c.l.b16 %v3369
        %v3404 = vunpack.c.l.b16 %v3370
        %v3405 = vunpack.c.l.b16 %v3371
        %v3406 = vunpack.c.l.b16 %v3372
        %v3407 = vunpack.c.l.b16 %v3373
        %v3408 = vpack.c.b16 %v3393, %v3392
        %v3409 = vpack.c.b16 %v3395, %v3394
        %v3410 = vpack.c.b16 %v3397, %v3396
        %v3411 = vpack.c.b16 %v3399, %v3398
        %v3412 = vpack.c.b16 %v3401, %v3400
        %v3413 = vpack.c.b16 %v3403, %v3402
        %v3414 = vpack.c.b16 %v3405, %v3404
        %v3415 = vpack.c.b16 %v3407, %v3406
        %3424 = vmatprep.subr.bf16.mxu0 0
        %3425 = vmatpush1.bf16.msra.mxu0 %v3408
        %3426 = vmatprep.subr.bf16.mxu0 0
        %3427 = vmatpush1.bf16.msra.mxu0 %v3409
        %3428 = vmatprep.subr.bf16.mxu0 0
        %3429 = vmatpush1.bf16.msra.mxu0 %v3410
        %3430 = vmatprep.subr.bf16.mxu0 0
        %3431 = vmatpush1.bf16.msra.mxu0 %v3411
        %3432 = vmatprep.subr.bf16.mxu0 0
        %3433 = vmatpush1.bf16.msra.mxu0 %v3412
        %3434 = vmatprep.subr.bf16.mxu0 0
        %3435 = vmatpush1.bf16.msra.mxu0 %v3413
        %3436 = vmatprep.subr.bf16.mxu0 0
        %3437 = vmatpush1.bf16.msra.mxu0 %v3414
        %3438 = vmatprep.subr.bf16.mxu0 0
        %3439 = vmatpush1.bf16.msra.mxu0 %v3415
        %3440 = vmatprep.subr.bf16.mxu0 0
        %3441 = vmatpush1.bf16.msra.mxu0 0
        %3442 = vmatprep.subr.bf16.mxu0 0
        %3443 = vmatpush1.bf16.msra.mxu0 0
        %3444 = vmatprep.subr.bf16.mxu0 0
        %3445 = vmatpush1.bf16.msra.mxu0 0
        %3446 = vmatprep.subr.bf16.mxu0 0
        %3447 = vmatpush1.bf16.msra.mxu0 0
        %3448 = vmatprep.subr.bf16.mxu0 0
        %3449 = vmatpush1.bf16.msra.mxu0 0
        %3450 = vmatprep.subr.bf16.mxu0 0
        %3451 = vmatpush1.bf16.msra.mxu0 0
        %3452 = vmatprep.subr.bf16.mxu0 0
        %3453 = vmatpush1.bf16.msra.mxu0 0
        %3454 = vmatprep.subr.bf16.mxu0 0
        %3455 = vmatpush1.bf16.msra.mxu0 0
        %3456 = vmatprep.mubr.bf16.mxu0 0
        %3457 = vmatmul.mubr.bf16.gmra.mrb[0].mxu0 %v3374
        %v3458 = vpop.f32.mrb[0].mxu0
        %v3459 = vadd.f32 0.0, %v3458
        %v3460 = vpop.f32.mrb[0].mxu0
        %v3461 = vpop.f32.mrb[0].mxu0
        %v3462 = vadd.f32 0.0, %v3461
        %v3463 = vpop.f32.mrb[0].mxu0
        %3464 = vmatprep.mubr.bf16.mxu0 0
        %3465 = vmatmul.mubr.bf16.gmra.mrb[0].mxu0 %v3375
        %v3466 = vpop.f32.mrb[0].mxu0
        %v3467 = vadd.f32 0.0, %v3466
        %v3468 = vpop.f32.mrb[0].mxu0
        %v3469 = vpop.f32.mrb[0].mxu0
        %v3470 = vadd.f32 0.0, %v3469
        %v3471 = vpop.f32.mrb[0].mxu0
        %3472 = vdwg.mxu0
        %v3489 = vunpack.c.l.b16 %v3327
        %v3490 = vunpack.c.l.b16 %v3328
        %v3491 = vunpack.c.l.b16 %v3329
        %v3492 = vunpack.c.l.b16 %v3330
        %v3493 = vunpack.c.l.b16 %v3331
        %v3494 = vunpack.c.l.b16 %v3332
        %v3495 = vunpack.c.l.b16 %v3333
        %v3496 = vunpack.c.l.b16 %v3334
        %v3497 = vunpack.c.l.b16 %v3335
        %v3498 = vunpack.c.l.b16 %v3336
        %v3499 = vunpack.c.l.b16 %v3337
        %v3500 = vunpack.c.l.b16 %v3338
        %v3501 = vunpack.c.l.b16 %v3339
        %v3502 = vunpack.c.l.b16 %v3340
        %v3503 = vunpack.c.l.b16 %v3341
        %v3504 = vunpack.c.l.b16 %v3342
        %v3505 = vpack.c.b16 %v3490, %v3489
        %v3506 = vpack.c.b16 %v3492, %v3491
        %v3507 = vpack.c.b16 %v3494, %v3493
        %v3508 = vpack.c.b16 %v3496, %v3495
        %v3509 = vpack.c.b16 %v3498, %v3497
        %v3510 = vpack.c.b16 %v3500, %v3499
        %v3511 = vpack.c.b16 %v3502, %v3501
        %v3512 = vpack.c.b16 %v3504, %v3503
        %3521 = vmatprep.subr.bf16.mxu0 0
        %3522 = vmatpush1.bf16.msra.mxu0 %v3505
        %3523 = vmatprep.subr.bf16.mxu0 0
        %3524 = vmatpush1.bf16.msra.mxu0 %v3506
        %3525 = vmatprep.subr.bf16.mxu0 0
        %3526 = vmatpush1.bf16.msra.mxu0 %v3507
        %3527 = vmatprep.subr.bf16.mxu0 0
        %3528 = vmatpush1.bf16.msra.mxu0 %v3508
        %3529 = vmatprep.subr.bf16.mxu0 0
        %3530 = vmatpush1.bf16.msra.mxu0 %v3509
        %3531 = vmatprep.subr.bf16.mxu0 0
        %3532 = vmatpush1.bf16.msra.mxu0 %v3510
        %3533 = vmatprep.subr.bf16.mxu0 0
        %3534 = vmatpush1.bf16.msra.mxu0 %v3511
        %3535 = vmatprep.subr.bf16.mxu0 0
        %3536 = vmatpush1.bf16.msra.mxu0 %v3512
        %3537 = vmatprep.subr.bf16.mxu0 0
        %3538 = vmatpush1.bf16.msra.mxu0 0
        %3539 = vmatprep.subr.bf16.mxu0 0
        %3540 = vmatpush1.bf16.msra.mxu0 0
        %3541 = vmatprep.subr.bf16.mxu0 0
        %3542 = vmatpush1.bf16.msra.mxu0 0
        %3543 = vmatprep.subr.bf16.mxu0 0
        %3544 = vmatpush1.bf16.msra.mxu0 0
        %3545 = vmatprep.subr.bf16.mxu0 0
        %3546 = vmatpush1.bf16.msra.mxu0 0
        %3547 = vmatprep.subr.bf16.mxu0 0
        %3548 = vmatpush1.bf16.msra.mxu0 0
        %3549 = vmatprep.subr.bf16.mxu0 0
        %3550 = vmatpush1.bf16.msra.mxu0 0
        %3551 = vmatprep.subr.bf16.mxu0 0
        %3552 = vmatpush1.bf16.msra.mxu0 0
        %3553 = vmatprep.mubr.bf16.mxu0 0
        %3554 = vmatmul.mubr.bf16.gmra.mrb[0].mxu0 %v3343
        %v3555 = vpop.f32.mrb[0].mxu0
        %v3556 = vadd.f32 %v3459, %v3555
        %v3557 = vpop.f32.mrb[0].mxu0
        %v3558 = vpop.f32.mrb[0].mxu0
        %v3559 = vadd.f32 %v3462, %v3558
        %v3560 = vpop.f32.mrb[0].mxu0
        %3561 = vmatprep.mubr.bf16.mxu0 0
        %3562 = vmatmul.mubr.bf16.gmra.mrb[0].mxu0 %v3344
        %v3563 = vpop.f32.mrb[0].mxu0
        %v3564 = vadd.f32 %v3467, %v3563
        %v3565 = vpop.f32.mrb[0].mxu0
        %v3566 = vpop.f32.mrb[0].mxu0
        %v3567 = vadd.f32 %v3470, %v3566
        %v3568 = vpop.f32.mrb[0].mxu0
        %3569 = vdwg.mxu0
        %v3570 = vrot.slane %v3286, 1
        %v3571 = vrot.slane %v3287, 1
        %v3572 = vrot.slane %v3288, 1
        %v3573 = vrot.slane %v3289, 1
        %v3574 = vsel %vm1146, %v3572, %v3573
        %v3575 = vsel %vm1146, %v3571, %v3572
        %v3576 = vsel %vm1146, %v3570, %v3571
        %v3577 = vsel %vm1146, %v3573, %v3570
        %v3578 = vsel %vm493, %v3576, 0.0
        %v3579 = vsel %vm494, %v3575, 0.0
        %v3580 = vsel %vm495, %v3574, 0.0
        %v3581 = vsel %vm496, %v3577, 0.0
        %s3582 = scalar_lea.vmem [#allocation2], 320
        %v3583 = vld [vmem:[%s3582] sm:$0xf]
        %v3584 = vld [vmem:[%s3582 + $0x4] sm:$0xf]
        %v3585 = vld [vmem:[%s3582 + $0x8] sm:$0xf]
        %v3586 = vld [vmem:[%s3582 + $0xc] sm:$0xf]
        %v3587 = vld [vmem:[%s3582 + $0x10] sm:$0xf]
        %v3588 = vld [vmem:[%s3582 + $0x14] sm:$0xf]
        %v3589 = vld [vmem:[%s3582 + $0x18] sm:$0xf]
        %v3590 = vld [vmem:[%s3582 + $0x1c] sm:$0xf]
        %v3591 = vld [vmem:[%s3582 + $0x20] sm:$0xf]
        %v3592 = vld [vmem:[%s3582 + $0x24] sm:$0xf]
        %v3593 = vld [vmem:[%s3582 + $0x28] sm:$0xf]
        %v3594 = vld [vmem:[%s3582 + $0x2c] sm:$0xf]
        %v3595 = vld [vmem:[%s3582 + $0x30] sm:$0xf]
        %v3596 = vld [vmem:[%s3582 + $0x34] sm:$0xf]
        %v3597 = vld [vmem:[%s3582 + $0x38] sm:$0xf]
        %v3598 = vld [vmem:[%s3582 + $0x3c] sm:$0xf]
        %v3599 = vpack.c.bf16 %v3579, %v3578
        %v3600 = vpack.c.bf16 %v3581, %v3580
        %v3617 = vunpack.c.l.b16 %v3583
        %v3618 = vunpack.c.l.b16 %v3584
        %v3619 = vunpack.c.l.b16 %v3585
        %v3620 = vunpack.c.l.b16 %v3586
        %v3621 = vunpack.c.l.b16 %v3587
        %v3622 = vunpack.c.l.b16 %v3588
        %v3623 = vunpack.c.l.b16 %v3589
        %v3624 = vunpack.c.l.b16 %v3590
        %v3625 = vunpack.c.l.b16 %v3591
        %v3626 = vunpack.c.l.b16 %v3592
        %v3627 = vunpack.c.l.b16 %v3593
        %v3628 = vunpack.c.l.b16 %v3594
        %v3629 = vunpack.c.l.b16 %v3595
        %v3630 = vunpack.c.l.b16 %v3596
        %v3631 = vunpack.c.l.b16 %v3597
        %v3632 = vunpack.c.l.b16 %v3598
        %v3633 = vpack.c.b16 %v3618, %v3617
        %v3634 = vpack.c.b16 %v3620, %v3619
        %v3635 = vpack.c.b16 %v3622, %v3621
        %v3636 = vpack.c.b16 %v3624, %v3623
        %v3637 = vpack.c.b16 %v3626, %v3625
        %v3638 = vpack.c.b16 %v3628, %v3627
        %v3639 = vpack.c.b16 %v3630, %v3629
        %v3640 = vpack.c.b16 %v3632, %v3631
        %3649 = vmatprep.subr.bf16.mxu0 0
        %3650 = vmatpush1.bf16.msra.mxu0 %v3633
        %3651 = vmatprep.subr.bf16.mxu0 0
        %3652 = vmatpush1.bf16.msra.mxu0 %v3634
        %3653 = vmatprep.subr.bf16.mxu0 0
        %3654 = vmatpush1.bf16.msra.mxu0 %v3635
        %3655 = vmatprep.subr.bf16.mxu0 0
        %3656 = vmatpush1.bf16.msra.mxu0 %v3636
        %3657 = vmatprep.subr.bf16.mxu0 0
        %3658 = vmatpush1.bf16.msra.mxu0 %v3637
        %3659 = vmatprep.subr.bf16.mxu0 0
        %3660 = vmatpush1.bf16.msra.mxu0 %v3638
        %3661 = vmatprep.subr.bf16.mxu0 0
        %3662 = vmatpush1.bf16.msra.mxu0 %v3639
        %3663 = vmatprep.subr.bf16.mxu0 0
        %3664 = vmatpush1.bf16.msra.mxu0 %v3640
        %3665 = vmatprep.subr.bf16.mxu0 0
        %3666 = vmatpush1.bf16.msra.mxu0 0
        %3667 = vmatprep.subr.bf16.mxu0 0
        %3668 = vmatpush1.bf16.msra.mxu0 0
        %3669 = vmatprep.subr.bf16.mxu0 0
        %3670 = vmatpush1.bf16.msra.mxu0 0
        %3671 = vmatprep.subr.bf16.mxu0 0
        %3672 = vmatpush1.bf16.msra.mxu0 0
        %3673 = vmatprep.subr.bf16.mxu0 0
        %3674 = vmatpush1.bf16.msra.mxu0 0
        %3675 = vmatprep.subr.bf16.mxu0 0
        %3676 = vmatpush1.bf16.msra.mxu0 0
        %3677 = vmatprep.subr.bf16.mxu0 0
        %3678 = vmatpush1.bf16.msra.mxu0 0
        %3679 = vmatprep.subr.bf16.mxu0 0
        %3680 = vmatpush1.bf16.msra.mxu0 0
        %3681 = vmatprep.mubr.bf16.mxu0 0
        %3682 = vmatmul.mubr.bf16.gmra.mrb[0].mxu0 %v3599
        %v3683 = vpop.f32.mrb[0].mxu0
        %v3684 = vadd.f32 0.0, %v3683
        %v3685 = vpop.f32.mrb[0].mxu0
        %v3686 = vpop.f32.mrb[0].mxu0
        %v3687 = vadd.f32 0.0, %v3686
        %v3688 = vpop.f32.mrb[0].mxu0
        %3689 = vmatprep.mubr.bf16.mxu0 0
        %3690 = vmatmul.mubr.bf16.gmra.mrb[0].mxu0 %v3600
        %v3691 = vpop.f32.mrb[0].mxu0
        %v3692 = vadd.f32 0.0, %v3691
        %v3693 = vpop.f32.mrb[0].mxu0
        %v3694 = vpop.f32.mrb[0].mxu0
        %v3695 = vadd.f32 0.0, %v3694
        %v3696 = vpop.f32.mrb[0].mxu0
        %3697 = vdwg.mxu0
        %v3698 = vadd.f32 %v3556, %v3684
        %v3699 = vadd.f32 %v3559, %v3687
        %v3700 = vadd.f32 %v3564, %v3692
        %v3701 = vadd.f32 %v3567, %v3695
        %v3703 = vlaneseq
        %v3704 = vshrl.u32 %v3703, 7
        %v3705 = vsub.s32 0, %v3704
        %v3706 = vrot.slane %v3323, %v3705
        %v3708 = vadd.f32 %v3698, %v3706
        %v3709 = vadd.f32 %v3699, %v3706
        %v3710 = vadd.f32 %v3700, %v3706
        %v3711 = vadd.f32 %v3701, %v3706
        %v3713 = vlaneseq
        %v3714 = vshrl.u32 %v3713, 7
        %v3715 = vsub.s32 0, %v3714
        %v3716 = vrot.slane %v3325, %v3715
        %v3718 = vmul.f32 %v3708, %v3716
        %v3719 = vmul.f32 %v3709, %v3716
        %v3720 = vmul.f32 %v3710, %v3716
        %v3721 = vmul.f32 %v3711, %v3716
        %v3722 = vmul.f32 %v3718, 0.5
        %v3723 = vmul.f32 %v3719, 0.5
        %v3724 = vmul.f32 %v3720, 0.5
        %v3725 = vmul.f32 %v3721, 0.5
        %v3726 = vtanh.pop %v3722
        %v3727 = vtanh.pop %v3723
        %v3728 = vtanh.pop %v3724
        %v3729 = vtanh.pop %v3725
        %v3730 = vmul.f32 %v3726, 0.5
        %v3731 = vmul.f32 %v3727, 0.5
        %v3732 = vmul.f32 %v3728, 0.5
        %v3733 = vmul.f32 %v3729, 0.5
        %v3734 = vadd.f32 %v3730, 0.5
        %v3735 = vadd.f32 %v3731, 0.5
        %v3736 = vadd.f32 %v3732, 0.5
        %v3737 = vadd.f32 %v3733, 0.5
        %v3738 = vmul.f32 %v3708, %v3734
        %v3739 = vmul.f32 %v3709, %v3735
        %v3740 = vmul.f32 %v3710, %v3736
        %v3741 = vmul.f32 %v3711, %v3737
        %s3742 = scalar_lea.vmem %s8, 6
        %v3743 = vld [vmem:[%s3742] sm:$0x1]
        %s3744 = scalar_lea.vmem %s9, 10
        %v3745 = vld [vmem:[%s3744] sm:$0x1]
        %s3746 = scalar_lea.vmem %s4, 448
        %v3747 = vld [vmem:[%s3746] sm:$0xf]
        %v3748 = vld [vmem:[%s3746 + $0x4] sm:$0xf]
        %v3749 = vld [vmem:[%s3746 + $0x8] sm:$0xf]
        %v3750 = vld [vmem:[%s3746 + $0xc] sm:$0xf]
        %v3751 = vld [vmem:[%s3746 + $0x10] sm:$0xf]
        %v3752 = vld [vmem:[%s3746 + $0x14] sm:$0xf]
        %v3753 = vld [vmem:[%s3746 + $0x18] sm:$0xf]
        %v3754 = vld [vmem:[%s3746 + $0x1c] sm:$0xf]
        %v3755 = vld [vmem:[%s3746 + $0x20] sm:$0xf]
        %v3756 = vld [vmem:[%s3746 + $0x24] sm:$0xf]
        %v3757 = vld [vmem:[%s3746 + $0x28] sm:$0xf]
        %v3758 = vld [vmem:[%s3746 + $0x2c] sm:$0xf]
        %v3759 = vld [vmem:[%s3746 + $0x30] sm:$0xf]
        %v3760 = vld [vmem:[%s3746 + $0x34] sm:$0xf]
        %v3761 = vld [vmem:[%s3746 + $0x38] sm:$0xf]
        %v3762 = vld [vmem:[%s3746 + $0x3c] sm:$0xf]
        %v3763 = vpack.c.bf16 %v3319, %v3318
        %v3764 = vpack.c.bf16 %v3321, %v3320
        %v3765 = vrot.slane %v3318, 6
        %v3766 = vrot.slane %v3319, 6
        %v3767 = vrot.slane %v3320, 6
        %v3768 = vrot.slane %v3321, 6
        %v3769 = vsel %vm1342, %v3767, %v3768
        %v3770 = vsel %vm1342, %v3766, %v3767
        %v3771 = vsel %vm1342, %v3765, %v3766
        %v3772 = vsel %vm1342, %v3768, %v3765
        %v3773 = vsel %vm461, %v3772, 0.0
        %v3774 = vsel %vm462, %v3771, 0.0
        %v3775 = vsel %vm463, %v3770, 0.0
        %v3776 = vsel %vm464, %v3769, 0.0
        %s3777 = scalar_lea.vmem %s4, 320
        %v3778 = vld [vmem:[%s3777] sm:$0xf]
        %v3779 = vld [vmem:[%s3777 + $0x4] sm:$0xf]
        %v3780 = vld [vmem:[%s3777 + $0x8] sm:$0xf]
        %v3781 = vld [vmem:[%s3777 + $0xc] sm:$0xf]
        %v3782 = vld [vmem:[%s3777 + $0x10] sm:$0xf]
        %v3783 = vld [vmem:[%s3777 + $0x14] sm:$0xf]
        %v3784 = vld [vmem:[%s3777 + $0x18] sm:$0xf]
        %v3785 = vld [vmem:[%s3777 + $0x1c] sm:$0xf]
        %v3786 = vld [vmem:[%s3777 + $0x20] sm:$0xf]
        %v3787 = vld [vmem:[%s3777 + $0x24] sm:$0xf]
        %v3788 = vld [vmem:[%s3777 + $0x28] sm:$0xf]
        %v3789 = vld [vmem:[%s3777 + $0x2c] sm:$0xf]
        %v3790 = vld [vmem:[%s3777 + $0x30] sm:$0xf]
        %v3791 = vld [vmem:[%s3777 + $0x34] sm:$0xf]
        %v3792 = vld [vmem:[%s3777 + $0x38] sm:$0xf]
        %v3793 = vld [vmem:[%s3777 + $0x3c] sm:$0xf]
        %v3794 = vpack.c.bf16 %v3774, %v3773
        %v3795 = vpack.c.bf16 %v3776, %v3775
        %v3812 = vunpack.c.l.b16 %v3778
        %v3813 = vunpack.c.l.b16 %v3779
        %v3814 = vunpack.c.l.b16 %v3780
        %v3815 = vunpack.c.l.b16 %v3781
        %v3816 = vunpack.c.l.b16 %v3782
        %v3817 = vunpack.c.l.b16 %v3783
        %v3818 = vunpack.c.l.b16 %v3784
        %v3819 = vunpack.c.l.b16 %v3785
        %v3820 = vunpack.c.l.b16 %v3786
        %v3821 = vunpack.c.l.b16 %v3787
        %v3822 = vunpack.c.l.b16 %v3788
        %v3823 = vunpack.c.l.b16 %v3789
        %v3824 = vunpack.c.l.b16 %v3790
        %v3825 = vunpack.c.l.b16 %v3791
        %v3826 = vunpack.c.l.b16 %v3792
        %v3827 = vunpack.c.l.b16 %v3793
        %v3828 = vpack.c.b16 %v3813, %v3812
        %v3829 = vpack.c.b16 %v3815, %v3814
        %v3830 = vpack.c.b16 %v3817, %v3816
        %v3831 = vpack.c.b16 %v3819, %v3818
        %v3832 = vpack.c.b16 %v3821, %v3820
        %v3833 = vpack.c.b16 %v3823, %v3822
        %v3834 = vpack.c.b16 %v3825, %v3824
        %v3835 = vpack.c.b16 %v3827, %v3826
        %3844 = vmatprep.subr.bf16.mxu0 0
        %3845 = vmatpush1.bf16.msra.mxu0 %v3828
        %3846 = vmatprep.subr.bf16.mxu0 0
        %3847 = vmatpush1.bf16.msra.mxu0 %v3829
        %3848 = vmatprep.subr.bf16.mxu0 0
        %3849 = vmatpush1.bf16.msra.mxu0 %v3830
        %3850 = vmatprep.subr.bf16.mxu0 0
        %3851 = vmatpush1.bf16.msra.mxu0 %v3831
        %3852 = vmatprep.subr.bf16.mxu0 0
        %3853 = vmatpush1.bf16.msra.mxu0 %v3832
        %3854 = vmatprep.subr.bf16.mxu0 0
        %3855 = vmatpush1.bf16.msra.mxu0 %v3833
        %3856 = vmatprep.subr.bf16.mxu0 0
        %3857 = vmatpush1.bf16.msra.mxu0 %v3834
        %3858 = vmatprep.subr.bf16.mxu0 0
        %3859 = vmatpush1.bf16.msra.mxu0 %v3835
        %3860 = vmatprep.subr.bf16.mxu0 0
        %3861 = vmatpush1.bf16.msra.mxu0 0
        %3862 = vmatprep.subr.bf16.mxu0 0
        %3863 = vmatpush1.bf16.msra.mxu0 0
        %3864 = vmatprep.subr.bf16.mxu0 0
        %3865 = vmatpush1.bf16.msra.mxu0 0
        %3866 = vmatprep.subr.bf16.mxu0 0
        %3867 = vmatpush1.bf16.msra.mxu0 0
        %3868 = vmatprep.subr.bf16.mxu0 0
        %3869 = vmatpush1.bf16.msra.mxu0 0
        %3870 = vmatprep.subr.bf16.mxu0 0
        %3871 = vmatpush1.bf16.msra.mxu0 0
        %3872 = vmatprep.subr.bf16.mxu0 0
        %3873 = vmatpush1.bf16.msra.mxu0 0
        %3874 = vmatprep.subr.bf16.mxu0 0
        %3875 = vmatpush1.bf16.msra.mxu0 0
        %3876 = vmatprep.mubr.bf16.mxu0 0
        %3877 = vmatmul.mubr.bf16.gmra.mrb[0].mxu0 %v3794
        %v3878 = vpop.f32.mrb[0].mxu0
        %v3879 = vadd.f32 0.0, %v3878
        %v3880 = vpop.f32.mrb[0].mxu0
        %v3881 = vpop.f32.mrb[0].mxu0
        %v3882 = vadd.f32 0.0, %v3881
        %v3883 = vpop.f32.mrb[0].mxu0
        %3884 = vmatprep.mubr.bf16.mxu0 0
        %3885 = vmatmul.mubr.bf16.gmra.mrb[0].mxu0 %v3795
        %v3886 = vpop.f32.mrb[0].mxu0
        %v3887 = vadd.f32 0.0, %v3886
        %v3888 = vpop.f32.mrb[0].mxu0
        %v3889 = vpop.f32.mrb[0].mxu0
        %v3890 = vadd.f32 0.0, %v3889
        %v3891 = vpop.f32.mrb[0].mxu0
        %3892 = vdwg.mxu0
        %v3909 = vunpack.c.l.b16 %v3747
        %v3910 = vunpack.c.l.b16 %v3748
        %v3911 = vunpack.c.l.b16 %v3749
        %v3912 = vunpack.c.l.b16 %v3750
        %v3913 = vunpack.c.l.b16 %v3751
        %v3914 = vunpack.c.l.b16 %v3752
        %v3915 = vunpack.c.l.b16 %v3753
        %v3916 = vunpack.c.l.b16 %v3754
        %v3917 = vunpack.c.l.b16 %v3755
        %v3918 = vunpack.c.l.b16 %v3756
        %v3919 = vunpack.c.l.b16 %v3757
        %v3920 = vunpack.c.l.b16 %v3758
        %v3921 = vunpack.c.l.b16 %v3759
        %v3922 = vunpack.c.l.b16 %v3760
        %v3923 = vunpack.c.l.b16 %v3761
        %v3924 = vunpack.c.l.b16 %v3762
        %v3925 = vpack.c.b16 %v3910, %v3909
        %v3926 = vpack.c.b16 %v3912, %v3911
        %v3927 = vpack.c.b16 %v3914, %v3913
        %v3928 = vpack.c.b16 %v3916, %v3915
        %v3929 = vpack.c.b16 %v3918, %v3917
        %v3930 = vpack.c.b16 %v3920, %v3919
        %v3931 = vpack.c.b16 %v3922, %v3921
        %v3932 = vpack.c.b16 %v3924, %v3923
        %3941 = vmatprep.subr.bf16.mxu0 0
        %3942 = vmatpush1.bf16.msra.mxu0 %v3925
        %3943 = vmatprep.subr.bf16.mxu0 0
        %3944 = vmatpush1.bf16.msra.mxu0 %v3926
        %3945 = vmatprep.subr.bf16.mxu0 0
        %3946 = vmatpush1.bf16.msra.mxu0 %v3927
        %3947 = vmatprep.subr.bf16.mxu0 0
        %3948 = vmatpush1.bf16.msra.mxu0 %v3928
        %3949 = vmatprep.subr.bf16.mxu0 0
        %3950 = vmatpush1.bf16.msra.mxu0 %v3929
        %3951 = vmatprep.subr.bf16.mxu0 0
        %3952 = vmatpush1.bf16.msra.mxu0 %v3930
        %3953 = vmatprep.subr.bf16.mxu0 0
        %3954 = vmatpush1.bf16.msra.mxu0 %v3931
        %3955 = vmatprep.subr.bf16.mxu0 0
        %3956 = vmatpush1.bf16.msra.mxu0 %v3932
        %3957 = vmatprep.subr.bf16.mxu0 0
        %3958 = vmatpush1.bf16.msra.mxu0 0
        %3959 = vmatprep.subr.bf16.mxu0 0
        %3960 = vmatpush1.bf16.msra.mxu0 0
        %3961 = vmatprep.subr.bf16.mxu0 0
        %3962 = vmatpush1.bf16.msra.mxu0 0
        %3963 = vmatprep.subr.bf16.mxu0 0
        %3964 = vmatpush1.bf16.msra.mxu0 0
        %3965 = vmatprep.subr.bf16.mxu0 0
        %3966 = vmatpush1.bf16.msra.mxu0 0
        %3967 = vmatprep.subr.bf16.mxu0 0
        %3968 = vmatpush1.bf16.msra.mxu0 0
        %3969 = vmatprep.subr.bf16.mxu0 0
        %3970 = vmatpush1.bf16.msra.mxu0 0
        %3971 = vmatprep.subr.bf16.mxu0 0
        %3972 = vmatpush1.bf16.msra.mxu0 0
        %3973 = vmatprep.mubr.bf16.mxu0 0
        %3974 = vmatmul.mubr.bf16.gmra.mrb[0].mxu0 %v3763
        %v3975 = vpop.f32.mrb[0].mxu0
        %v3976 = vadd.f32 %v3879, %v3975
        %v3977 = vpop.f32.mrb[0].mxu0
        %v3978 = vpop.f32.mrb[0].mxu0
        %v3979 = vadd.f32 %v3882, %v3978
        %v3980 = vpop.f32.mrb[0].mxu0
        %3981 = vmatprep.mubr.bf16.mxu0 0
        %3982 = vmatmul.mubr.bf16.gmra.mrb[0].mxu0 %v3764
        %v3983 = vpop.f32.mrb[0].mxu0
        %v3984 = vadd.f32 %v3887, %v3983
        %v3985 = vpop.f32.mrb[0].mxu0
        %v3986 = vpop.f32.mrb[0].mxu0
        %v3987 = vadd.f32 %v3890, %v3986
        %v3988 = vpop.f32.mrb[0].mxu0
        %3989 = vdwg.mxu0
        %v3990 = vrot.slane %v3318, 7
        %v3991 = vrot.slane %v3319, 7
        %v3992 = vrot.slane %v3320, 7
        %v3993 = vrot.slane %v3321, 7
        %v3994 = vsel %vm921, %v3992, %v3993
        %v3995 = vsel %vm921, %v3991, %v3992
        %v3996 = vsel %vm921, %v3990, %v3991
        %v3997 = vsel %vm921, %v3993, %v3990
        %v3998 = vsel %vm477, %v3997, 0.0
        %v3999 = vsel %vm478, %v3996, 0.0
        %v4000 = vsel %vm479, %v3995, 0.0
        %v4001 = vsel %vm480, %v3994, 0.0
        %s4002 = scalar_lea.vmem %s4, 384
        %v4003 = vld [vmem:[%s4002] sm:$0xf]
        %v4004 = vld [vmem:[%s4002 + $0x4] sm:$0xf]
        %v4005 = vld [vmem:[%s4002 + $0x8] sm:$0xf]
        %v4006 = vld [vmem:[%s4002 + $0xc] sm:$0xf]
        %v4007 = vld [vmem:[%s4002 + $0x10] sm:$0xf]
        %v4008 = vld [vmem:[%s4002 + $0x14] sm:$0xf]
        %v4009 = vld [vmem:[%s4002 + $0x18] sm:$0xf]
        %v4010 = vld [vmem:[%s4002 + $0x1c] sm:$0xf]
        %v4011 = vld [vmem:[%s4002 + $0x20] sm:$0xf]
        %v4012 = vld [vmem:[%s4002 + $0x24] sm:$0xf]
        %v4013 = vld [vmem:[%s4002 + $0x28] sm:$0xf]
        %v4014 = vld [vmem:[%s4002 + $0x2c] sm:$0xf]
        %v4015 = vld [vmem:[%s4002 + $0x30] sm:$0xf]
        %v4016 = vld [vmem:[%s4002 + $0x34] sm:$0xf]
        %v4017 = vld [vmem:[%s4002 + $0x38] sm:$0xf]
        %v4018 = vld [vmem:[%s4002 + $0x3c] sm:$0xf]
        %v4019 = vpack.c.bf16 %v3999, %v3998
        %v4020 = vpack.c.bf16 %v4001, %v4000
        %v4037 = vunpack.c.l.b16 %v4003
        %v4038 = vunpack.c.l.b16 %v4004
        %v4039 = vunpack.c.l.b16 %v4005
        %v4040 = vunpack.c.l.b16 %v4006
        %v4041 = vunpack.c.l.b16 %v4007
        %v4042 = vunpack.c.l.b16 %v4008
        %v4043 = vunpack.c.l.b16 %v4009
        %v4044 = vunpack.c.l.b16 %v4010
        %v4045 = vunpack.c.l.b16 %v4011
        %v4046 = vunpack.c.l.b16 %v4012
        %v4047 = vunpack.c.l.b16 %v4013
        %v4048 = vunpack.c.l.b16 %v4014
        %v4049 = vunpack.c.l.b16 %v4015
        %v4050 = vunpack.c.l.b16 %v4016
        %v4051 = vunpack.c.l.b16 %v4017
        %v4052 = vunpack.c.l.b16 %v4018
        %v4053 = vpack.c.b16 %v4038, %v4037
        %v4054 = vpack.c.b16 %v4040, %v4039
        %v4055 = vpack.c.b16 %v4042, %v4041
        %v4056 = vpack.c.b16 %v4044, %v4043
        %v4057 = vpack.c.b16 %v4046, %v4045
        %v4058 = vpack.c.b16 %v4048, %v4047
        %v4059 = vpack.c.b16 %v4050, %v4049
        %v4060 = vpack.c.b16 %v4052, %v4051
        %4069 = vmatprep.subr.bf16.mxu0 0
        %4070 = vmatpush1.bf16.msra.mxu0 %v4053
        %4071 = vmatprep.subr.bf16.mxu0 0
        %4072 = vmatpush1.bf16.msra.mxu0 %v4054
        %4073 = vmatprep.subr.bf16.mxu0 0
        %4074 = vmatpush1.bf16.msra.mxu0 %v4055
        %4075 = vmatprep.subr.bf16.mxu0 0
        %4076 = vmatpush1.bf16.msra.mxu0 %v4056
        %4077 = vmatprep.subr.bf16.mxu0 0
        %4078 = vmatpush1.bf16.msra.mxu0 %v4057
        %4079 = vmatprep.subr.bf16.mxu0 0
        %4080 = vmatpush1.bf16.msra.mxu0 %v4058
        %4081 = vmatprep.subr.bf16.mxu0 0
        %4082 = vmatpush1.bf16.msra.mxu0 %v4059
        %4083 = vmatprep.subr.bf16.mxu0 0
        %4084 = vmatpush1.bf16.msra.mxu0 %v4060
        %4085 = vmatprep.subr.bf16.mxu0 0
        %4086 = vmatpush1.bf16.msra.mxu0 0
        %4087 = vmatprep.subr.bf16.mxu0 0
        %4088 = vmatpush1.bf16.msra.mxu0 0
        %4089 = vmatprep.subr.bf16.mxu0 0
        %4090 = vmatpush1.bf16.msra.mxu0 0
        %4091 = vmatprep.subr.bf16.mxu0 0
        %4092 = vmatpush1.bf16.msra.mxu0 0
        %4093 = vmatprep.subr.bf16.mxu0 0
        %4094 = vmatpush1.bf16.msra.mxu0 0
        %4095 = vmatprep.subr.bf16.mxu0 0
        %4096 = vmatpush1.bf16.msra.mxu0 0
        %4097 = vmatprep.subr.bf16.mxu0 0
        %4098 = vmatpush1.bf16.msra.mxu0 0
        %4099 = vmatprep.subr.bf16.mxu0 0
        %4100 = vmatpush1.bf16.msra.mxu0 0
        %4101 = vmatprep.mubr.bf16.mxu0 0
        %4102 = vmatmul.mubr.bf16.gmra.mrb[0].mxu0 %v4019
        %v4103 = vpop.f32.mrb[0].mxu0
        %v4104 = vadd.f32 0.0, %v4103
        %v4105 = vpop.f32.mrb[0].mxu0
        %v4106 = vpop.f32.mrb[0].mxu0
        %v4107 = vadd.f32 0.0, %v4106
        %v4108 = vpop.f32.mrb[0].mxu0
        %4109 = vmatprep.mubr.bf16.mxu0 0
        %4110 = vmatmul.mubr.bf16.gmra.mrb[0].mxu0 %v4020
        %v4111 = vpop.f32.mrb[0].mxu0
        %v4112 = vadd.f32 0.0, %v4111
        %v4113 = vpop.f32.mrb[0].mxu0
        %v4114 = vpop.f32.mrb[0].mxu0
        %v4115 = vadd.f32 0.0, %v4114
        %v4116 = vpop.f32.mrb[0].mxu0
        %4117 = vdwg.mxu0
        %v4118 = vadd.f32 %v3976, %v4104
        %v4119 = vadd.f32 %v3979, %v4107
        %v4120 = vadd.f32 %v3984, %v4112
        %v4121 = vadd.f32 %v3987, %v4115
        %v4122 = vrot.slane %v3318, 1
        %v4123 = vrot.slane %v3319, 1
        %v4124 = vrot.slane %v3320, 1
        %v4125 = vrot.slane %v3321, 1
        %v4126 = vsel %vm1146, %v4124, %v4125
        %v4127 = vsel %vm1146, %v4123, %v4124
        %v4128 = vsel %vm1146, %v4122, %v4123
        %v4129 = vsel %vm1146, %v4125, %v4122
        %v4130 = vsel %vm493, %v4128, 0.0
        %v4131 = vsel %vm494, %v4127, 0.0
        %v4132 = vsel %vm495, %v4126, 0.0
        %v4133 = vsel %vm496, %v4129, 0.0
        %s4134 = scalar_lea.vmem %s4, 512
        %v4135 = vld [vmem:[%s4134] sm:$0xf]
        %v4136 = vld [vmem:[%s4134 + $0x4] sm:$0xf]
        %v4137 = vld [vmem:[%s4134 + $0x8] sm:$0xf]
        %v4138 = vld [vmem:[%s4134 + $0xc] sm:$0xf]
        %v4139 = vld [vmem:[%s4134 + $0x10] sm:$0xf]
        %v4140 = vld [vmem:[%s4134 + $0x14] sm:$0xf]
        %v4141 = vld [vmem:[%s4134 + $0x18] sm:$0xf]
        %v4142 = vld [vmem:[%s4134 + $0x1c] sm:$0xf]
        %v4143 = vld [vmem:[%s4134 + $0x20] sm:$0xf]
        %v4144 = vld [vmem:[%s4134 + $0x24] sm:$0xf]
        %v4145 = vld [vmem:[%s4134 + $0x28] sm:$0xf]
        %v4146 = vld [vmem:[%s4134 + $0x2c] sm:$0xf]
        %v4147 = vld [vmem:[%s4134 + $0x30] sm:$0xf]
        %v4148 = vld [vmem:[%s4134 + $0x34] sm:$0xf]
        %v4149 = vld [vmem:[%s4134 + $0x38] sm:$0xf]
        %v4150 = vld [vmem:[%s4134 + $0x3c] sm:$0xf]
        %v4151 = vpack.c.bf16 %v4131, %v4130
        %v4152 = vpack.c.bf16 %v4133, %v4132
        %v4169 = vunpack.c.l.b16 %v4135
        %v4170 = vunpack.c.l.b16 %v4136
        %v4171 = vunpack.c.l.b16 %v4137
        %v4172 = vunpack.c.l.b16 %v4138
        %v4173 = vunpack.c.l.b16 %v4139
        %v4174 = vunpack.c.l.b16 %v4140
        %v4175 = vunpack.c.l.b16 %v4141
        %v4176 = vunpack.c.l.b16 %v4142
        %v4177 = vunpack.c.l.b16 %v4143
        %v4178 = vunpack.c.l.b16 %v4144
        %v4179 = vunpack.c.l.b16 %v4145
        %v4180 = vunpack.c.l.b16 %v4146
        %v4181 = vunpack.c.l.b16 %v4147
        %v4182 = vunpack.c.l.b16 %v4148
        %v4183 = vunpack.c.l.b16 %v4149
        %v4184 = vunpack.c.l.b16 %v4150
        %v4185 = vpack.c.b16 %v4170, %v4169
        %v4186 = vpack.c.b16 %v4172, %v4171
        %v4187 = vpack.c.b16 %v4174, %v4173
        %v4188 = vpack.c.b16 %v4176, %v4175
        %v4189 = vpack.c.b16 %v4178, %v4177
        %v4190 = vpack.c.b16 %v4180, %v4179
        %v4191 = vpack.c.b16 %v4182, %v4181
        %v4192 = vpack.c.b16 %v4184, %v4183
        %4201 = vmatprep.subr.bf16.mxu0 0
        %4202 = vmatpush1.bf16.msra.mxu0 %v4185
        %4203 = vmatprep.subr.bf16.mxu0 0
        %4204 = vmatpush1.bf16.msra.mxu0 %v4186
        %4205 = vmatprep.subr.bf16.mxu0 0
        %4206 = vmatpush1.bf16.msra.mxu0 %v4187
        %4207 = vmatprep.subr.bf16.mxu0 0
        %4208 = vmatpush1.bf16.msra.mxu0 %v4188
        %4209 = vmatprep.subr.bf16.mxu0 0
        %4210 = vmatpush1.bf16.msra.mxu0 %v4189
        %4211 = vmatprep.subr.bf16.mxu0 0
        %4212 = vmatpush1.bf16.msra.mxu0 %v4190
        %4213 = vmatprep.subr.bf16.mxu0 0
        %4214 = vmatpush1.bf16.msra.mxu0 %v4191
        %4215 = vmatprep.subr.bf16.mxu0 0
        %4216 = vmatpush1.bf16.msra.mxu0 %v4192
        %4217 = vmatprep.subr.bf16.mxu0 0
        %4218 = vmatpush1.bf16.msra.mxu0 0
        %4219 = vmatprep.subr.bf16.mxu0 0
        %4220 = vmatpush1.bf16.msra.mxu0 0
        %4221 = vmatprep.subr.bf16.mxu0 0
        %4222 = vmatpush1.bf16.msra.mxu0 0
        %4223 = vmatprep.subr.bf16.mxu0 0
        %4224 = vmatpush1.bf16.msra.mxu0 0
        %4225 = vmatprep.subr.bf16.mxu0 0
        %4226 = vmatpush1.bf16.msra.mxu0 0
        %4227 = vmatprep.subr.bf16.mxu0 0
        %4228 = vmatpush1.bf16.msra.mxu0 0
        %4229 = vmatprep.subr.bf16.mxu0 0
        %4230 = vmatpush1.bf16.msra.mxu0 0
        %4231 = vmatprep.subr.bf16.mxu0 0
        %4232 = vmatpush1.bf16.msra.mxu0 0
        %4233 = vmatprep.mubr.bf16.mxu0 0
        %4234 = vmatmul.mubr.bf16.gmra.mrb[0].mxu0 %v4151
        %v4235 = vpop.f32.mrb[0].mxu0
        %v4236 = vadd.f32 0.0, %v4235
        %v4237 = vpop.f32.mrb[0].mxu0
        %v4238 = vpop.f32.mrb[0].mxu0
        %v4239 = vadd.f32 0.0, %v4238
        %v4240 = vpop.f32.mrb[0].mxu0
        %4241 = vmatprep.mubr.bf16.mxu0 0
        %4242 = vmatmul.mubr.bf16.gmra.mrb[0].mxu0 %v4152
        %v4243 = vpop.f32.mrb[0].mxu0
        %v4244 = vadd.f32 0.0, %v4243
        %v4245 = vpop.f32.mrb[0].mxu0
        %v4246 = vpop.f32.mrb[0].mxu0
        %v4247 = vadd.f32 0.0, %v4246
        %v4248 = vpop.f32.mrb[0].mxu0
        %4249 = vdwg.mxu0
        %v4250 = vadd.f32 %v4118, %v4236
        %v4251 = vadd.f32 %v4119, %v4239
        %v4252 = vadd.f32 %v4120, %v4244
        %v4253 = vadd.f32 %v4121, %v4247
        %v4254 = vrot.slane %v3318, 2
        %v4255 = vrot.slane %v3319, 2
        %v4256 = vrot.slane %v3320, 2
        %v4257 = vrot.slane %v3321, 2
        %v4258 = vsel %vm1831, %v4256, %v4257
        %v4259 = vsel %vm1831, %v4255, %v4256
        %v4260 = vsel %vm1831, %v4254, %v4255
        %v4261 = vsel %vm1831, %v4257, %v4254
        %v4262 = vsel %vm509, %v4260, 0.0
        %v4263 = vsel %vm510, %v4259, 0.0
        %v4264 = vsel %vm511, %v4258, 0.0
        %v4265 = vsel %vm512, %v4261, 0.0
        %s4266 = scalar_lea.vmem %s4, 576
        %v4267 = vld [vmem:[%s4266] sm:$0xf]
        %v4268 = vld [vmem:[%s4266 + $0x4] sm:$0xf]
        %v4269 = vld [vmem:[%s4266 + $0x8] sm:$0xf]
        %v4270 = vld [vmem:[%s4266 + $0xc] sm:$0xf]
        %v4271 = vld [vmem:[%s4266 + $0x10] sm:$0xf]
        %v4272 = vld [vmem:[%s4266 + $0x14] sm:$0xf]
        %v4273 = vld [vmem:[%s4266 + $0x18] sm:$0xf]
        %v4274 = vld [vmem:[%s4266 + $0x1c] sm:$0xf]
        %v4275 = vld [vmem:[%s4266 + $0x20] sm:$0xf]
        %v4276 = vld [vmem:[%s4266 + $0x24] sm:$0xf]
        %v4277 = vld [vmem:[%s4266 + $0x28] sm:$0xf]
        %v4278 = vld [vmem:[%s4266 + $0x2c] sm:$0xf]
        %v4279 = vld [vmem:[%s4266 + $0x30] sm:$0xf]
        %v4280 = vld [vmem:[%s4266 + $0x34] sm:$0xf]
        %v4281 = vld [vmem:[%s4266 + $0x38] sm:$0xf]
        %v4282 = vld [vmem:[%s4266 + $0x3c] sm:$0xf]
        %v4283 = vpack.c.bf16 %v4263, %v4262
        %v4284 = vpack.c.bf16 %v4265, %v4264
        %v4301 = vunpack.c.l.b16 %v4267
        %v4302 = vunpack.c.l.b16 %v4268
        %v4303 = vunpack.c.l.b16 %v4269
        %v4304 = vunpack.c.l.b16 %v4270
        %v4305 = vunpack.c.l.b16 %v4271
        %v4306 = vunpack.c.l.b16 %v4272
        %v4307 = vunpack.c.l.b16 %v4273
        %v4308 = vunpack.c.l.b16 %v4274
        %v4309 = vunpack.c.l.b16 %v4275
        %v4310 = vunpack.c.l.b16 %v4276
        %v4311 = vunpack.c.l.b16 %v4277
        %v4312 = vunpack.c.l.b16 %v4278
        %v4313 = vunpack.c.l.b16 %v4279
        %v4314 = vunpack.c.l.b16 %v4280
        %v4315 = vunpack.c.l.b16 %v4281
        %v4316 = vunpack.c.l.b16 %v4282
        %v4317 = vpack.c.b16 %v4302, %v4301
        %v4318 = vpack.c.b16 %v4304, %v4303
        %v4319 = vpack.c.b16 %v4306, %v4305
        %v4320 = vpack.c.b16 %v4308, %v4307
        %v4321 = vpack.c.b16 %v4310, %v4309
        %v4322 = vpack.c.b16 %v4312, %v4311
        %v4323 = vpack.c.b16 %v4314, %v4313
        %v4324 = vpack.c.b16 %v4316, %v4315
        %4333 = vmatprep.subr.bf16.mxu0 0
        %4334 = vmatpush1.bf16.msra.mxu0 %v4317
        %4335 = vmatprep.subr.bf16.mxu0 0
        %4336 = vmatpush1.bf16.msra.mxu0 %v4318
        %4337 = vmatprep.subr.bf16.mxu0 0
        %4338 = vmatpush1.bf16.msra.mxu0 %v4319
        %4339 = vmatprep.subr.bf16.mxu0 0
        %4340 = vmatpush1.bf16.msra.mxu0 %v4320
        %4341 = vmatprep.subr.bf16.mxu0 0
        %4342 = vmatpush1.bf16.msra.mxu0 %v4321
        %4343 = vmatprep.subr.bf16.mxu0 0
        %4344 = vmatpush1.bf16.msra.mxu0 %v4322
        %4345 = vmatprep.subr.bf16.mxu0 0
        %4346 = vmatpush1.bf16.msra.mxu0 %v4323
        %4347 = vmatprep.subr.bf16.mxu0 0
        %4348 = vmatpush1.bf16.msra.mxu0 %v4324
        %4349 = vmatprep.subr.bf16.mxu0 0
        %4350 = vmatpush1.bf16.msra.mxu0 0
        %4351 = vmatprep.subr.bf16.mxu0 0
        %4352 = vmatpush1.bf16.msra.mxu0 0
        %4353 = vmatprep.subr.bf16.mxu0 0
        %4354 = vmatpush1.bf16.msra.mxu0 0
        %4355 = vmatprep.subr.bf16.mxu0 0
        %4356 = vmatpush1.bf16.msra.mxu0 0
        %4357 = vmatprep.subr.bf16.mxu0 0
        %4358 = vmatpush1.bf16.msra.mxu0 0
        %4359 = vmatprep.subr.bf16.mxu0 0
        %4360 = vmatpush1.bf16.msra.mxu0 0
        %4361 = vmatprep.subr.bf16.mxu0 0
        %4362 = vmatpush1.bf16.msra.mxu0 0
        %4363 = vmatprep.subr.bf16.mxu0 0
        %4364 = vmatpush1.bf16.msra.mxu0 0
        %4365 = vmatprep.mubr.bf16.mxu0 0
        %4366 = vmatmul.mubr.bf16.gmra.mrb[0].mxu0 %v4283
        %v4367 = vpop.f32.mrb[0].mxu0
        %v4368 = vadd.f32 0.0, %v4367
        %v4369 = vpop.f32.mrb[0].mxu0
        %v4370 = vpop.f32.mrb[0].mxu0
        %v4371 = vadd.f32 0.0, %v4370
        %v4372 = vpop.f32.mrb[0].mxu0
        %4373 = vmatprep.mubr.bf16.mxu0 0
        %4374 = vmatmul.mubr.bf16.gmra.mrb[0].mxu0 %v4284
        %v4375 = vpop.f32.mrb[0].mxu0
        %v4376 = vadd.f32 0.0, %v4375
        %v4377 = vpop.f32.mrb[0].mxu0
        %v4378 = vpop.f32.mrb[0].mxu0
        %v4379 = vadd.f32 0.0, %v4378
        %v4380 = vpop.f32.mrb[0].mxu0
        %4381 = vdwg.mxu0
        %v4382 = vadd.f32 %v4250, %v4368
        %v4383 = vadd.f32 %v4251, %v4371
        %v4384 = vadd.f32 %v4252, %v4376
        %v4385 = vadd.f32 %v4253, %v4379
        %v4387 = vlaneseq
        %v4388 = vshrl.u32 %v4387, 7
        %v4389 = vsub.s32 0, %v4388
        %v4390 = vrot.slane %v3743, %v4389
        %v4392 = vadd.f32 %v4382, %v4390
        %v4393 = vadd.f32 %v4383, %v4390
        %v4394 = vadd.f32 %v4384, %v4390
        %v4395 = vadd.f32 %v4385, %v4390
        %v4397 = vlaneseq
        %v4398 = vshrl.u32 %v4397, 7
        %v4399 = vsub.s32 0, %v4398
        %v4400 = vrot.slane %v3745, %v4399
        %v4402 = vmul.f32 %v4392, %v4400
        %v4403 = vmul.f32 %v4393, %v4400
        %v4404 = vmul.f32 %v4394, %v4400
        %v4405 = vmul.f32 %v4395, %v4400
        %v4406 = vmul.f32 %v4402, 0.5
        %v4407 = vmul.f32 %v4403, 0.5
        %v4408 = vmul.f32 %v4404, 0.5
        %v4409 = vmul.f32 %v4405, 0.5
        %v4410 = vtanh.pop %v4406
        %v4411 = vtanh.pop %v4407
        %v4412 = vtanh.pop %v4408
        %v4413 = vtanh.pop %v4409
        %v4414 = vmul.f32 %v4410, 0.5
        %v4415 = vmul.f32 %v4411, 0.5
        %v4416 = vmul.f32 %v4412, 0.5
        %v4417 = vmul.f32 %v4413, 0.5
        %v4418 = vadd.f32 %v4414, 0.5
        %v4419 = vadd.f32 %v4415, 0.5
        %v4420 = vadd.f32 %v4416, 0.5
        %v4421 = vadd.f32 %v4417, 0.5
        %v4422 = vmul.f32 %v4392, %v4418
        %v4423 = vmul.f32 %v4393, %v4419
        %v4424 = vmul.f32 %v4394, %v4420
        %v4425 = vmul.f32 %v4395, %v4421
        %4426 = vrot.lane.b32.xlu0 %v2939, 8
        %v4427 = vpop.permute.xlu0 %4426
        %4428 = vrot.lane.b32.xlu0 %v2940, 8
        %v4429 = vpop.permute.xlu0 %4428
        %4430 = vrot.lane.b32.xlu0 %v2941, 8
        %v4431 = vpop.permute.xlu0 %4430
        %4432 = vrot.lane.b32.xlu0 %v2942, 8
        %v4433 = vpop.permute.xlu0 %4432
        %v4434 = vsel %vm513, -inf, %v4427
        %v4435 = vsel %vm513, -inf, %v4429
        %v4436 = vsel %vm513, -inf, %v4431
        %v4437 = vsel %vm513, -inf, %v4433
        %4438 = vrot.lane.b32.xlu0 %v2939, 120
        %v4439 = vpop.permute.xlu0 %4438
        %4440 = vrot.lane.b32.xlu0 %v2940, 120
        %v4441 = vpop.permute.xlu0 %4440
        %4442 = vrot.lane.b32.xlu0 %v2941, 120
        %v4443 = vpop.permute.xlu0 %4442
        %4444 = vrot.lane.b32.xlu0 %v2942, 120
        %v4445 = vpop.permute.xlu0 %4444
        %v4446 = vsel %vm514, -inf, %v4439
        %v4447 = vsel %vm514, -inf, %v4441
        %v4448 = vsel %vm514, -inf, %v4443
        %v4449 = vsel %vm514, -inf, %v4445
        %v4450 = vmax.f32 %v4434, %v4446
        %v4451 = vmax.f32 %v4435, %v4447
        %v4452 = vmax.f32 %v4436, %v4448
        %v4453 = vmax.f32 %v4437, %v4449
        %v4454 = vmax.f32 %v2939, %v4450
        %v4455 = vmax.f32 %v2940, %v4451
        %v4456 = vmax.f32 %v2941, %v4452
        %v4457 = vmax.f32 %v2942, %v4453
        %v4458 = vrot.slane %v4454, 7
        %v4459 = vrot.slane %v4455, 7
        %v4460 = vrot.slane %v4456, 7
        %v4461 = vrot.slane %v4457, 7
        %v4462 = vsel %vm921, %v4460, %v4461
        %v4463 = vsel %vm921, %v4459, %v4460
        %v4464 = vsel %vm921, %v4458, %v4459
        %v4465 = vsel %vm921, %v4461, %v4458
        %v4466 = vsel %vm477, %v4465, -inf
        %v4467 = vsel %vm478, %v4464, -inf
        %v4468 = vsel %vm479, %v4463, -inf
        %v4469 = vsel %vm480, %v4462, -inf
        %v4470 = vrot.slane %v4454, 1
        %v4471 = vrot.slane %v4455, 1
        %v4472 = vrot.slane %v4456, 1
        %v4473 = vrot.slane %v4457, 1
        %v4474 = vsel %vm1146, %v4472, %v4473
        %v4475 = vsel %vm1146, %v4471, %v4472
        %v4476 = vsel %vm1146, %v4470, %v4471
        %v4477 = vsel %vm1146, %v4473, %v4470
        %v4478 = vsel %vm493, %v4476, -inf
        %v4479 = vsel %vm494, %v4475, -inf
        %v4480 = vsel %vm495, %v4474, -inf
        %v4481 = vsel %vm496, %v4477, -inf
        %v4482 = vmax.f32 %v4466, %v4478
        %v4483 = vmax.f32 %v4467, %v4479
        %v4484 = vmax.f32 %v4468, %v4480
        %v4485 = vmax.f32 %v4469, %v4481
        %v4486 = vmax.f32 %v4454, %v4482
        %v4487 = vmax.f32 %v4455, %v4483
        %v4488 = vmax.f32 %v4456, %v4484
        %v4489 = vmax.f32 %v4457, %v4485
        %s4490 = scalar_lea.vmem [#allocation4], 64
        %v4491 = vld [vmem:[%s4490] sm:$0xf]
        %v4492 = vld [vmem:[%s4490 + $0x4] sm:$0xf]
        %v4493 = vld [vmem:[%s4490 + $0x8] sm:$0xf]
        %v4494 = vld [vmem:[%s4490 + $0xc] sm:$0xf]
        %v4495 = vld [vmem:[%s4490 + $0x10] sm:$0xf]
        %v4496 = vld [vmem:[%s4490 + $0x14] sm:$0xf]
        %v4497 = vld [vmem:[%s4490 + $0x18] sm:$0xf]
        %v4498 = vld [vmem:[%s4490 + $0x1c] sm:$0xf]
        %v4499 = vld [vmem:[%s4490 + $0x20] sm:$0xf]
        %v4500 = vld [vmem:[%s4490 + $0x24] sm:$0xf]
        %v4501 = vld [vmem:[%s4490 + $0x28] sm:$0xf]
        %v4502 = vld [vmem:[%s4490 + $0x2c] sm:$0xf]
        %v4503 = vld [vmem:[%s4490 + $0x30] sm:$0xf]
        %v4504 = vld [vmem:[%s4490 + $0x34] sm:$0xf]
        %v4505 = vld [vmem:[%s4490 + $0x38] sm:$0xf]
        %v4506 = vld [vmem:[%s4490 + $0x3c] sm:$0xf]
        %v4507 = vpack.c.bf16 %v4487, %v4486
        %v4508 = vpack.c.bf16 %v4489, %v4488
        %s4509 = scalar_lea.vmem %s8, 7
        %v4510 = vld [vmem:[%s4509] sm:$0x1]
        %v4512 = vlaneseq
        %v4513 = vshrl.u32 %v4512, 7
        %v4514 = vsub.s32 0, %v4513
        %v4515 = vrot.slane %v4510, %v4514
        %v4533 = vunpack.c.l.b16 %v4491
        %v4534 = vunpack.c.l.b16 %v4492
        %v4535 = vunpack.c.l.b16 %v4493
        %v4536 = vunpack.c.l.b16 %v4494
        %v4537 = vunpack.c.l.b16 %v4495
        %v4538 = vunpack.c.l.b16 %v4496
        %v4539 = vunpack.c.l.b16 %v4497
        %v4540 = vunpack.c.l.b16 %v4498
        %v4541 = vunpack.c.l.b16 %v4499
        %v4542 = vunpack.c.l.b16 %v4500
        %v4543 = vunpack.c.l.b16 %v4501
        %v4544 = vunpack.c.l.b16 %v4502
        %v4545 = vunpack.c.l.b16 %v4503
        %v4546 = vunpack.c.l.b16 %v4504
        %v4547 = vunpack.c.l.b16 %v4505
        %v4548 = vunpack.c.l.b16 %v4506
        %v4549 = vpack.c.b16 %v4534, %v4533
        %v4550 = vpack.c.b16 %v4536, %v4535
        %v4551 = vpack.c.b16 %v4538, %v4537
        %v4552 = vpack.c.b16 %v4540, %v4539
        %v4553 = vpack.c.b16 %v4542, %v4541
        %v4554 = vpack.c.b16 %v4544, %v4543
        %v4555 = vpack.c.b16 %v4546, %v4545
        %v4556 = vpack.c.b16 %v4548, %v4547
        %4565 = vmatprep.subr.bf16.mxu0 0
        %4566 = vmatpush1.bf16.msra.mxu0 %v4549
        %4567 = vmatprep.subr.bf16.mxu0 0
        %4568 = vmatpush1.bf16.msra.mxu0 %v4550
        %4569 = vmatprep.subr.bf16.mxu0 0
        %4570 = vmatpush1.bf16.msra.mxu0 %v4551
        %4571 = vmatprep.subr.bf16.mxu0 0
        %4572 = vmatpush1.bf16.msra.mxu0 %v4552
        %4573 = vmatprep.subr.bf16.mxu0 0
        %4574 = vmatpush1.bf16.msra.mxu0 %v4553
        %4575 = vmatprep.subr.bf16.mxu0 0
        %4576 = vmatpush1.bf16.msra.mxu0 %v4554
        %4577 = vmatprep.subr.bf16.mxu0 0
        %4578 = vmatpush1.bf16.msra.mxu0 %v4555
        %4579 = vmatprep.subr.bf16.mxu0 0
        %4580 = vmatpush1.bf16.msra.mxu0 %v4556
        %4581 = vmatprep.subr.bf16.mxu0 0
        %4582 = vmatpush1.bf16.msra.mxu0 0
        %4583 = vmatprep.subr.bf16.mxu0 0
        %4584 = vmatpush1.bf16.msra.mxu0 0
        %4585 = vmatprep.subr.bf16.mxu0 0
        %4586 = vmatpush1.bf16.msra.mxu0 0
        %4587 = vmatprep.subr.bf16.mxu0 0
        %4588 = vmatpush1.bf16.msra.mxu0 0
        %4589 = vmatprep.subr.bf16.mxu0 0
        %4590 = vmatpush1.bf16.msra.mxu0 0
        %4591 = vmatprep.subr.bf16.mxu0 0
        %4592 = vmatpush1.bf16.msra.mxu0 0
        %4593 = vmatprep.subr.bf16.mxu0 0
        %4594 = vmatpush1.bf16.msra.mxu0 0
        %4595 = vmatprep.subr.bf16.mxu0 0
        %4596 = vmatpush1.bf16.msra.mxu0 0
        %4597 = vmatprep.mubr.bf16.mxu0 0
        %4598 = vmatmul.mubr.bf16.gmra.mrb[0].mxu0 %v4507
        %v4599 = vpop.f32.mrb[0].mxu0
        %v4600 = vadd.f32 %v4515, %v4599
        %v4601 = vpop.f32.mrb[0].mxu0
        %v4602 = vpop.f32.mrb[0].mxu0
        %v4603 = vadd.f32 %v4515, %v4602
        %v4604 = vpop.f32.mrb[0].mxu0
        %4605 = vmatprep.mubr.bf16.mxu0 0
        %4606 = vmatmul.mubr.bf16.gmra.mrb[0].mxu0 %v4508
        %v4607 = vpop.f32.mrb[0].mxu0
        %v4608 = vadd.f32 %v4515, %v4607
        %v4609 = vpop.f32.mrb[0].mxu0
        %v4610 = vpop.f32.mrb[0].mxu0
        %v4611 = vadd.f32 %v4515, %v4610
        %v4612 = vpop.f32.mrb[0].mxu0
        %4613 = vdwg.mxu0
        %s4614 = scalar_lea.vmem %s9, 11
        %v4615 = vld [vmem:[%s4614] sm:$0x1]
        %v4617 = vlaneseq
        %v4618 = vshrl.u32 %v4617, 7
        %v4619 = vsub.s32 0, %v4618
        %v4620 = vrot.slane %v4615, %v4619
        %v4622 = vmul.f32 %v4600, %v4620
        %v4623 = vmul.f32 %v4603, %v4620
        %v4624 = vmul.f32 %v4608, %v4620
        %v4625 = vmul.f32 %v4611, %v4620
        %v4626 = vmul.f32 %v4622, 0.5
        %v4627 = vmul.f32 %v4623, 0.5
        %v4628 = vmul.f32 %v4624, 0.5
        %v4629 = vmul.f32 %v4625, 0.5
        %v4630 = vtanh.pop %v4626
        %v4631 = vtanh.pop %v4627
        %v4632 = vtanh.pop %v4628
        %v4633 = vtanh.pop %v4629
        %v4634 = vmul.f32 %v4630, 0.5
        %v4635 = vmul.f32 %v4631, 0.5
        %v4636 = vmul.f32 %v4632, 0.5
        %v4637 = vmul.f32 %v4633, 0.5
        %v4638 = vadd.f32 %v4634, 0.5
        %v4639 = vadd.f32 %v4635, 0.5
        %v4640 = vadd.f32 %v4636, 0.5
        %v4641 = vadd.f32 %v4637, 0.5
        %v4642 = vmul.f32 %v4600, %v4638
        %v4643 = vmul.f32 %v4603, %v4639
        %v4644 = vmul.f32 %v4608, %v4640
        %v4645 = vmul.f32 %v4611, %v4641
        %s4646 = scalar_lea.vmem %s6, 256
        %v4647 = vld [vmem:[%s4646] sm:$0xf]
        %v4648 = vld [vmem:[%s4646 + $0x4] sm:$0xf]
        %v4649 = vld [vmem:[%s4646 + $0x8] sm:$0xf]
        %v4650 = vld [vmem:[%s4646 + $0xc] sm:$0xf]
        %v4651 = vld [vmem:[%s4646 + $0x10] sm:$0xf]
        %v4652 = vld [vmem:[%s4646 + $0x14] sm:$0xf]
        %v4653 = vld [vmem:[%s4646 + $0x18] sm:$0xf]
        %v4654 = vld [vmem:[%s4646 + $0x1c] sm:$0xf]
        %v4655 = vld [vmem:[%s4646 + $0x20] sm:$0xf]
        %v4656 = vld [vmem:[%s4646 + $0x24] sm:$0xf]
        %v4657 = vld [vmem:[%s4646 + $0x28] sm:$0xf]
        %v4658 = vld [vmem:[%s4646 + $0x2c] sm:$0xf]
        %v4659 = vld [vmem:[%s4646 + $0x30] sm:$0xf]
        %v4660 = vld [vmem:[%s4646 + $0x34] sm:$0xf]
        %v4661 = vld [vmem:[%s4646 + $0x38] sm:$0xf]
        %v4662 = vld [vmem:[%s4646 + $0x3c] sm:$0xf]
        %v4663 = vpack.c.bf16 %v3255, %v3254
        %v4664 = vpack.c.bf16 %v3257, %v3256
        %s4665 = scalar_lea.vmem %s6, 320
        %v4666 = vld [vmem:[%s4665] sm:$0xf]
        %v4667 = vld [vmem:[%s4665 + $0x4] sm:$0xf]
        %v4668 = vld [vmem:[%s4665 + $0x8] sm:$0xf]
        %v4669 = vld [vmem:[%s4665 + $0xc] sm:$0xf]
        %v4670 = vld [vmem:[%s4665 + $0x10] sm:$0xf]
        %v4671 = vld [vmem:[%s4665 + $0x14] sm:$0xf]
        %v4672 = vld [vmem:[%s4665 + $0x18] sm:$0xf]
        %v4673 = vld [vmem:[%s4665 + $0x1c] sm:$0xf]
        %v4674 = vld [vmem:[%s4665 + $0x20] sm:$0xf]
        %v4675 = vld [vmem:[%s4665 + $0x24] sm:$0xf]
        %v4676 = vld [vmem:[%s4665 + $0x28] sm:$0xf]
        %v4677 = vld [vmem:[%s4665 + $0x2c] sm:$0xf]
        %v4678 = vld [vmem:[%s4665 + $0x30] sm:$0xf]
        %v4679 = vld [vmem:[%s4665 + $0x34] sm:$0xf]
        %v4680 = vld [vmem:[%s4665 + $0x38] sm:$0xf]
        %v4681 = vld [vmem:[%s4665 + $0x3c] sm:$0xf]
        %v4682 = vpack.c.bf16 %v3739, %v3738
        %v4683 = vpack.c.bf16 %v3741, %v3740
        %v4700 = vunpack.c.l.b16 %v4666
        %v4701 = vunpack.c.l.b16 %v4667
        %v4702 = vunpack.c.l.b16 %v4668
        %v4703 = vunpack.c.l.b16 %v4669
        %v4704 = vunpack.c.l.b16 %v4670
        %v4705 = vunpack.c.l.b16 %v4671
        %v4706 = vunpack.c.l.b16 %v4672
        %v4707 = vunpack.c.l.b16 %v4673
        %v4708 = vunpack.c.l.b16 %v4674
        %v4709 = vunpack.c.l.b16 %v4675
        %v4710 = vunpack.c.l.b16 %v4676
        %v4711 = vunpack.c.l.b16 %v4677
        %v4712 = vunpack.c.l.b16 %v4678
        %v4713 = vunpack.c.l.b16 %v4679
        %v4714 = vunpack.c.l.b16 %v4680
        %v4715 = vunpack.c.l.b16 %v4681
        %v4716 = vpack.c.b16 %v4701, %v4700
        %v4717 = vpack.c.b16 %v4703, %v4702
        %v4718 = vpack.c.b16 %v4705, %v4704
        %v4719 = vpack.c.b16 %v4707, %v4706
        %v4720 = vpack.c.b16 %v4709, %v4708
        %v4721 = vpack.c.b16 %v4711, %v4710
        %v4722 = vpack.c.b16 %v4713, %v4712
        %v4723 = vpack.c.b16 %v4715, %v4714
        %4732 = vmatprep.subr.bf16.mxu0 0
        %4733 = vmatpush1.bf16.msra.mxu0 %v4716
        %4734 = vmatprep.subr.bf16.mxu0 0
        %4735 = vmatpush1.bf16.msra.mxu0 %v4717
        %4736 = vmatprep.subr.bf16.mxu0 0
        %4737 = vmatpush1.bf16.msra.mxu0 %v4718
        %4738 = vmatprep.subr.bf16.mxu0 0
        %4739 = vmatpush1.bf16.msra.mxu0 %v4719
        %4740 = vmatprep.subr.bf16.mxu0 0
        %4741 = vmatpush1.bf16.msra.mxu0 %v4720
        %4742 = vmatprep.subr.bf16.mxu0 0
        %4743 = vmatpush1.bf16.msra.mxu0 %v4721
        %4744 = vmatprep.subr.bf16.mxu0 0
        %4745 = vmatpush1.bf16.msra.mxu0 %v4722
        %4746 = vmatprep.subr.bf16.mxu0 0
        %4747 = vmatpush1.bf16.msra.mxu0 %v4723
        %4748 = vmatprep.subr.bf16.mxu0 0
        %4749 = vmatpush1.bf16.msra.mxu0 0
        %4750 = vmatprep.subr.bf16.mxu0 0
        %4751 = vmatpush1.bf16.msra.mxu0 0
        %4752 = vmatprep.subr.bf16.mxu0 0
        %4753 = vmatpush1.bf16.msra.mxu0 0
        %4754 = vmatprep.subr.bf16.mxu0 0
        %4755 = vmatpush1.bf16.msra.mxu0 0
        %4756 = vmatprep.subr.bf16.mxu0 0
        %4757 = vmatpush1.bf16.msra.mxu0 0
        %4758 = vmatprep.subr.bf16.mxu0 0
        %4759 = vmatpush1.bf16.msra.mxu0 0
        %4760 = vmatprep.subr.bf16.mxu0 0
        %4761 = vmatpush1.bf16.msra.mxu0 0
        %4762 = vmatprep.subr.bf16.mxu0 0
        %4763 = vmatpush1.bf16.msra.mxu0 0
        %4764 = vmatprep.mubr.bf16.mxu0 0
        %4765 = vmatmul.mubr.bf16.gmra.mrb[0].mxu0 %v4682
        %v4766 = vpop.f32.mrb[0].mxu0
        %v4767 = vadd.f32 0.0, %v4766
        %v4768 = vpop.f32.mrb[0].mxu0
        %v4769 = vpop.f32.mrb[0].mxu0
        %v4770 = vadd.f32 0.0, %v4769
        %v4771 = vpop.f32.mrb[0].mxu0
        %4772 = vmatprep.mubr.bf16.mxu0 0
        %4773 = vmatmul.mubr.bf16.gmra.mrb[0].mxu0 %v4683
        %v4774 = vpop.f32.mrb[0].mxu0
        %v4775 = vadd.f32 0.0, %v4774
        %v4776 = vpop.f32.mrb[0].mxu0
        %v4777 = vpop.f32.mrb[0].mxu0
        %v4778 = vadd.f32 0.0, %v4777
        %v4779 = vpop.f32.mrb[0].mxu0
        %4780 = vdwg.mxu0
        %v4797 = vunpack.c.l.b16 %v4647
        %v4798 = vunpack.c.l.b16 %v4648
        %v4799 = vunpack.c.l.b16 %v4649
        %v4800 = vunpack.c.l.b16 %v4650
        %v4801 = vunpack.c.l.b16 %v4651
        %v4802 = vunpack.c.l.b16 %v4652
        %v4803 = vunpack.c.l.b16 %v4653
        %v4804 = vunpack.c.l.b16 %v4654
        %v4805 = vunpack.c.l.b16 %v4655
        %v4806 = vunpack.c.l.b16 %v4656
        %v4807 = vunpack.c.l.b16 %v4657
        %v4808 = vunpack.c.l.b16 %v4658
        %v4809 = vunpack.c.l.b16 %v4659
        %v4810 = vunpack.c.l.b16 %v4660
        %v4811 = vunpack.c.l.b16 %v4661
        %v4812 = vunpack.c.l.b16 %v4662
        %v4813 = vpack.c.b16 %v4798, %v4797
        %v4814 = vpack.c.b16 %v4800, %v4799
        %v4815 = vpack.c.b16 %v4802, %v4801
        %v4816 = vpack.c.b16 %v4804, %v4803
        %v4817 = vpack.c.b16 %v4806, %v4805
        %v4818 = vpack.c.b16 %v4808, %v4807
        %v4819 = vpack.c.b16 %v4810, %v4809
        %v4820 = vpack.c.b16 %v4812, %v4811
        %4829 = vmatprep.subr.bf16.mxu0 0
        %4830 = vmatpush1.bf16.msra.mxu0 %v4813
        %4831 = vmatprep.subr.bf16.mxu0 0
        %4832 = vmatpush1.bf16.msra.mxu0 %v4814
        %4833 = vmatprep.subr.bf16.mxu0 0
        %4834 = vmatpush1.bf16.msra.mxu0 %v4815
        %4835 = vmatprep.subr.bf16.mxu0 0
        %4836 = vmatpush1.bf16.msra.mxu0 %v4816
        %4837 = vmatprep.subr.bf16.mxu0 0
        %4838 = vmatpush1.bf16.msra.mxu0 %v4817
        %4839 = vmatprep.subr.bf16.mxu0 0
        %4840 = vmatpush1.bf16.msra.mxu0 %v4818
        %4841 = vmatprep.subr.bf16.mxu0 0
        %4842 = vmatpush1.bf16.msra.mxu0 %v4819
        %4843 = vmatprep.subr.bf16.mxu0 0
        %4844 = vmatpush1.bf16.msra.mxu0 %v4820
        %4845 = vmatprep.subr.bf16.mxu0 0
        %4846 = vmatpush1.bf16.msra.mxu0 0
        %4847 = vmatprep.subr.bf16.mxu0 0
        %4848 = vmatpush1.bf16.msra.mxu0 0
        %4849 = vmatprep.subr.bf16.mxu0 0
        %4850 = vmatpush1.bf16.msra.mxu0 0
        %4851 = vmatprep.subr.bf16.mxu0 0
        %4852 = vmatpush1.bf16.msra.mxu0 0
        %4853 = vmatprep.subr.bf16.mxu0 0
        %4854 = vmatpush1.bf16.msra.mxu0 0
        %4855 = vmatprep.subr.bf16.mxu0 0
        %4856 = vmatpush1.bf16.msra.mxu0 0
        %4857 = vmatprep.subr.bf16.mxu0 0
        %4858 = vmatpush1.bf16.msra.mxu0 0
        %4859 = vmatprep.subr.bf16.mxu0 0
        %4860 = vmatpush1.bf16.msra.mxu0 0
        %4861 = vmatprep.mubr.bf16.mxu0 0
        %4862 = vmatmul.mubr.bf16.gmra.mrb[0].mxu0 %v4663
        %v4863 = vpop.f32.mrb[0].mxu0
        %v4864 = vadd.f32 %v4767, %v4863
        %v4865 = vpop.f32.mrb[0].mxu0
        %v4866 = vpop.f32.mrb[0].mxu0
        %v4867 = vadd.f32 %v4770, %v4866
        %v4868 = vpop.f32.mrb[0].mxu0
        %4869 = vmatprep.mubr.bf16.mxu0 0
        %4870 = vmatmul.mubr.bf16.gmra.mrb[0].mxu0 %v4664
        %v4871 = vpop.f32.mrb[0].mxu0
        %v4872 = vadd.f32 %v4775, %v4871
        %v4873 = vpop.f32.mrb[0].mxu0
        %v4874 = vpop.f32.mrb[0].mxu0
        %v4875 = vadd.f32 %v4778, %v4874
        %v4876 = vpop.f32.mrb[0].mxu0
        %4877 = vdwg.mxu0
        %s4878 = scalar_lea.vmem %s6, 384
        %v4879 = vld [vmem:[%s4878] sm:$0xf]
        %v4880 = vld [vmem:[%s4878 + $0x4] sm:$0xf]
        %v4881 = vld [vmem:[%s4878 + $0x8] sm:$0xf]
        %v4882 = vld [vmem:[%s4878 + $0xc] sm:$0xf]
        %v4883 = vld [vmem:[%s4878 + $0x10] sm:$0xf]
        %v4884 = vld [vmem:[%s4878 + $0x14] sm:$0xf]
        %v4885 = vld [vmem:[%s4878 + $0x18] sm:$0xf]
        %v4886 = vld [vmem:[%s4878 + $0x1c] sm:$0xf]
        %v4887 = vld [vmem:[%s4878 + $0x20] sm:$0xf]
        %v4888 = vld [vmem:[%s4878 + $0x24] sm:$0xf]
        %v4889 = vld [vmem:[%s4878 + $0x28] sm:$0xf]
        %v4890 = vld [vmem:[%s4878 + $0x2c] sm:$0xf]
        %v4891 = vld [vmem:[%s4878 + $0x30] sm:$0xf]
        %v4892 = vld [vmem:[%s4878 + $0x34] sm:$0xf]
        %v4893 = vld [vmem:[%s4878 + $0x38] sm:$0xf]
        %v4894 = vld [vmem:[%s4878 + $0x3c] sm:$0xf]
        %v4895 = vpack.c.bf16 %v4423, %v4422
        %v4896 = vpack.c.bf16 %v4425, %v4424
        %v4913 = vunpack.c.l.b16 %v4879
        %v4914 = vunpack.c.l.b16 %v4880
        %v4915 = vunpack.c.l.b16 %v4881
        %v4916 = vunpack.c.l.b16 %v4882
        %v4917 = vunpack.c.l.b16 %v4883
        %v4918 = vunpack.c.l.b16 %v4884
        %v4919 = vunpack.c.l.b16 %v4885
        %v4920 = vunpack.c.l.b16 %v4886
        %v4921 = vunpack.c.l.b16 %v4887
        %v4922 = vunpack.c.l.b16 %v4888
        %v4923 = vunpack.c.l.b16 %v4889
        %v4924 = vunpack.c.l.b16 %v4890
        %v4925 = vunpack.c.l.b16 %v4891
        %v4926 = vunpack.c.l.b16 %v4892
        %v4927 = vunpack.c.l.b16 %v4893
        %v4928 = vunpack.c.l.b16 %v4894
        %v4929 = vpack.c.b16 %v4914, %v4913
        %v4930 = vpack.c.b16 %v4916, %v4915
        %v4931 = vpack.c.b16 %v4918, %v4917
        %v4932 = vpack.c.b16 %v4920, %v4919
        %v4933 = vpack.c.b16 %v4922, %v4921
        %v4934 = vpack.c.b16 %v4924, %v4923
        %v4935 = vpack.c.b16 %v4926, %v4925
        %v4936 = vpack.c.b16 %v4928, %v4927
        %4945 = vmatprep.subr.bf16.mxu0 0
        %4946 = vmatpush1.bf16.msra.mxu0 %v4929
        %4947 = vmatprep.subr.bf16.mxu0 0
        %4948 = vmatpush1.bf16.msra.mxu0 %v4930
        %4949 = vmatprep.subr.bf16.mxu0 0
        %4950 = vmatpush1.bf16.msra.mxu0 %v4931
        %4951 = vmatprep.subr.bf16.mxu0 0
        %4952 = vmatpush1.bf16.msra.mxu0 %v4932
        %4953 = vmatprep.subr.bf16.mxu0 0
        %4954 = vmatpush1.bf16.msra.mxu0 %v4933
        %4955 = vmatprep.subr.bf16.mxu0 0
        %4956 = vmatpush1.bf16.msra.mxu0 %v4934
        %4957 = vmatprep.subr.bf16.mxu0 0
        %4958 = vmatpush1.bf16.msra.mxu0 %v4935
        %4959 = vmatprep.subr.bf16.mxu0 0
        %4960 = vmatpush1.bf16.msra.mxu0 %v4936
        %4961 = vmatprep.subr.bf16.mxu0 0
        %4962 = vmatpush1.bf16.msra.mxu0 0
        %4963 = vmatprep.subr.bf16.mxu0 0
        %4964 = vmatpush1.bf16.msra.mxu0 0
        %4965 = vmatprep.subr.bf16.mxu0 0
        %4966 = vmatpush1.bf16.msra.mxu0 0
        %4967 = vmatprep.subr.bf16.mxu0 0
        %4968 = vmatpush1.bf16.msra.mxu0 0
        %4969 = vmatprep.subr.bf16.mxu0 0
        %4970 = vmatpush1.bf16.msra.mxu0 0
        %4971 = vmatprep.subr.bf16.mxu0 0
        %4972 = vmatpush1.bf16.msra.mxu0 0
        %4973 = vmatprep.subr.bf16.mxu0 0
        %4974 = vmatpush1.bf16.msra.mxu0 0
        %4975 = vmatprep.subr.bf16.mxu0 0
        %4976 = vmatpush1.bf16.msra.mxu0 0
        %4977 = vmatprep.mubr.bf16.mxu0 0
        %4978 = vmatmul.mubr.bf16.gmra.mrb[0].mxu0 %v4895
        %v4979 = vpop.f32.mrb[0].mxu0
        %v4980 = vadd.f32 0.0, %v4979
        %v4981 = vpop.f32.mrb[0].mxu0
        %v4982 = vpop.f32.mrb[0].mxu0
        %v4983 = vadd.f32 0.0, %v4982
        %v4984 = vpop.f32.mrb[0].mxu0
        %4985 = vmatprep.mubr.bf16.mxu0 0
        %4986 = vmatmul.mubr.bf16.gmra.mrb[0].mxu0 %v4896
        %v4987 = vpop.f32.mrb[0].mxu0
        %v4988 = vadd.f32 0.0, %v4987
        %v4989 = vpop.f32.mrb[0].mxu0
        %v4990 = vpop.f32.mrb[0].mxu0
        %v4991 = vadd.f32 0.0, %v4990
        %v4992 = vpop.f32.mrb[0].mxu0
        %4993 = vdwg.mxu0
        %v4994 = vadd.f32 %v4864, %v4980
        %v4995 = vadd.f32 %v4867, %v4983
        %v4996 = vadd.f32 %v4872, %v4988
        %v4997 = vadd.f32 %v4875, %v4991
        %s4998 = scalar_lea.vmem %s6, 448
        %v4999 = vld [vmem:[%s4998] sm:$0xf]
        %v5000 = vld [vmem:[%s4998 + $0x4] sm:$0xf]
        %v5001 = vld [vmem:[%s4998 + $0x8] sm:$0xf]
        %v5002 = vld [vmem:[%s4998 + $0xc] sm:$0xf]
        %v5003 = vld [vmem:[%s4998 + $0x10] sm:$0xf]
        %v5004 = vld [vmem:[%s4998 + $0x14] sm:$0xf]
        %v5005 = vld [vmem:[%s4998 + $0x18] sm:$0xf]
        %v5006 = vld [vmem:[%s4998 + $0x1c] sm:$0xf]
        %v5007 = vld [vmem:[%s4998 + $0x20] sm:$0xf]
        %v5008 = vld [vmem:[%s4998 + $0x24] sm:$0xf]
        %v5009 = vld [vmem:[%s4998 + $0x28] sm:$0xf]
        %v5010 = vld [vmem:[%s4998 + $0x2c] sm:$0xf]
        %v5011 = vld [vmem:[%s4998 + $0x30] sm:$0xf]
        %v5012 = vld [vmem:[%s4998 + $0x34] sm:$0xf]
        %v5013 = vld [vmem:[%s4998 + $0x38] sm:$0xf]
        %v5014 = vld [vmem:[%s4998 + $0x3c] sm:$0xf]
        %v5015 = vpack.c.bf16 %v4643, %v4642
        %v5016 = vpack.c.bf16 %v4645, %v4644
        %v5033 = vunpack.c.l.b16 %v4999
        %v5034 = vunpack.c.l.b16 %v5000
        %v5035 = vunpack.c.l.b16 %v5001
        %v5036 = vunpack.c.l.b16 %v5002
        %v5037 = vunpack.c.l.b16 %v5003
        %v5038 = vunpack.c.l.b16 %v5004
        %v5039 = vunpack.c.l.b16 %v5005
        %v5040 = vunpack.c.l.b16 %v5006
        %v5041 = vunpack.c.l.b16 %v5007
        %v5042 = vunpack.c.l.b16 %v5008
        %v5043 = vunpack.c.l.b16 %v5009
        %v5044 = vunpack.c.l.b16 %v5010
        %v5045 = vunpack.c.l.b16 %v5011
        %v5046 = vunpack.c.l.b16 %v5012
        %v5047 = vunpack.c.l.b16 %v5013
        %v5048 = vunpack.c.l.b16 %v5014
        %v5049 = vpack.c.b16 %v5034, %v5033
        %v5050 = vpack.c.b16 %v5036, %v5035
        %v5051 = vpack.c.b16 %v5038, %v5037
        %v5052 = vpack.c.b16 %v5040, %v5039
        %v5053 = vpack.c.b16 %v5042, %v5041
        %v5054 = vpack.c.b16 %v5044, %v5043
        %v5055 = vpack.c.b16 %v5046, %v5045
        %v5056 = vpack.c.b16 %v5048, %v5047
        %5065 = vmatprep.subr.bf16.mxu0 0
        %5066 = vmatpush1.bf16.msra.mxu0 %v5049
        %5067 = vmatprep.subr.bf16.mxu0 0
        %5068 = vmatpush1.bf16.msra.mxu0 %v5050
        %5069 = vmatprep.subr.bf16.mxu0 0
        %5070 = vmatpush1.bf16.msra.mxu0 %v5051
        %5071 = vmatprep.subr.bf16.mxu0 0
        %5072 = vmatpush1.bf16.msra.mxu0 %v5052
        %5073 = vmatprep.subr.bf16.mxu0 0
        %5074 = vmatpush1.bf16.msra.mxu0 %v5053
        %5075 = vmatprep.subr.bf16.mxu0 0
        %5076 = vmatpush1.bf16.msra.mxu0 %v5054
        %5077 = vmatprep.subr.bf16.mxu0 0
        %5078 = vmatpush1.bf16.msra.mxu0 %v5055
        %5079 = vmatprep.subr.bf16.mxu0 0
        %5080 = vmatpush1.bf16.msra.mxu0 %v5056
        %5081 = vmatprep.subr.bf16.mxu0 0
        %5082 = vmatpush1.bf16.msra.mxu0 0
        %5083 = vmatprep.subr.bf16.mxu0 0
        %5084 = vmatpush1.bf16.msra.mxu0 0
        %5085 = vmatprep.subr.bf16.mxu0 0
        %5086 = vmatpush1.bf16.msra.mxu0 0
        %5087 = vmatprep.subr.bf16.mxu0 0
        %5088 = vmatpush1.bf16.msra.mxu0 0
        %5089 = vmatprep.subr.bf16.mxu0 0
        %5090 = vmatpush1.bf16.msra.mxu0 0
        %5091 = vmatprep.subr.bf16.mxu0 0
        %5092 = vmatpush1.bf16.msra.mxu0 0
        %5093 = vmatprep.subr.bf16.mxu0 0
        %5094 = vmatpush1.bf16.msra.mxu0 0
        %5095 = vmatprep.subr.bf16.mxu0 0
        %5096 = vmatpush1.bf16.msra.mxu0 0
        %5097 = vmatprep.mubr.bf16.mxu0 0
        %5098 = vmatmul.mubr.bf16.gmra.mrb[0].mxu0 %v5015
        %v5099 = vpop.f32.mrb[0].mxu0
        %v5100 = vadd.f32 0.0, %v5099
        %v5101 = vpop.f32.mrb[0].mxu0
        %v5102 = vpop.f32.mrb[0].mxu0
        %v5103 = vadd.f32 0.0, %v5102
        %v5104 = vpop.f32.mrb[0].mxu0
        %5105 = vmatprep.mubr.bf16.mxu0 0
        %5106 = vmatmul.mubr.bf16.gmra.mrb[0].mxu0 %v5016
        %v5107 = vpop.f32.mrb[0].mxu0
        %v5108 = vadd.f32 0.0, %v5107
        %v5109 = vpop.f32.mrb[0].mxu0
        %v5110 = vpop.f32.mrb[0].mxu0
        %v5111 = vadd.f32 0.0, %v5110
        %v5112 = vpop.f32.mrb[0].mxu0
        %5113 = vdwg.mxu0
        %v5114 = vadd.f32 %v4994, %v5100
        %v5115 = vadd.f32 %v4995, %v5103
        %v5116 = vadd.f32 %v4996, %v5108
        %v5117 = vadd.f32 %v4997, %v5111
        %s5118 = scalar_lea.vmem %s8, 8
        %v5119 = vld [vmem:[%s5118] sm:$0x1]
        %v5121 = vlaneseq
        %v5122 = vshrl.u32 %v5121, 7
        %v5123 = vsub.s32 0, %v5122
        %v5124 = vrot.slane %v5119, %v5123
        %v5126 = vadd.f32 %v5114, %v5124
        %v5127 = vadd.f32 %v5115, %v5124
        %v5128 = vadd.f32 %v5116, %v5124
        %v5129 = vadd.f32 %v5117, %v5124
        %s5130 = scalar_lea.vmem %s7, 128
        %v5131 = vld [vmem:[%s5130] sm:$0xf]
        %v5132 = vld [vmem:[%s5130 + $0x4] sm:$0xf]
        %v5133 = vld [vmem:[%s5130 + $0x8] sm:$0xf]
        %v5134 = vld [vmem:[%s5130 + $0xc] sm:$0xf]
        %v5135 = vld [vmem:[%s5130 + $0x10] sm:$0xf]
        %v5136 = vld [vmem:[%s5130 + $0x14] sm:$0xf]
        %v5137 = vld [vmem:[%s5130 + $0x18] sm:$0xf]
        %v5138 = vld [vmem:[%s5130 + $0x1c] sm:$0xf]
        %v5139 = vld [vmem:[%s5130 + $0x20] sm:$0xf]
        %v5140 = vld [vmem:[%s5130 + $0x24] sm:$0xf]
        %v5141 = vld [vmem:[%s5130 + $0x28] sm:$0xf]
        %v5142 = vld [vmem:[%s5130 + $0x2c] sm:$0xf]
        %v5143 = vld [vmem:[%s5130 + $0x30] sm:$0xf]
        %v5144 = vld [vmem:[%s5130 + $0x34] sm:$0xf]
        %v5145 = vld [vmem:[%s5130 + $0x38] sm:$0xf]
        %v5146 = vld [vmem:[%s5130 + $0x3c] sm:$0xf]
        %v5147 = vpack.c.bf16 %v5127, %v5126
        %v5148 = vpack.c.bf16 %v5129, %v5128
        %s5149 = scalar_lea.vmem %s7, 192
        %v5150 = vld [vmem:[%s5149] sm:$0xf]
        %v5151 = vld [vmem:[%s5149 + $0x4] sm:$0xf]
        %v5152 = vld [vmem:[%s5149 + $0x8] sm:$0xf]
        %v5153 = vld [vmem:[%s5149 + $0xc] sm:$0xf]
        %v5154 = vld [vmem:[%s5149 + $0x10] sm:$0xf]
        %v5155 = vld [vmem:[%s5149 + $0x14] sm:$0xf]
        %v5156 = vld [vmem:[%s5149 + $0x18] sm:$0xf]
        %v5157 = vld [vmem:[%s5149 + $0x1c] sm:$0xf]
        %v5158 = vld [vmem:[%s5149 + $0x20] sm:$0xf]
        %v5159 = vld [vmem:[%s5149 + $0x24] sm:$0xf]
        %v5160 = vld [vmem:[%s5149 + $0x28] sm:$0xf]
        %v5161 = vld [vmem:[%s5149 + $0x2c] sm:$0xf]
        %v5162 = vld [vmem:[%s5149 + $0x30] sm:$0xf]
        %v5163 = vld [vmem:[%s5149 + $0x34] sm:$0xf]
        %v5164 = vld [vmem:[%s5149 + $0x38] sm:$0xf]
        %v5165 = vld [vmem:[%s5149 + $0x3c] sm:$0xf]
        %v5182 = vunpack.c.l.b16 %v5150
        %v5183 = vunpack.c.l.b16 %v5151
        %v5184 = vunpack.c.l.b16 %v5152
        %v5185 = vunpack.c.l.b16 %v5153
        %v5186 = vunpack.c.l.b16 %v5154
        %v5187 = vunpack.c.l.b16 %v5155
        %v5188 = vunpack.c.l.b16 %v5156
        %v5189 = vunpack.c.l.b16 %v5157
        %v5190 = vunpack.c.l.b16 %v5158
        %v5191 = vunpack.c.l.b16 %v5159
        %v5192 = vunpack.c.l.b16 %v5160
        %v5193 = vunpack.c.l.b16 %v5161
        %v5194 = vunpack.c.l.b16 %v5162
        %v5195 = vunpack.c.l.b16 %v5163
        %v5196 = vunpack.c.l.b16 %v5164
        %v5197 = vunpack.c.l.b16 %v5165
        %v5198 = vpack.c.b16 %v5183, %v5182
        %v5199 = vpack.c.b16 %v5185, %v5184
        %v5200 = vpack.c.b16 %v5187, %v5186
        %v5201 = vpack.c.b16 %v5189, %v5188
        %v5202 = vpack.c.b16 %v5191, %v5190
        %v5203 = vpack.c.b16 %v5193, %v5192
        %v5204 = vpack.c.b16 %v5195, %v5194
        %v5205 = vpack.c.b16 %v5197, %v5196
        %5214 = vmatprep.subr.bf16.mxu0 0
        %5215 = vmatpush1.bf16.msra.mxu0 %v5198
        %5216 = vmatprep.subr.bf16.mxu0 0
        %5217 = vmatpush1.bf16.msra.mxu0 %v5199
        %5218 = vmatprep.subr.bf16.mxu0 0
        %5219 = vmatpush1.bf16.msra.mxu0 %v5200
        %5220 = vmatprep.subr.bf16.mxu0 0
        %5221 = vmatpush1.bf16.msra.mxu0 %v5201
        %5222 = vmatprep.subr.bf16.mxu0 0
        %5223 = vmatpush1.bf16.msra.mxu0 %v5202
        %5224 = vmatprep.subr.bf16.mxu0 0
        %5225 = vmatpush1.bf16.msra.mxu0 %v5203
        %5226 = vmatprep.subr.bf16.mxu0 0
        %5227 = vmatpush1.bf16.msra.mxu0 %v5204
        %5228 = vmatprep.subr.bf16.mxu0 0
        %5229 = vmatpush1.bf16.msra.mxu0 %v5205
        %5230 = vmatprep.subr.bf16.mxu0 0
        %5231 = vmatpush1.bf16.msra.mxu0 0
        %5232 = vmatprep.subr.bf16.mxu0 0
        %5233 = vmatpush1.bf16.msra.mxu0 0
        %5234 = vmatprep.subr.bf16.mxu0 0
        %5235 = vmatpush1.bf16.msra.mxu0 0
        %5236 = vmatprep.subr.bf16.mxu0 0
        %5237 = vmatpush1.bf16.msra.mxu0 0
        %5238 = vmatprep.subr.bf16.mxu0 0
        %5239 = vmatpush1.bf16.msra.mxu0 0
        %5240 = vmatprep.subr.bf16.mxu0 0
        %5241 = vmatpush1.bf16.msra.mxu0 0
        %5242 = vmatprep.subr.bf16.mxu0 0
        %5243 = vmatpush1.bf16.msra.mxu0 0
        %5244 = vmatprep.subr.bf16.mxu0 0
        %5245 = vmatpush1.bf16.msra.mxu0 0
        %5246 = vmatprep.mubr.bf16.mxu0 0
        %5247 = vmatmul.mubr.bf16.gmra.mrb[0].mxu0 %v551
        %v5248 = vpop.f32.mrb[0].mxu0
        %v5249 = vadd.f32 0.0, %v5248
        %v5250 = vpop.f32.mrb[0].mxu0
        %v5251 = vpop.f32.mrb[0].mxu0
        %v5252 = vadd.f32 0.0, %v5251
        %v5253 = vpop.f32.mrb[0].mxu0
        %5254 = vmatprep.mubr.bf16.mxu0 0
        %5255 = vmatmul.mubr.bf16.gmra.mrb[0].mxu0 %v552
        %v5256 = vpop.f32.mrb[0].mxu0
        %v5257 = vadd.f32 0.0, %v5256
        %v5258 = vpop.f32.mrb[0].mxu0
        %v5259 = vpop.f32.mrb[0].mxu0
        %v5260 = vadd.f32 0.0, %v5259
        %v5261 = vpop.f32.mrb[0].mxu0
        %5262 = vdwg.mxu0
        %v5279 = vunpack.c.l.b16 %v5131
        %v5280 = vunpack.c.l.b16 %v5132
        %v5281 = vunpack.c.l.b16 %v5133
        %v5282 = vunpack.c.l.b16 %v5134
        %v5283 = vunpack.c.l.b16 %v5135
        %v5284 = vunpack.c.l.b16 %v5136
        %v5285 = vunpack.c.l.b16 %v5137
        %v5286 = vunpack.c.l.b16 %v5138
        %v5287 = vunpack.c.l.b16 %v5139
        %v5288 = vunpack.c.l.b16 %v5140
        %v5289 = vunpack.c.l.b16 %v5141
        %v5290 = vunpack.c.l.b16 %v5142
        %v5291 = vunpack.c.l.b16 %v5143
        %v5292 = vunpack.c.l.b16 %v5144
        %v5293 = vunpack.c.l.b16 %v5145
        %v5294 = vunpack.c.l.b16 %v5146
        %v5295 = vpack.c.b16 %v5280, %v5279
        %v5296 = vpack.c.b16 %v5282, %v5281
        %v5297 = vpack.c.b16 %v5284, %v5283
        %v5298 = vpack.c.b16 %v5286, %v5285
        %v5299 = vpack.c.b16 %v5288, %v5287
        %v5300 = vpack.c.b16 %v5290, %v5289
        %v5301 = vpack.c.b16 %v5292, %v5291
        %v5302 = vpack.c.b16 %v5294, %v5293
        %5311 = vmatprep.subr.bf16.mxu0 0
        %5312 = vmatpush1.bf16.msra.mxu0 %v5295
        %5313 = vmatprep.subr.bf16.mxu0 0
        %5314 = vmatpush1.bf16.msra.mxu0 %v5296
        %5315 = vmatprep.subr.bf16.mxu0 0
        %5316 = vmatpush1.bf16.msra.mxu0 %v5297
        %5317 = vmatprep.subr.bf16.mxu0 0
        %5318 = vmatpush1.bf16.msra.mxu0 %v5298
        %5319 = vmatprep.subr.bf16.mxu0 0
        %5320 = vmatpush1.bf16.msra.mxu0 %v5299
        %5321 = vmatprep.subr.bf16.mxu0 0
        %5322 = vmatpush1.bf16.msra.mxu0 %v5300
        %5323 = vmatprep.subr.bf16.mxu0 0
        %5324 = vmatpush1.bf16.msra.mxu0 %v5301
        %5325 = vmatprep.subr.bf16.mxu0 0
        %5326 = vmatpush1.bf16.msra.mxu0 %v5302
        %5327 = vmatprep.subr.bf16.mxu0 0
        %5328 = vmatpush1.bf16.msra.mxu0 0
        %5329 = vmatprep.subr.bf16.mxu0 0
        %5330 = vmatpush1.bf16.msra.mxu0 0
        %5331 = vmatprep.subr.bf16.mxu0 0
        %5332 = vmatpush1.bf16.msra.mxu0 0
        %5333 = vmatprep.subr.bf16.mxu0 0
        %5334 = vmatpush1.bf16.msra.mxu0 0
        %5335 = vmatprep.subr.bf16.mxu0 0
        %5336 = vmatpush1.bf16.msra.mxu0 0
        %5337 = vmatprep.subr.bf16.mxu0 0
        %5338 = vmatpush1.bf16.msra.mxu0 0
        %5339 = vmatprep.subr.bf16.mxu0 0
        %5340 = vmatpush1.bf16.msra.mxu0 0
        %5341 = vmatprep.subr.bf16.mxu0 0
        %5342 = vmatpush1.bf16.msra.mxu0 0
        %5343 = vmatprep.mubr.bf16.mxu0 0
        %5344 = vmatmul.mubr.bf16.gmra.mrb[0].mxu0 %v5147
        %v5345 = vpop.f32.mrb[0].mxu0
        %v5346 = vadd.f32 %v5249, %v5345
        %v5347 = vpop.f32.mrb[0].mxu0
        %v5348 = vpop.f32.mrb[0].mxu0
        %v5349 = vadd.f32 %v5252, %v5348
        %v5350 = vpop.f32.mrb[0].mxu0
        %5351 = vmatprep.mubr.bf16.mxu0 0
        %5352 = vmatmul.mubr.bf16.gmra.mrb[0].mxu0 %v5148
        %v5353 = vpop.f32.mrb[0].mxu0
        %v5354 = vadd.f32 %v5257, %v5353
        %v5355 = vpop.f32.mrb[0].mxu0
        %v5356 = vpop.f32.mrb[0].mxu0
        %v5357 = vadd.f32 %v5260, %v5356
        %v5358 = vpop.f32.mrb[0].mxu0
        %5359 = vdwg.mxu0
        %s5360 = scalar_lea.vmem %s8, 9
        %v5361 = vld [vmem:[%s5360] sm:$0x1]
        %v5363 = vlaneseq
        %v5364 = vshrl.u32 %v5363, 7
        %v5365 = vsub.s32 0, %v5364
        %v5366 = vrot.slane %v5361, %v5365
        %v5368 = vadd.f32 %v5346, %v5366
        %v5369 = vadd.f32 %v5349, %v5366
        %v5370 = vadd.f32 %v5354, %v5366
        %v5371 = vadd.f32 %v5357, %v5366
        %5372 = vst [vmem:[%s391] sm:$0xff] %v5368
        %5373 = vst [vmem:[%s391 + $0x8] sm:$0xff] %v5369
        %5374 = vst [vmem:[%s391 + $0x10] sm:$0xff] %v5370
        %5375 = vst [vmem:[%s391 + $0x18] sm:$0xff] %v5371
        %s5376 = smul.u32 4, %s23
        %p5377 = scmp.lt.s32.totalorder %s5376, 7
        %s5378 = scalar_select %p5377, %s5376, 7
        %s5379 = smul.addr %s5378, 8
        %s5380 = scalar_lea.vmem %s10, %s5379
        // Predicated region
        $region69: #{dense_block_forward.1} parent=59 // pred_check
          %p5381 = pneg %p256
        $region70: #{dense_block_forward.1} parent=59 // pred_check_branch
          %5383 = sbr.rel (%p5381) target = $region72
        $region71: #{dense_block_forward.1} parent=59 // pred_region
          %s5384 = smul.u32 4, %s23
        $region72: #{dense_block_forward.1} parent=59 // pred_fallthru
          _
      $region60: #{dense_block_forward.1} parent=5 // pred_fallthru
        _
      %p5385 = scmp.le.s32.totalorder 2, %s18
      // Predicated region
      $region73: #{dense_block_forward.1} parent=5 // pred_check
        %p5386 = pneg %p5385
      $region74: #{dense_block_forward.1} parent=5 // pred_check_branch
        %5388 = sbr.rel (%p5386) target = $region76
      $region75: #{dense_block_forward.1} parent=5 // pred_region
        %s5389 = ssub.s32 %s18, 2
        // Predicated region
        $region77: #{dense_block_forward.1} parent=75 // pred_check
          %p5390 = pneg %p262
        $region78: #{dense_block_forward.1} parent=75 // pred_check_branch
          %5392 = sbr.rel (%p5390) target = $region80
        $region79: #{dense_block_forward.1} parent=75 // pred_region
          %s5393 = smul.u32 4, %s24
          %p5394 = scmp.lt.s32.totalorder %s5393, 7
          %s5395 = scalar_select %p5394, %s5393, 7
          %s5396 = smul.addr %s5395, 8
          %s5397 = scalar_lea.vmem %s10, %s5396
        $region80: #{dense_block_forward.1} parent=75 // pred_fallthru
          _
      $region76: #{dense_block_forward.1} parent=5 // pred_fallthru
        _
    $region6: #{dense_block_forward.1} parent=1 // loop_footer
      %s22 = sadd.s32 1, %s18
    $region7: #{dense_block_forward.1} parent=1 // loop_footer_branch
      %17 = sbr.rel target = $region3
    $region8: #{dense_block_forward.1} parent=1 // loop_exit
      _
    %5398 = vsyncpa [#allocation3], 1
    %s5399 = scalar_lea.sflag [#allocation3], 1
    %5400 = vsyncpa %s5399, 1
    %5401 = vsyncpa [#allocation5], 1

</llo_original>
